<compile_context>
chip_gen: v7x
topology: tpu7x:2x2x1
jax: 0.10.0
libtpu: 0.0.40
codegen_flags: <defaults>
</compile_context>

<pallas_src>
import functools

import jax
import jax.numpy as jnp
from jax import lax
from jax.experimental import pallas as pl
from jax.experimental.pallas import tpu as pltpu

KSIZE = 3            # DurationPredictor kernel_size
LN_EPS = 1e-5        # nn.LayerNorm default eps
MAX_OUT_LEN = 128    # static upper bound on the expanded sequence length


def _layer_norm(v, gamma, beta):
    mu = jnp.mean(v, axis=-1, keepdims=True)
    ctr = v - mu
    var = jnp.mean(ctr * ctr, axis=-1, keepdims=True)
    return ctr * lax.rsqrt(var + LN_EPS) * gamma + beta


def length_regulator_kernel(lens_ref, x_ref,
                            w1_ref, b1_ref, g1_ref, be1_ref,
                            w2_ref, b2_ref, g2_ref, be2_ref,
                            wl_ref, bl_ref,
                            out_ref, pos_ref, dur_ref, *, alpha, nb, t):
    """One grid step processes nb batch elements stacked along the M (sublane) axis.

    lens_ref : (B,) int32 SMEM (scalar prefetch)  valid sequence lengths
    x_ref    : (1, nb*T, C)   encoder outputs for this step's nb elements
    w1_ref   : (3*C, F) bf16  conv1 weight, tap-major im2col layout
    w2_ref   : (3*F, F) bf16  conv2 weight, tap-major im2col layout
    wl_ref   : (1, F)  bl_ref : (1, 1)   Linear(F,1) head
    b*/g*/be*: (1, F)         conv biases / LayerNorm gamma, beta
    out_ref  : (1, MAX_OUT, nb*C)  lane-packed expanded outputs (element j -> lanes j*C:(j+1)*C)
    pos_ref  : (1, nb, MAX_OUT)    1-based positions, 0 past each expanded length
    dur_ref  : (1, nb, T)          duration = clamp_min(exp(pred) - 1, 0)
    """
    c = x_ref.shape[-1]
    nrows = nb * t
    max_out = out_ref.shape[1]
    base = pl.program_id(0) * nb

    x2d = x_ref[0]                                                     # (nb*T, C)

    # ---- sequence mask built in-kernel from SMEM lengths (no mask HBM stream) ----
    tcol = lax.broadcasted_iota(jnp.int32, (t, 1), 0)                  # (T, 1)
    mask_col = jnp.concatenate(
        [(tcol < lens_ref[base + j]).astype(jnp.float32) for j in range(nb)],
        axis=0)                                                        # (nb*T, 1)
    xm = x2d * mask_col                                                # input *= input_mask

    # Boundary masks zeroing the rolled taps at per-sequence edges (conv zero pad).
    not_first = jnp.tile((tcol != 0).astype(jnp.float32), (nb, 1))     # (nb*T, 1)
    not_last = jnp.tile((tcol != t - 1).astype(jnp.float32), (nb, 1))  # (nb*T, 1)

    # ---- "same" conv (k=3, pad=1) + ReLU: 3 per-tap MXU matmuls, f32 accumulation.
    def conv_relu(inp, w_ref, b_ref):
        cin = inp.shape[-1]
        prv = pltpu.roll(inp, shift=1, axis=0) * not_first             # x[b, t-1]
        nxt = pltpu.roll(inp, shift=nrows - 1, axis=0) * not_last      # x[b, t+1]
        y = b_ref[...]
        y = y + jnp.dot(prv.astype(jnp.bfloat16), w_ref[0 * cin:1 * cin, :],
                        preferred_element_type=jnp.float32)
        y = y + jnp.dot(inp.astype(jnp.bfloat16), w_ref[1 * cin:2 * cin, :],
                        preferred_element_type=jnp.float32)
        y = y + jnp.dot(nxt.astype(jnp.bfloat16), w_ref[2 * cin:3 * cin, :],
                        preferred_element_type=jnp.float32)
        return jnp.maximum(y, 0.0)                                     # ReLU

    h = _layer_norm(conv_relu(xm, w1_ref, b1_ref), g1_ref[...], be1_ref[...])
    # dropout_1: eval-mode identity
    h = _layer_norm(conv_relu(h, w2_ref, b2_ref), g2_ref[...], be2_ref[...])
    # dropout_2: eval-mode identity

    # ---- Linear(F -> 1) head, re-masked; eval duration transform ----
    d = jnp.sum(h * wl_ref[...], axis=-1, keepdims=True) + bl_ref[...]  # (nb*T, 1)
    d = d * mask_col
    dur_col = jnp.maximum(jnp.exp(d) - 1.0, 0.0)                        # (nb*T, 1)

    # Exact column -> (nb, T) lane-layout transpose via 0/1 identity reduce.
    s_i = lax.broadcasted_iota(jnp.int32, (t, t), 0)
    t_i = lax.broadcasted_iota(jnp.int32, (t, t), 1)
    eye = (s_i == t_i).astype(jnp.float32)                              # (T, T)
    dur_rows = jnp.concatenate(
        [jnp.sum(dur_col[j * t:(j + 1) * t, :] * eye, axis=0, keepdims=True)
         for j in range(nb)], axis=0)                                   # (nb, T)
    dur_ref[0] = dur_rows

    # ---- repeats, inclusive prefix sum on the MXU (bf16 exact for small ints) ----
    rep = jnp.round(dur_rows * alpha)                                   # (nb, T) whole floats
    tri = (s_i <= t_i).astype(jnp.bfloat16)                             # (T, T) upper-tri incl.
    ends = jnp.dot(rep.astype(jnp.bfloat16), tri,
                   preferred_element_type=jnp.float32)                  # (nb, T) exact ints
    starts = ends - rep                                                 # (nb, T) exact

    # ---- repeat_interleave: 0/1 interval-selection matmul per element, results
    #      packed along lanes into one dense (MAX_OUT, nb*C) slab ----
    o_col = lax.broadcasted_iota(jnp.int32, (max_out, 1), 0).astype(jnp.float32)
    outs = []
    for j in range(nb):
        sel = jnp.logical_and(o_col >= starts[j:j + 1, :],
                              o_col < ends[j:j + 1, :]).astype(jnp.float32)   # (MAX_OUT, T)
        outs.append(jnp.dot(sel, xm[j * t:(j + 1) * t, :],
                            preferred_element_type=jnp.float32))              # exact row copies
    out_ref[0] = jnp.concatenate(outs, axis=-1).astype(out_ref.dtype)

    totals = ends[:, t - 1:t]                                           # (nb, 1)
    oi = lax.broadcasted_iota(jnp.int32, (nb, max_out), 1)              # (nb, MAX_OUT)
    pos_ref[0] = jnp.where(oi.astype(jnp.float32) < totals, oi + 1, 0)


def length_regulator(x, lengths, w1, b1, g1, be1, w2, b2, g2, be2, wl, bl,
                     *, alpha=1.0, nb=4, max_out=MAX_OUT_LEN):
    """x: (B, T, C) f32; lengths: (B,) int32 valid lengths.
    Conv weights are im2col tap-major (K*C_in, C_out) bf16 (from PyTorch Conv1d
    weight W (C_out, C_in, K): W.permute(2,1,0).reshape(K*C_in, C_out))."""
    b, t, c = x.shape
    f = b1.shape[-1]
    assert b % nb == 0, "batch must be divisible by nb (elements per grid step)"
    steps = b // nb
    xg = x.reshape(steps, nb * t, c)          # group nb elements per grid step (free)

    blk3 = lambda i, lens: (i, 0, 0)
    const2 = lambda i, lens: (0, 0)

    out, pos, dur = pl.pallas_call(
        functools.partial(length_regulator_kernel, alpha=float(alpha), nb=nb, t=t),
        out_shape=(
            jax.ShapeDtypeStruct((steps, max_out, nb * c), x.dtype),   # lane-packed output
            jax.ShapeDtypeStruct((steps, nb, max_out), jnp.int32),     # output_pos
            jax.ShapeDtypeStruct((steps, nb, t), jnp.float32),         # duration
        ),
        grid_spec=pltpu.PrefetchScalarGridSpec(
            num_scalar_prefetch=1,                                     # lengths -> SMEM
            grid=(steps,),
            in_specs=[
                pl.BlockSpec((1, nb * t, c), blk3),                    # x (nb elements/step)
                pl.BlockSpec((KSIZE * c, f), const2),                  # w1 (VMEM-resident)
                pl.BlockSpec((1, f), const2),                          # b1
                pl.BlockSpec((1, f), const2),                          # ln1 gamma
                pl.BlockSpec((1, f), const2),                          # ln1 beta
                pl.BlockSpec((KSIZE * f, f), const2),                  # w2 (VMEM-resident)
                pl.BlockSpec((1, f), const2),                          # b2
                pl.BlockSpec((1, f), const2),                          # ln2 gamma
                pl.BlockSpec((1, f), const2),                          # ln2 beta
                pl.BlockSpec((1, f), const2),                          # linear weight
                pl.BlockSpec((1, 1), const2),                          # linear bias
            ],
            out_specs=(
                pl.BlockSpec((1, max_out, nb * c), blk3),
                pl.BlockSpec((1, nb, max_out), blk3),
                pl.BlockSpec((1, nb, t), blk3),
            ),
        ),
        compiler_params=pltpu.CompilerParams(
            dimension_semantics=("parallel",)),
    )(lengths, xg, w1, b1, g1, be1, w2, b2, g2, be2, wl, bl)

    # Un-pack the lane-packed output slab (wrapper-side layout plumbing, free in XLA).
    out = jnp.transpose(out.reshape(steps, max_out, nb, c), (0, 2, 1, 3))
    out = out.reshape(b, max_out, c)
    pos = pos.reshape(b, max_out)
    dur = dur.reshape(b, t)
    return out, pos, dur


def reference_length_regulator(x, lengths, w1, b1, g1, be1, w2, b2, g2, be2, wl, bl,
                               *, alpha=1.0, max_out=MAX_OUT_LEN):
    """Pure-JAX reproduction of the PyTorch eval forward (same weight layout/math)."""
    b, t, c = x.shape
    mask = (jnp.arange(t)[None, :] < lengths[:, None]).astype(jnp.float32)[..., None]
    xm = x * mask

    def conv_relu(inp, w, bias):
        cin = inp.shape[-1]
        prv = jnp.pad(inp, ((0, 0), (1, 0), (0, 0)))[:, :t, :]
        nxt = jnp.pad(inp, ((0, 0), (0, 1), (0, 0)))[:, 1:, :]
        taps = [prv, inp, nxt]
        y = bias
        for k in range(KSIZE):
            y = y + jnp.einsum("btc,cf->btf", taps[k].astype(jnp.bfloat16),
                               w[k * cin:(k + 1) * cin, :],
                               preferred_element_type=jnp.float32)
        return jax.nn.relu(y)

    def ln(v, g, be):
        mu = jnp.mean(v, -1, keepdims=True)
        var = jnp.mean((v - mu) ** 2, -1, keepdims=True)
        return (v - mu) * lax.rsqrt(var + LN_EPS) * g + be

    h = ln(conv_relu(xm, w1, b1), g1, be1)
    h = ln(conv_relu(h, w2, b2), g2, be2)
    d = jnp.sum(h * wl, axis=-1, keepdims=True) + bl
    d = d * mask
    dur = jnp.maximum(jnp.exp(d[..., 0]) - 1.0, 0.0)                     # (B, T)

    rep = jnp.round(dur * alpha).astype(jnp.int32)
    ends = jnp.cumsum(rep, axis=1)
    starts = ends - rep
    o = jnp.arange(max_out)
    sel = ((o[None, :, None] >= starts[:, None, :]) &
           (o[None, :, None] < ends[:, None, :])).astype(x.dtype)        # (B, O, T)
    out = jnp.einsum("bot,btc->boc", sel, xm)
    pos = jnp.where(o[None, :] < ends[:, -1:], o[None, :] + 1, 0).astype(jnp.int32)
    return out, pos, dur


if __name__ == "__main__":
    B, T = 8, 16
    C = 32     # input_size (encoder dim)
    F = 64     # duration_predictor_filter_size
    NB = 4     # batch elements per grid step (NB*C = 128 -> lane-dense output slab)
    ALPHA = 1.0

    key = jax.random.PRNGKey(0)
    kx, k1, kb1, k2, kb2, kl, kbl = jax.random.split(key, 7)

    x = jax.random.normal(kx, (B, T, C), dtype=jnp.float32)
    lengths = jnp.array([16, 12, 9, 16, 5, 14, 16, 11], dtype=jnp.int32)

    # Conv1d weights in im2col tap-major layout (K*C_in, C_out), bf16 for the MXU.
    w1 = (jax.random.normal(k1, (KSIZE * C, F), jnp.float32) * 0.1).astype(jnp.bfloat16)
    b1 = jax.random.normal(kb1, (1, F), jnp.float32) * 0.1
    g1, be1 = jnp.ones((1, F), jnp.float32), jnp.zeros((1, F), jnp.float32)
    w2 = (jax.random.normal(k2, (KSIZE * F, F), jnp.float32) * 0.1).astype(jnp.bfloat16)
    b2 = jax.random.normal(kb2, (1, F), jnp.float32) * 0.1
    g2, be2 = jnp.ones((1, F), jnp.float32), jnp.zeros((1, F), jnp.float32)
    wl = jax.random.normal(kl, (1, F), jnp.float32) * 0.05
    bl = jnp.full((1, 1), 0.6, jnp.float32)   # positive bias -> nontrivial repeats

    out, pos, dur = length_regulator(x, lengths, w1, b1, g1, be1, w2, b2, g2, be2,
                                     wl, bl, alpha=ALPHA, nb=NB)
    out = jax.block_until_ready(out)

    ref_out, ref_pos, ref_dur = reference_length_regulator(
        x, lengths, w1, b1, g1, be1, w2, b2, g2, be2, wl, bl,
        alpha=ALPHA, max_out=MAX_OUT_LEN)

    assert out.shape == (B, MAX_OUT_LEN, C)
    assert pos.shape == (B, MAX_OUT_LEN)
    assert dur.shape == (B, T)

    # Guard: the static MAX_OUT_LEN bound was not exceeded (no silent truncation).
    total_len = jnp.sum(jnp.round(dur * ALPHA).astype(jnp.int32), axis=-1)
    assert int(jnp.max(total_len)) <= MAX_OUT_LEN

    assert jnp.allclose(dur, ref_dur, atol=1e-4, rtol=1e-4)
    assert jnp.array_equal(pos, ref_pos)
    assert jnp.allclose(out, ref_out, atol=1e-4, rtol=1e-4)

    # PyTorch's pad_sequence pads to the dynamic batch max; recover it by trimming.
    _ = out[:, :int(jnp.max(total_len))]

    print("KERNEL_OK")
</pallas_src>

<mosaic_0001>
module attributes {stable_mosaic.version = 11 : i64} {
  func.func @length_regulator_kernel(%arg0: i32, %arg1: memref<8xi32, #tpu.memory_space<smem>>, %arg2: memref<1x64x32xf32, #tpu.memory_space<vmem>>, %arg3: memref<96x64xbf16, #tpu.memory_space<vmem>>, %arg4: memref<1x64xf32, #tpu.memory_space<vmem>>, %arg5: memref<1x64xf32, #tpu.memory_space<vmem>>, %arg6: memref<1x64xf32, #tpu.memory_space<vmem>>, %arg7: memref<192x64xbf16, #tpu.memory_space<vmem>>, %arg8: memref<1x64xf32, #tpu.memory_space<vmem>>, %arg9: memref<1x64xf32, #tpu.memory_space<vmem>>, %arg10: memref<1x64xf32, #tpu.memory_space<vmem>>, %arg11: memref<1x64xf32, #tpu.memory_space<vmem>>, %arg12: memref<1x1xf32, #tpu.memory_space<vmem>>, %arg13: memref<1x128x128xf32, #tpu.memory_space<vmem>>, %arg14: memref<1x4x128xi32, #tpu.memory_space<vmem>>, %arg15: memref<1x4x16xf32, #tpu.memory_space<vmem>>) attributes {dimension_semantics = [#tpu.dimension_semantics<parallel>], iteration_bounds = array<i64: 2>, scalar_prefetch = 1 : i64, scratch_operands = 0 : i64, tpu.core_type = #tpu.core_type<tc>, window_params = [{transform_indices = @transform_0, window_bounds = array<i64: 1, 64, 32>}, {pipeline_mode = #tpu.pipeline_mode<synchronous>, transform_indices = @transform_1, window_bounds = array<i64: 96, 64>}, {pipeline_mode = #tpu.pipeline_mode<synchronous>, transform_indices = @transform_2, window_bounds = array<i64: 1, 64>}, {pipeline_mode = #tpu.pipeline_mode<synchronous>, transform_indices = @transform_3, window_bounds = array<i64: 1, 64>}, {pipeline_mode = #tpu.pipeline_mode<synchronous>, transform_indices = @transform_4, window_bounds = array<i64: 1, 64>}, {pipeline_mode = #tpu.pipeline_mode<synchronous>, transform_indices = @transform_5, window_bounds = array<i64: 192, 64>}, {pipeline_mode = #tpu.pipeline_mode<synchronous>, transform_indices = @transform_6, window_bounds = array<i64: 1, 64>}, {pipeline_mode = #tpu.pipeline_mode<synchronous>, transform_indices = @transform_7, window_bounds = array<i64: 1, 64>}, {pipeline_mode = #tpu.pipeline_mode<synchronous>, transform_indices = @transform_8, window_bounds = array<i64: 1, 64>}, {pipeline_mode = #tpu.pipeline_mode<synchronous>, transform_indices = @transform_9, window_bounds = array<i64: 1, 64>}, {pipeline_mode = #tpu.pipeline_mode<synchronous>, transform_indices = @transform_10, window_bounds = array<i64: 1, 1>}, {transform_indices = @transform_11, window_bounds = array<i64: 1, 128, 128>}, {transform_indices = @transform_12, window_bounds = array<i64: 1, 4, 128>}, {transform_indices = @transform_13, window_bounds = array<i64: 1, 4, 16>}]} {
    %c4_i32 = arith.constant 4 : i32
    %0 = arith.muli %arg0, %c4_i32 : i32
    %c0 = arith.constant 0 : index
    %c0_0 = arith.constant 0 : index
    %c0_1 = arith.constant 0 : index
    %1 = vector.load %arg2[%c0, %c0_0, %c0_1] : memref<1x64x32xf32, #tpu.memory_space<vmem>>, vector<1x64x32xf32>
    %2 = vector.shape_cast %1 : vector<1x64x32xf32> to vector<64x32xf32>
    %3 = tpu.iota {dimensions = array<i32: 0>} : vector<16x1xi32>
    %c0_i32 = arith.constant 0 : i32
    %4 = arith.addi %0, %c0_i32 : i32
    %5 = arith.index_cast %4 : i32 to index
    %6 = memref.load %arg1[%5] : memref<8xi32, #tpu.memory_space<smem>>
    %7 = vector.broadcast %6 : i32 to vector<16x1xi32>
    %8 = arith.cmpi slt, %3, %7 : vector<16x1xi32>
    %9 = arith.extui %8 : vector<16x1xi1> to vector<16x1xi32>
    %10 = arith.sitofp %9 : vector<16x1xi32> to vector<16x1xf32>
    %c1_i32 = arith.constant 1 : i32
    %11 = arith.addi %0, %c1_i32 : i32
    %12 = arith.index_cast %11 : i32 to index
    %13 = memref.load %arg1[%12] : memref<8xi32, #tpu.memory_space<smem>>
    %14 = vector.broadcast %13 : i32 to vector<16x1xi32>
    %15 = arith.cmpi slt, %3, %14 : vector<16x1xi32>
    %16 = arith.extui %15 : vector<16x1xi1> to vector<16x1xi32>
    %17 = arith.sitofp %16 : vector<16x1xi32> to vector<16x1xf32>
    %c2_i32 = arith.constant 2 : i32
    %18 = arith.addi %0, %c2_i32 : i32
    %19 = arith.index_cast %18 : i32 to index
    %20 = memref.load %arg1[%19] : memref<8xi32, #tpu.memory_space<smem>>
    %21 = vector.broadcast %20 : i32 to vector<16x1xi32>
    %22 = arith.cmpi slt, %3, %21 : vector<16x1xi32>
    %23 = arith.extui %22 : vector<16x1xi1> to vector<16x1xi32>
    %24 = arith.sitofp %23 : vector<16x1xi32> to vector<16x1xf32>
    %c3_i32 = arith.constant 3 : i32
    %25 = arith.addi %0, %c3_i32 : i32
    %26 = arith.index_cast %25 : i32 to index
    %27 = memref.load %arg1[%26] : memref<8xi32, #tpu.memory_space<smem>>
    %28 = vector.broadcast %27 : i32 to vector<16x1xi32>
    %29 = arith.cmpi slt, %3, %28 : vector<16x1xi32>
    %30 = arith.extui %29 : vector<16x1xi1> to vector<16x1xi32>
    %31 = arith.sitofp %30 : vector<16x1xi32> to vector<16x1xf32>
    %32 = tpu.concatenate %10, %17, %24, %31 in 0 : vector<16x1xf32>, vector<16x1xf32>, vector<16x1xf32>, vector<16x1xf32> -> vector<64x1xf32>
    %33 = vector.broadcast %32 : vector<64x1xf32> to vector<64x32xf32>
    %34 = arith.mulf %2, %33 : vector<64x32xf32>
    %c0_i32_2 = arith.constant 0 : i32
    %35 = vector.broadcast %c0_i32_2 : i32 to vector<16x1xi32>
    %36 = arith.cmpi ne, %3, %35 : vector<16x1xi32>
    %37 = arith.extui %36 : vector<16x1xi1> to vector<16x1xi32>
    %38 = arith.sitofp %37 : vector<16x1xi32> to vector<16x1xf32>
    %39 = tpu.concatenate %38, %38, %38, %38 in 0 : vector<16x1xf32>, vector<16x1xf32>, vector<16x1xf32>, vector<16x1xf32> -> vector<64x1xf32>
    %c15_i32 = arith.constant 15 : i32
    %40 = vector.broadcast %c15_i32 : i32 to vector<16x1xi32>
    %41 = arith.cmpi ne, %3, %40 : vector<16x1xi32>
    %42 = arith.extui %41 : vector<16x1xi1> to vector<16x1xi32>
    %43 = arith.sitofp %42 : vector<16x1xi32> to vector<16x1xf32>
    %44 = tpu.concatenate %43, %43, %43, %43 in 0 : vector<16x1xf32>, vector<16x1xf32>, vector<16x1xf32>, vector<16x1xf32> -> vector<64x1xf32>
    %c1_i32_3 = arith.constant 1 : i32
    %45 = tpu.dynamic_rotate %34 by %c1_i32_3 dim 0 : vector<64x32xf32>, i32 -> vector<64x32xf32>
    %46 = vector.broadcast %39 : vector<64x1xf32> to vector<64x32xf32>
    %47 = arith.mulf %45, %46 : vector<64x32xf32>
    %c63_i32 = arith.constant 63 : i32
    %48 = tpu.dynamic_rotate %34 by %c63_i32 dim 0 : vector<64x32xf32>, i32 -> vector<64x32xf32>
    %49 = vector.broadcast %44 : vector<64x1xf32> to vector<64x32xf32>
    %50 = arith.mulf %48, %49 : vector<64x32xf32>
    %c0_4 = arith.constant 0 : index
    %c0_5 = arith.constant 0 : index
    %51 = vector.load %arg4[%c0_4, %c0_5] : memref<1x64xf32, #tpu.memory_space<vmem>>, vector<1x64xf32>
    %52 = arith.truncf %47 : vector<64x32xf32> to vector<64x32xbf16>
    %c0_6 = arith.constant 0 : index
    %c0_7 = arith.constant 0 : index
    %53 = vector.load %arg3[%c0_6, %c0_7] : memref<96x64xbf16, #tpu.memory_space<vmem>>, vector<32x64xbf16>
    %cst = arith.constant dense<0.000000e+00> : vector<64x64xf32>
    %54 = tpu.matmul %52, %53, %cst {dimension_numbers = #tpu.dot_dimension_numbers<[1], [0], [0], [1], [0, 0, 1, 1], [], []>} : vector<64x32xbf16>, vector<32x64xbf16>, vector<64x64xf32> -> vector<64x64xf32>
    %55 = vector.broadcast %51 : vector<1x64xf32> to vector<64x64xf32>
    %56 = arith.addf %55, %54 : vector<64x64xf32>
    %57 = arith.truncf %34 : vector<64x32xf32> to vector<64x32xbf16>
    %c32 = arith.constant 32 : index
    %c0_8 = arith.constant 0 : index
    %58 = vector.load %arg3[%c32, %c0_8] : memref<96x64xbf16, #tpu.memory_space<vmem>>, vector<32x64xbf16>
    %cst_9 = arith.constant dense<0.000000e+00> : vector<64x64xf32>
    %59 = tpu.matmul %57, %58, %cst_9 {dimension_numbers = #tpu.dot_dimension_numbers<[1], [0], [0], [1], [0, 0, 1, 1], [], []>} : vector<64x32xbf16>, vector<32x64xbf16>, vector<64x64xf32> -> vector<64x64xf32>
    %60 = arith.addf %56, %59 : vector<64x64xf32>
    %61 = arith.truncf %50 : vector<64x32xf32> to vector<64x32xbf16>
    %c64 = arith.constant 64 : index
    %c0_10 = arith.constant 0 : index
    %62 = vector.load %arg3[%c64, %c0_10] : memref<96x64xbf16, #tpu.memory_space<vmem>>, vector<32x64xbf16>
    %cst_11 = arith.constant dense<0.000000e+00> : vector<64x64xf32>
    %63 = tpu.matmul %61, %62, %cst_11 {dimension_numbers = #tpu.dot_dimension_numbers<[1], [0], [0], [1], [0, 0, 1, 1], [], []>} : vector<64x32xbf16>, vector<32x64xbf16>, vector<64x64xf32> -> vector<64x64xf32>
    %64 = arith.addf %60, %63 : vector<64x64xf32>
    %cst_12 = arith.constant 0.000000e+00 : f32
    %65 = vector.broadcast %cst_12 : f32 to vector<64x64xf32>
    %66 = arith.maximumf %64, %65 : vector<64x64xf32>
    %c0_13 = arith.constant 0 : index
    %c0_14 = arith.constant 0 : index
    %67 = vector.load %arg5[%c0_13, %c0_14] : memref<1x64xf32, #tpu.memory_space<vmem>>, vector<1x64xf32>
    %c0_15 = arith.constant 0 : index
    %c0_16 = arith.constant 0 : index
    %68 = vector.load %arg6[%c0_15, %c0_16] : memref<1x64xf32, #tpu.memory_space<vmem>>, vector<1x64xf32>
    %cst_17 = arith.constant dense<0.000000e+00> : vector<64xf32>
    %69 = vector.multi_reduction <add>, %66, %cst_17 [1] : vector<64x64xf32> to vector<64xf32>
    %70 = vector.shape_cast %69 : vector<64xf32> to vector<64x1xf32>
    %cst_18 = arith.constant 6.400000e+01 : f32
    %71 = vector.broadcast %cst_18 : f32 to vector<64x1xf32>
    %72 = arith.divf %70, %71 : vector<64x1xf32>
    %73 = vector.broadcast %72 : vector<64x1xf32> to vector<64x64xf32>
    %74 = arith.subf %66, %73 : vector<64x64xf32>
    %75 = arith.mulf %74, %74 : vector<64x64xf32>
    %cst_19 = arith.constant dense<0.000000e+00> : vector<64xf32>
    %76 = vector.multi_reduction <add>, %75, %cst_19 [1] : vector<64x64xf32> to vector<64xf32>
    %77 = vector.shape_cast %76 : vector<64xf32> to vector<64x1xf32>
    %cst_20 = arith.constant 6.400000e+01 : f32
    %78 = vector.broadcast %cst_20 : f32 to vector<64x1xf32>
    %79 = arith.divf %77, %78 : vector<64x1xf32>
    %cst_21 = arith.constant 9.99999974E-6 : f32
    %80 = vector.broadcast %cst_21 : f32 to vector<64x1xf32>
    %81 = arith.addf %79, %80 : vector<64x1xf32>
    %82 = math.rsqrt %81 : vector<64x1xf32>
    %83 = vector.broadcast %82 : vector<64x1xf32> to vector<64x64xf32>
    %84 = arith.mulf %74, %83 : vector<64x64xf32>
    %85 = vector.broadcast %67 : vector<1x64xf32> to vector<64x64xf32>
    %86 = arith.mulf %84, %85 : vector<64x64xf32>
    %87 = vector.broadcast %68 : vector<1x64xf32> to vector<64x64xf32>
    %88 = arith.addf %86, %87 : vector<64x64xf32>
    %c1_i32_22 = arith.constant 1 : i32
    %89 = tpu.dynamic_rotate %88 by %c1_i32_22 dim 0 : vector<64x64xf32>, i32 -> vector<64x64xf32>
    %90 = vector.broadcast %39 : vector<64x1xf32> to vector<64x64xf32>
    %91 = arith.mulf %89, %90 : vector<64x64xf32>
    %c63_i32_23 = arith.constant 63 : i32
    %92 = tpu.dynamic_rotate %88 by %c63_i32_23 dim 0 : vector<64x64xf32>, i32 -> vector<64x64xf32>
    %93 = vector.broadcast %44 : vector<64x1xf32> to vector<64x64xf32>
    %94 = arith.mulf %92, %93 : vector<64x64xf32>
    %c0_24 = arith.constant 0 : index
    %c0_25 = arith.constant 0 : index
    %95 = vector.load %arg8[%c0_24, %c0_25] : memref<1x64xf32, #tpu.memory_space<vmem>>, vector<1x64xf32>
    %96 = arith.truncf %91 : vector<64x64xf32> to vector<64x64xbf16>
    %c0_26 = arith.constant 0 : index
    %c0_27 = arith.constant 0 : index
    %97 = vector.load %arg7[%c0_26, %c0_27] : memref<192x64xbf16, #tpu.memory_space<vmem>>, vector<64x64xbf16>
    %cst_28 = arith.constant dense<0.000000e+00> : vector<64x64xf32>
    %98 = tpu.matmul %96, %97, %cst_28 {dimension_numbers = #tpu.dot_dimension_numbers<[1], [0], [0], [1], [0, 0, 1, 1], [], []>} : vector<64x64xbf16>, vector<64x64xbf16>, vector<64x64xf32> -> vector<64x64xf32>
    %99 = vector.broadcast %95 : vector<1x64xf32> to vector<64x64xf32>
    %100 = arith.addf %99, %98 : vector<64x64xf32>
    %101 = arith.truncf %88 : vector<64x64xf32> to vector<64x64xbf16>
    %c64_29 = arith.constant 64 : index
    %c0_30 = arith.constant 0 : index
    %102 = vector.load %arg7[%c64_29, %c0_30] : memref<192x64xbf16, #tpu.memory_space<vmem>>, vector<64x64xbf16>
    %cst_31 = arith.constant dense<0.000000e+00> : vector<64x64xf32>
    %103 = tpu.matmul %101, %102, %cst_31 {dimension_numbers = #tpu.dot_dimension_numbers<[1], [0], [0], [1], [0, 0, 1, 1], [], []>} : vector<64x64xbf16>, vector<64x64xbf16>, vector<64x64xf32> -> vector<64x64xf32>
    %104 = arith.addf %100, %103 : vector<64x64xf32>
    %105 = arith.truncf %94 : vector<64x64xf32> to vector<64x64xbf16>
    %c128 = arith.constant 128 : index
    %c0_32 = arith.constant 0 : index
    %106 = vector.load %arg7[%c128, %c0_32] : memref<192x64xbf16, #tpu.memory_space<vmem>>, vector<64x64xbf16>
    %cst_33 = arith.constant dense<0.000000e+00> : vector<64x64xf32>
    %107 = tpu.matmul %105, %106, %cst_33 {dimension_numbers = #tpu.dot_dimension_numbers<[1], [0], [0], [1], [0, 0, 1, 1], [], []>} : vector<64x64xbf16>, vector<64x64xbf16>, vector<64x64xf32> -> vector<64x64xf32>
    %108 = arith.addf %104, %107 : vector<64x64xf32>
    %cst_34 = arith.constant 0.000000e+00 : f32
    %109 = vector.broadcast %cst_34 : f32 to vector<64x64xf32>
    %110 = arith.maximumf %108, %109 : vector<64x64xf32>
    %c0_35 = arith.constant 0 : index
    %c0_36 = arith.constant 0 : index
    %111 = vector.load %arg9[%c0_35, %c0_36] : memref<1x64xf32, #tpu.memory_space<vmem>>, vector<1x64xf32>
    %c0_37 = arith.constant 0 : index
    %c0_38 = arith.constant 0 : index
    %112 = vector.load %arg10[%c0_37, %c0_38] : memref<1x64xf32, #tpu.memory_space<vmem>>, vector<1x64xf32>
    %cst_39 = arith.constant dense<0.000000e+00> : vector<64xf32>
    %113 = vector.multi_reduction <add>, %110, %cst_39 [1] : vector<64x64xf32> to vector<64xf32>
    %114 = vector.shape_cast %113 : vector<64xf32> to vector<64x1xf32>
    %cst_40 = arith.constant 6.400000e+01 : f32
    %115 = vector.broadcast %cst_40 : f32 to vector<64x1xf32>
    %116 = arith.divf %114, %115 : vector<64x1xf32>
    %117 = vector.broadcast %116 : vector<64x1xf32> to vector<64x64xf32>
    %118 = arith.subf %110, %117 : vector<64x64xf32>
    %119 = arith.mulf %118, %118 : vector<64x64xf32>
    %cst_41 = arith.constant dense<0.000000e+00> : vector<64xf32>
    %120 = vector.multi_reduction <add>, %119, %cst_41 [1] : vector<64x64xf32> to vector<64xf32>
    %121 = vector.shape_cast %120 : vector<64xf32> to vector<64x1xf32>
    %cst_42 = arith.constant 6.400000e+01 : f32
    %122 = vector.broadcast %cst_42 : f32 to vector<64x1xf32>
    %123 = arith.divf %121, %122 : vector<64x1xf32>
    %cst_43 = arith.constant 9.99999974E-6 : f32
    %124 = vector.broadcast %cst_43 : f32 to vector<64x1xf32>
    %125 = arith.addf %123, %124 : vector<64x1xf32>
    %126 = math.rsqrt %125 : vector<64x1xf32>
    %127 = vector.broadcast %126 : vector<64x1xf32> to vector<64x64xf32>
    %128 = arith.mulf %118, %127 : vector<64x64xf32>
    %129 = vector.broadcast %111 : vector<1x64xf32> to vector<64x64xf32>
    %130 = arith.mulf %128, %129 : vector<64x64xf32>
    %131 = vector.broadcast %112 : vector<1x64xf32> to vector<64x64xf32>
    %132 = arith.addf %130, %131 : vector<64x64xf32>
    %c0_44 = arith.constant 0 : index
    %c0_45 = arith.constant 0 : index
    %133 = vector.load %arg11[%c0_44, %c0_45] : memref<1x64xf32, #tpu.memory_space<vmem>>, vector<1x64xf32>
    %134 = vector.broadcast %133 : vector<1x64xf32> to vector<64x64xf32>
    %135 = arith.mulf %132, %134 : vector<64x64xf32>
    %cst_46 = arith.constant dense<0.000000e+00> : vector<64xf32>
    %136 = vector.multi_reduction <add>, %135, %cst_46 [1] : vector<64x64xf32> to vector<64xf32>
    %137 = vector.shape_cast %136 : vector<64xf32> to vector<64x1xf32>
    %c0_47 = arith.constant 0 : index
    %c0_48 = arith.constant 0 : index
    %138 = vector.load %arg12[%c0_47, %c0_48] : memref<1x1xf32, #tpu.memory_space<vmem>>, vector<1x1xf32>
    %139 = vector.broadcast %138 : vector<1x1xf32> to vector<64x1xf32>
    %140 = arith.addf %137, %139 : vector<64x1xf32>
    %141 = arith.mulf %140, %32 : vector<64x1xf32>
    %142 = math.exp %141 : vector<64x1xf32>
    %cst_49 = arith.constant 1.000000e+00 : f32
    %143 = vector.broadcast %cst_49 : f32 to vector<64x1xf32>
    %144 = arith.subf %142, %143 : vector<64x1xf32>
    %cst_50 = arith.constant 0.000000e+00 : f32
    %145 = vector.broadcast %cst_50 : f32 to vector<64x1xf32>
    %146 = arith.maximumf %144, %145 : vector<64x1xf32>
    %147 = tpu.iota {dimensions = array<i32: 0>} : vector<16x16xi32>
    %148 = tpu.iota {dimensions = array<i32: 1>} : vector<16x16xi32>
    %149 = arith.cmpi eq, %147, %148 : vector<16x16xi32>
    %150 = arith.extui %149 : vector<16x16xi1> to vector<16x16xi32>
    %151 = arith.sitofp %150 : vector<16x16xi32> to vector<16x16xf32>
    %152 = vector.extract_strided_slice %146 {offsets = [0, 0], sizes = [16, 1], strides = [1, 1]} : vector<64x1xf32> to vector<16x1xf32>
    %153 = vector.broadcast %152 : vector<16x1xf32> to vector<16x16xf32>
    %154 = arith.mulf %153, %151 : vector<16x16xf32>
    %cst_51 = arith.constant dense<0.000000e+00> : vector<16xf32>
    %155 = vector.multi_reduction <add>, %154, %cst_51 [0] : vector<16x16xf32> to vector<16xf32>
    %156 = vector.shape_cast %155 : vector<16xf32> to vector<1x16xf32>
    %157 = vector.extract_strided_slice %146 {offsets = [16, 0], sizes = [16, 1], strides = [1, 1]} : vector<64x1xf32> to vector<16x1xf32>
    %158 = vector.broadcast %157 : vector<16x1xf32> to vector<16x16xf32>
    %159 = arith.mulf %158, %151 : vector<16x16xf32>
    %cst_52 = arith.constant dense<0.000000e+00> : vector<16xf32>
    %160 = vector.multi_reduction <add>, %159, %cst_52 [0] : vector<16x16xf32> to vector<16xf32>
    %161 = vector.shape_cast %160 : vector<16xf32> to vector<1x16xf32>
    %162 = vector.extract_strided_slice %146 {offsets = [32, 0], sizes = [16, 1], strides = [1, 1]} : vector<64x1xf32> to vector<16x1xf32>
    %163 = vector.broadcast %162 : vector<16x1xf32> to vector<16x16xf32>
    %164 = arith.mulf %163, %151 : vector<16x16xf32>
    %cst_53 = arith.constant dense<0.000000e+00> : vector<16xf32>
    %165 = vector.multi_reduction <add>, %164, %cst_53 [0] : vector<16x16xf32> to vector<16xf32>
    %166 = vector.shape_cast %165 : vector<16xf32> to vector<1x16xf32>
    %167 = vector.extract_strided_slice %146 {offsets = [48, 0], sizes = [16, 1], strides = [1, 1]} : vector<64x1xf32> to vector<16x1xf32>
    %168 = vector.broadcast %167 : vector<16x1xf32> to vector<16x16xf32>
    %169 = arith.mulf %168, %151 : vector<16x16xf32>
    %cst_54 = arith.constant dense<0.000000e+00> : vector<16xf32>
    %170 = vector.multi_reduction <add>, %169, %cst_54 [0] : vector<16x16xf32> to vector<16xf32>
    %171 = vector.shape_cast %170 : vector<16xf32> to vector<1x16xf32>
    %172 = tpu.concatenate %156, %161, %166, %171 in 0 : vector<1x16xf32>, vector<1x16xf32>, vector<1x16xf32>, vector<1x16xf32> -> vector<4x16xf32>
    %c0_55 = arith.constant 0 : index
    %c0_56 = arith.constant 0 : index
    %c0_57 = arith.constant 0 : index
    %173 = vector.load %arg15[%c0_55, %c0_56, %c0_57] : memref<1x4x16xf32, #tpu.memory_space<vmem>>, vector<1x4x16xf32>
    %174 = vector.shape_cast %173 : vector<1x4x16xf32> to vector<4x16xf32>
    %175 = vector.shape_cast %172 : vector<4x16xf32> to vector<1x4x16xf32>
    tpu.vector_store %arg15[%c0_55, %c0_56, %c0_57], %175 {strides = array<i32>} : memref<1x4x16xf32, #tpu.memory_space<vmem>>, vector<1x4x16xf32>,
    %cst_58 = arith.constant 1.000000e+00 : f32
    %176 = vector.broadcast %cst_58 : f32 to vector<4x16xf32>
    %177 = arith.mulf %172, %176 : vector<4x16xf32>
    %178 = math.roundeven %177 : vector<4x16xf32>
    %179 = arith.cmpi sle, %147, %148 : vector<16x16xi32>
    %180 = arith.extui %179 : vector<16x16xi1> to vector<16x16xi32>
    %181 = arith.sitofp %180 : vector<16x16xi32> to vector<16x16xf32>
    %182 = arith.truncf %181 : vector<16x16xf32> to vector<16x16xbf16>
    %183 = arith.truncf %178 : vector<4x16xf32> to vector<4x16xbf16>
    %cst_59 = arith.constant dense<0.000000e+00> : vector<4x16xf32>
    %184 = tpu.matmul %183, %182, %cst_59 {dimension_numbers = #tpu.dot_dimension_numbers<[1], [0], [0], [1], [0, 0, 1, 1], [], []>} : vector<4x16xbf16>, vector<16x16xbf16>, vector<4x16xf32> -> vector<4x16xf32>
    %185 = arith.subf %184, %178 : vector<4x16xf32>
    %186 = tpu.iota {dimensions = array<i32: 0>} : vector<128x1xi32>
    %187 = arith.sitofp %186 : vector<128x1xi32> to vector<128x1xf32>
    %188 = vector.extract_strided_slice %185 {offsets = [0, 0], sizes = [1, 16], strides = [1, 1]} : vector<4x16xf32> to vector<1x16xf32>
    %189 = vector.broadcast %187 : vector<128x1xf32> to vector<128x16xf32>
    %190 = vector.broadcast %188 : vector<1x16xf32> to vector<128x16xf32>
    %191 = arith.cmpf oge, %189, %190 : vector<128x16xf32>
    %192 = vector.extract_strided_slice %184 {offsets = [0, 0], sizes = [1, 16], strides = [1, 1]} : vector<4x16xf32> to vector<1x16xf32>
    %193 = vector.broadcast %187 : vector<128x1xf32> to vector<128x16xf32>
    %194 = vector.broadcast %192 : vector<1x16xf32> to vector<128x16xf32>
    %195 = arith.cmpf olt, %193, %194 : vector<128x16xf32>
    %196 = arith.andi %191, %195 : vector<128x16xi1>
    %197 = arith.extui %196 : vector<128x16xi1> to vector<128x16xi32>
    %198 = arith.sitofp %197 : vector<128x16xi32> to vector<128x16xf32>
    %199 = vector.extract_strided_slice %34 {offsets = [0, 0], sizes = [16, 32], strides = [1, 1]} : vector<64x32xf32> to vector<16x32xf32>
    %cst_60 = arith.constant dense<0.000000e+00> : vector<128x32xf32>
    %200 = tpu.matmul %198, %199, %cst_60 {dimension_numbers = #tpu.dot_dimension_numbers<[1], [0], [0], [1], [0, 0, 1, 1], [], []>} : vector<128x16xf32>, vector<16x32xf32>, vector<128x32xf32> -> vector<128x32xf32>
    %201 = vector.extract_strided_slice %185 {offsets = [1, 0], sizes = [1, 16], strides = [1, 1]} : vector<4x16xf32> to vector<1x16xf32>
    %202 = vector.broadcast %187 : vector<128x1xf32> to vector<128x16xf32>
    %203 = vector.broadcast %201 : vector<1x16xf32> to vector<128x16xf32>
    %204 = arith.cmpf oge, %202, %203 : vector<128x16xf32>
    %205 = vector.extract_strided_slice %184 {offsets = [1, 0], sizes = [1, 16], strides = [1, 1]} : vector<4x16xf32> to vector<1x16xf32>
    %206 = vector.broadcast %187 : vector<128x1xf32> to vector<128x16xf32>
    %207 = vector.broadcast %205 : vector<1x16xf32> to vector<128x16xf32>
    %208 = arith.cmpf olt, %206, %207 : vector<128x16xf32>
    %209 = arith.andi %204, %208 : vector<128x16xi1>
    %210 = arith.extui %209 : vector<128x16xi1> to vector<128x16xi32>
    %211 = arith.sitofp %210 : vector<128x16xi32> to vector<128x16xf32>
    %212 = vector.extract_strided_slice %34 {offsets = [16, 0], sizes = [16, 32], strides = [1, 1]} : vector<64x32xf32> to vector<16x32xf32>
    %cst_61 = arith.constant dense<0.000000e+00> : vector<128x32xf32>
    %213 = tpu.matmul %211, %212, %cst_61 {dimension_numbers = #tpu.dot_dimension_numbers<[1], [0], [0], [1], [0, 0, 1, 1], [], []>} : vector<128x16xf32>, vector<16x32xf32>, vector<128x32xf32> -> vector<128x32xf32>
    %214 = vector.extract_strided_slice %185 {offsets = [2, 0], sizes = [1, 16], strides = [1, 1]} : vector<4x16xf32> to vector<1x16xf32>
    %215 = vector.broadcast %187 : vector<128x1xf32> to vector<128x16xf32>
    %216 = vector.broadcast %214 : vector<1x16xf32> to vector<128x16xf32>
    %217 = arith.cmpf oge, %215, %216 : vector<128x16xf32>
    %218 = vector.extract_strided_slice %184 {offsets = [2, 0], sizes = [1, 16], strides = [1, 1]} : vector<4x16xf32> to vector<1x16xf32>
    %219 = vector.broadcast %187 : vector<128x1xf32> to vector<128x16xf32>
    %220 = vector.broadcast %218 : vector<1x16xf32> to vector<128x16xf32>
    %221 = arith.cmpf olt, %219, %220 : vector<128x16xf32>
    %222 = arith.andi %217, %221 : vector<128x16xi1>
    %223 = arith.extui %222 : vector<128x16xi1> to vector<128x16xi32>
    %224 = arith.sitofp %223 : vector<128x16xi32> to vector<128x16xf32>
    %225 = vector.extract_strided_slice %34 {offsets = [32, 0], sizes = [16, 32], strides = [1, 1]} : vector<64x32xf32> to vector<16x32xf32>
    %cst_62 = arith.constant dense<0.000000e+00> : vector<128x32xf32>
    %226 = tpu.matmul %224, %225, %cst_62 {dimension_numbers = #tpu.dot_dimension_numbers<[1], [0], [0], [1], [0, 0, 1, 1], [], []>} : vector<128x16xf32>, vector<16x32xf32>, vector<128x32xf32> -> vector<128x32xf32>
    %227 = vector.extract_strided_slice %185 {offsets = [3, 0], sizes = [1, 16], strides = [1, 1]} : vector<4x16xf32> to vector<1x16xf32>
    %228 = vector.broadcast %187 : vector<128x1xf32> to vector<128x16xf32>
    %229 = vector.broadcast %227 : vector<1x16xf32> to vector<128x16xf32>
    %230 = arith.cmpf oge, %228, %229 : vector<128x16xf32>
    %231 = vector.extract_strided_slice %184 {offsets = [3, 0], sizes = [1, 16], strides = [1, 1]} : vector<4x16xf32> to vector<1x16xf32>
    %232 = vector.broadcast %187 : vector<128x1xf32> to vector<128x16xf32>
    %233 = vector.broadcast %231 : vector<1x16xf32> to vector<128x16xf32>
    %234 = arith.cmpf olt, %232, %233 : vector<128x16xf32>
    %235 = arith.andi %230, %234 : vector<128x16xi1>
    %236 = arith.extui %235 : vector<128x16xi1> to vector<128x16xi32>
    %237 = arith.sitofp %236 : vector<128x16xi32> to vector<128x16xf32>
    %238 = vector.extract_strided_slice %34 {offsets = [48, 0], sizes = [16, 32], strides = [1, 1]} : vector<64x32xf32> to vector<16x32xf32>
    %cst_63 = arith.constant dense<0.000000e+00> : vector<128x32xf32>
    %239 = tpu.matmul %237, %238, %cst_63 {dimension_numbers = #tpu.dot_dimension_numbers<[1], [0], [0], [1], [0, 0, 1, 1], [], []>} : vector<128x16xf32>, vector<16x32xf32>, vector<128x32xf32> -> vector<128x32xf32>
    %240 = tpu.concatenate %200, %213, %226, %239 in 1 : vector<128x32xf32>, vector<128x32xf32>, vector<128x32xf32>, vector<128x32xf32> -> vector<128x128xf32>
    %c0_64 = arith.constant 0 : index
    %c0_65 = arith.constant 0 : index
    %c0_66 = arith.constant 0 : index
    %241 = vector.load %arg13[%c0_64, %c0_65, %c0_66] : memref<1x128x128xf32, #tpu.memory_space<vmem>>, vector<1x128x128xf32>
    %242 = vector.shape_cast %241 : vector<1x128x128xf32> to vector<128x128xf32>
    %243 = vector.shape_cast %240 : vector<128x128xf32> to vector<1x128x128xf32>
    tpu.vector_store %arg13[%c0_64, %c0_65, %c0_66], %243 {strides = array<i32>} : memref<1x128x128xf32, #tpu.memory_space<vmem>>, vector<1x128x128xf32>,
    %244 = vector.extract_strided_slice %184 {offsets = [0, 15], sizes = [4, 1], strides = [1, 1]} : vector<4x16xf32> to vector<4x1xf32>
    %245 = tpu.iota {dimensions = array<i32: 1>} : vector<4x128xi32>
    %246 = arith.sitofp %245 : vector<4x128xi32> to vector<4x128xf32>
    %247 = vector.broadcast %244 : vector<4x1xf32> to vector<4x128xf32>
    %248 = arith.cmpf olt, %246, %247 : vector<4x128xf32>
    %c1_i32_67 = arith.constant 1 : i32
    %249 = vector.broadcast %c1_i32_67 : i32 to vector<4x128xi32>
    %250 = arith.addi %245, %249 : vector<4x128xi32>
    %c0_i32_68 = arith.constant 0 : i32
    %251 = vector.broadcast %c0_i32_68 : i32 to vector<4x128xi32>
    %252 = arith.select %248, %250, %251 : vector<4x128xi1>, vector<4x128xi32>
    %c0_69 = arith.constant 0 : index
    %c0_70 = arith.constant 0 : index
    %c0_71 = arith.constant 0 : index
    %253 = vector.load %arg14[%c0_69, %c0_70, %c0_71] : memref<1x4x128xi32, #tpu.memory_space<vmem>>, vector<1x4x128xi32>
    %254 = vector.shape_cast %253 : vector<1x4x128xi32> to vector<4x128xi32>
    %255 = vector.shape_cast %252 : vector<4x128xi32> to vector<1x4x128xi32>
    tpu.vector_store %arg14[%c0_69, %c0_70, %c0_71], %255 {strides = array<i32>} : memref<1x4x128xi32, #tpu.memory_space<vmem>>, vector<1x4x128xi32>,
    return
  }
  func.func @transform_0(%arg0: i32, %arg1: memref<8xi32, #tpu.memory_space<smem>>) -> (i32, i32, i32) {
    %c0_i32 = arith.constant 0 : i32
    %c0_i32_0 = arith.constant 0 : i32
    %c0_i32_1 = arith.constant 0 : i32
    return %arg0, %c0_i32, %c0_i32_0 : i32, i32, i32
  }
  func.func @transform_1(%arg0: i32, %arg1: memref<8xi32, #tpu.memory_space<smem>>) -> (i32, i32) {
    %c0_i32 = arith.constant 0 : i32
    %c0_i32_0 = arith.constant 0 : i32
    %c0_i32_1 = arith.constant 0 : i32
    return %c0_i32, %c0_i32_0 : i32, i32
  }
  func.func @transform_2(%arg0: i32, %arg1: memref<8xi32, #tpu.memory_space<smem>>) -> (i32, i32) {
    %c0_i32 = arith.constant 0 : i32
    %c0_i32_0 = arith.constant 0 : i32
    %c0_i32_1 = arith.constant 0 : i32
    return %c0_i32, %c0_i32_0 : i32, i32
  }
  func.func @transform_3(%arg0: i32, %arg1: memref<8xi32, #tpu.memory_space<smem>>) -> (i32, i32) {
    %c0_i32 = arith.constant 0 : i32
    %c0_i32_0 = arith.constant 0 : i32
    %c0_i32_1 = arith.constant 0 : i32
    return %c0_i32, %c0_i32_0 : i32, i32
  }
  func.func @transform_4(%arg0: i32, %arg1: memref<8xi32, #tpu.memory_space<smem>>) -> (i32, i32) {
    %c0_i32 = arith.constant 0 : i32
    %c0_i32_0 = arith.constant 0 : i32
    %c0_i32_1 = arith.constant 0 : i32
    return %c0_i32, %c0_i32_0 : i32, i32
  }
  func.func @transform_5(%arg0: i32, %arg1: memref<8xi32, #tpu.memory_space<smem>>) -> (i32, i32) {
    %c0_i32 = arith.constant 0 : i32
    %c0_i32_0 = arith.constant 0 : i32
    %c0_i32_1 = arith.constant 0 : i32
    return %c0_i32, %c0_i32_0 : i32, i32
  }
  func.func @transform_6(%arg0: i32, %arg1: memref<8xi32, #tpu.memory_space<smem>>) -> (i32, i32) {
    %c0_i32 = arith.constant 0 : i32
    %c0_i32_0 = arith.constant 0 : i32
    %c0_i32_1 = arith.constant 0 : i32
    return %c0_i32, %c0_i32_0 : i32, i32
  }
  func.func @transform_7(%arg0: i32, %arg1: memref<8xi32, #tpu.memory_space<smem>>) -> (i32, i32) {
    %c0_i32 = arith.constant 0 : i32
    %c0_i32_0 = arith.constant 0 : i32
    %c0_i32_1 = arith.constant 0 : i32
    return %c0_i32, %c0_i32_0 : i32, i32
  }
  func.func @transform_8(%arg0: i32, %arg1: memref<8xi32, #tpu.memory_space<smem>>) -> (i32, i32) {
    %c0_i32 = arith.constant 0 : i32
    %c0_i32_0 = arith.constant 0 : i32
    %c0_i32_1 = arith.constant 0 : i32
    return %c0_i32, %c0_i32_0 : i32, i32
  }
  func.func @transform_9(%arg0: i32, %arg1: memref<8xi32, #tpu.memory_space<smem>>) -> (i32, i32) {
    %c0_i32 = arith.constant 0 : i32
    %c0_i32_0 = arith.constant 0 : i32
    %c0_i32_1 = arith.constant 0 : i32
    return %c0_i32, %c0_i32_0 : i32, i32
  }
  func.func @transform_10(%arg0: i32, %arg1: memref<8xi32, #tpu.memory_space<smem>>) -> (i32, i32) {
    %c0_i32 = arith.constant 0 : i32
    %c0_i32_0 = arith.constant 0 : i32
    %c0_i32_1 = arith.constant 0 : i32
    return %c0_i32, %c0_i32_0 : i32, i32
  }
  func.func @transform_11(%arg0: i32, %arg1: memref<8xi32, #tpu.memory_space<smem>>) -> (i32, i32, i32) {
    %c0_i32 = arith.constant 0 : i32
    %c0_i32_0 = arith.constant 0 : i32
    %c0_i32_1 = arith.constant 0 : i32
    return %arg0, %c0_i32, %c0_i32_0 : i32, i32, i32
  }
  func.func @transform_12(%arg0: i32, %arg1: memref<8xi32, #tpu.memory_space<smem>>) -> (i32, i32, i32) {
    %c0_i32 = arith.constant 0 : i32
    %c0_i32_0 = arith.constant 0 : i32
    %c0_i32_1 = arith.constant 0 : i32
    return %arg0, %c0_i32, %c0_i32_0 : i32, i32, i32
  }
  func.func @transform_13(%arg0: i32, %arg1: memref<8xi32, #tpu.memory_space<smem>>) -> (i32, i32, i32) {
    %c0_i32 = arith.constant 0 : i32
    %c0_i32_0 = arith.constant 0 : i32
    %c0_i32_1 = arith.constant 0 : i32
    return %arg0, %c0_i32, %c0_i32_0 : i32, i32, i32
  }
}

</mosaic_0001>

<llo_original>
// kernel: tpu_custom_call.1
$region0: #{tpu_custom_call.1}
  #allocation0 [shape = 'u32[]', space=smem, size = 0x4, offset = 0x4, fixed_abs, tag = 'smem constant byte address 0x4 - core index']
  #allocation1 [shape = 'u32[144,128]{1,0:T(1,128)}', space=vmem, size = 0x12000, scoped, tag = 'internal scratch']
  #allocation2 [shape = 's32[1]{0}', space=sflag, size = 0x4, scoped, tag = 'scoped memory for tpu_custom_call.1']
  #allocation3 [shape = 'u8[512]{0}', space=smem, size = 0x200, scoped, tag = 'prefetched SMEM operand 0']
  #allocation4 [shape = 'f32[1,1]{1,0:T(1,128)S(1)}', space=vmem, size = 0x200, scoped, tag = 'scoped memory for tpu_custom_call.1']
  %s0 = inlined_call_operand.vmem [shape: s32[8], index: 0, kind: input, shape index: {}]
  %s1 = inlined_call_operand.vmem [shape: f32[2,64,32], index: 1, kind: input, shape index: {}]
  %s2 = inlined_call_operand.vmem [shape: bf16[96,64], index: 2, kind: input, shape index: {}]
  %s3 = inlined_call_operand.vmem [shape: f32[1,64], index: 3, kind: input, shape index: {}]
  %s4 = inlined_call_operand.vmem [shape: f32[1,64], index: 4, kind: input, shape index: {}]
  %s5 = inlined_call_operand.vmem [shape: f32[1,64], index: 5, kind: input, shape index: {}]
  %s6 = inlined_call_operand.vmem [shape: bf16[192,64], index: 6, kind: input, shape index: {}]
  %s7 = inlined_call_operand.vmem [shape: f32[1,64], index: 7, kind: input, shape index: {}]
  %s8 = inlined_call_operand.vmem [shape: f32[1,64], index: 8, kind: input, shape index: {}]
  %s9 = inlined_call_operand.vmem [shape: f32[1,64], index: 9, kind: input, shape index: {}]
  %s10 = inlined_call_operand.vmem [shape: f32[1,64], index: 10, kind: input, shape index: {}]
  %s11 = inlined_call_operand.<no memory space> [shape: f32[1,1], index: 11, kind: input, shape index: {}]
  %s12 = inlined_call_operand.hbm [shape: f32[2,128,128], index: 12, kind: output, shape index: {0}]
  %s13 = inlined_call_operand.hbm [shape: s32[2,4,128], index: 13, kind: output, shape index: {1}]
  %s14 = inlined_call_operand.hbm [shape: f32[2,4,16], index: 14, kind: output, shape index: {2}]
  %15 = xla_tuple %s12, %s13, %s14
  %s16 = sld [smem:[#allocation0]]
  $region93: #{tpu_custom_call.1} parent=0
    _
  %s18 = ssub.s32 1, %s16
  %s19 = scalar_select 0, %s18, %s16
  %s20 = sshll.u32 %s0, 4
  %s21 = int_to_ptr.vmem [resolvable:$true] %s20
  %23 = dma.vmem_to_smem %s21, 16, [#allocation3], [#allocation2]
  %v24 = vstv %s11
  %25 = vst [vmem:[#allocation4] sm:$0x1] %v24
  %26 = dma.done [#allocation2], 16
  %27 = sfence
  $region1: #{tpu_custom_call.1} parent=0
    #allocation5 [shape = 'u8[131072]{0}', space=vmem, size = 0x20000, scoped, tag = 'output window, operand 0']
    #allocation6 [shape = 's32[2]{0}', space=sflag, size = 0x8, scoped, tag = 'scoped memory for tpu_custom_call.1']
    #allocation7 [shape = 'u8[4096]{0}', space=vmem, size = 0x1000, scoped, tag = 'output window, operand 1']
    #allocation8 [shape = 's32[2]{0}', space=sflag, size = 0x8, scoped, tag = 'scoped memory for tpu_custom_call.1']
    #allocation9 [shape = 'u8[4096]{0}', space=vmem, size = 0x1000, scoped, tag = 'output window, operand 2']
    %28 = vsyncpa [#allocation6], 0
    %s29 = scalar_lea.sflag [#allocation6], 1
    %30 = vsyncpa %s29, 0
    %31 = vsyncpa [#allocation8], 0
    %s32 = scalar_lea.sflag [#allocation8], 1
    %33 = vsyncpa %s32, 0
    loop: start=0, step=1, limit=4
    $region2: #{tpu_custom_call.1} parent=1 // loop_pre_header
      _
    $region3: #{tpu_custom_call.1} parent=1 // loop_header
      %s35 = sphi 0, %s39
      %p36 = scmp.ge.s32.totalorder %s35, 4
      %s45 = sphi 0, %s47
      %s48 = sphi 0, %s45
      %s49 = sphi 0, %s48
      %s65 = sphi 0, %s49
      %s69 = sphi 0, %s69
      %s71 = sphi 0, %s69
      %s72 = sphi 0, %s71
      %s86 = sphi 0, %s72
      %s90 = sphi 0, %s90
      %s92 = sphi 0, %s90
      %s93 = sphi 0, %s92
      %s107 = sphi 0, %s93
      %s111 = sphi 0, %s111
      %s113 = sphi 0, %s111
      %s114 = sphi 0, %s113
      %s128 = sphi 0, %s114
      %s132 = sphi 0, %s132
      %s134 = sphi 0, %s132
      %s135 = sphi 0, %s134
      %s149 = sphi 0, %s135
      %s153 = sphi 0, %s153
      %s155 = sphi 0, %s153
      %s156 = sphi 0, %s155
      %s170 = sphi 0, %s156
      %s174 = sphi 0, %s174
      %s176 = sphi 0, %s174
      %s177 = sphi 0, %s176
      %s191 = sphi 0, %s177
      %s195 = sphi 0, %s195
      %s197 = sphi 0, %s195
      %s198 = sphi 0, %s197
      %s212 = sphi 0, %s198
      %s216 = sphi 0, %s216
      %s218 = sphi 0, %s216
      %s219 = sphi 0, %s218
      %s233 = sphi 0, %s219
      %s237 = sphi 0, %s237
      %s239 = sphi 0, %s237
      %s240 = sphi 0, %s239
      %s254 = sphi 0, %s240
      %s258 = sphi 0, %s258
      %s260 = sphi 0, %s258
      %s261 = sphi 0, %s260
      %s275 = sphi 0, %s261
      %s281 = sphi 0, %s283
      %s284 = sphi 0, %s281
      %s285 = sphi 0, %s284
      %s301 = sphi 0, %s285
      %s307 = sphi 0, %s309
      %s310 = sphi 0, %s307
      %s311 = sphi 0, %s310
      %s327 = sphi 0, %s311
      %s333 = sphi 0, %s335
      %s336 = sphi 0, %s333
      %s337 = sphi 0, %s336
      %s353 = sphi 0, %s337
    $region4: #{tpu_custom_call.1} parent=1 // loop_header_branch
      %38 = sbr.rel (%p36) target = $region8
    $region5: #{tpu_custom_call.1} parent=1 // loop_body
      %s40 = ssub.s32 %s35, 1
      %s41 = ssub.s32 %s35, 2
      %s42 = sadd.s32 %s35, 1
      %s43 = ssub.s32 %s35, %s42
      %p44 = scmp.eq.s32.totalorder %s43, 0
      %s46 = sadd.s32 %s45, 1
      %s47 = scalar_select %p44, %s45, %s46
      %p50 = pneg %p44
      %p51 = scmp.eq.s32.totalorder %s35, 1
      %p52 = por %p50, %p51
      %p53 = scmp.ne.s32.totalorder %s45, %s48
      %p54 = scmp.eq.s32.totalorder %s35, 0
      %p55 = por %p53, %p54
      %p56 = scmp.ne.s32.totalorder %s45, %s48
      %p57 = scmp.eq.s32.totalorder %s40, 1
      %p58 = por %p56, %p57
      %p59 = scmp.ne.s32.totalorder %s48, %s49
      %p60 = scmp.eq.s32.totalorder %s40, 0
      %p61 = por %p59, %p60
      %p62 = scmp.ne.s32.totalorder %s48, %s49
      %p63 = scmp.eq.s32.totalorder %s41, 1
      %p64 = por %p62, %p63
      %p66 = scmp.ne.s32.totalorder %s49, %s65
      %p67 = scmp.eq.s32.totalorder %s41, 0
      %p68 = por %p66, %p67
      %s70 = sadd.s32 %s69, 1
      %p73 = scmp.eq.s32.totalorder %s35, 1
      %p74 = scmp.ne.s32.totalorder %s69, %s71
      %p75 = scmp.eq.s32.totalorder %s35, 0
      %p76 = por %p74, %p75
      %p77 = scmp.ne.s32.totalorder %s69, %s71
      %p78 = scmp.eq.s32.totalorder %s40, 1
      %p79 = por %p77, %p78
      %p80 = scmp.ne.s32.totalorder %s71, %s72
      %p81 = scmp.eq.s32.totalorder %s40, 0
      %p82 = por %p80, %p81
      %p83 = scmp.ne.s32.totalorder %s71, %s72
      %p84 = scmp.eq.s32.totalorder %s41, 1
      %p85 = por %p83, %p84
      %p87 = scmp.ne.s32.totalorder %s72, %s86
      %p88 = scmp.eq.s32.totalorder %s41, 0
      %p89 = por %p87, %p88
      %s91 = sadd.s32 %s90, 1
      %p94 = scmp.eq.s32.totalorder %s35, 1
      %p95 = scmp.ne.s32.totalorder %s90, %s92
      %p96 = scmp.eq.s32.totalorder %s35, 0
      %p97 = por %p95, %p96
      %p98 = scmp.ne.s32.totalorder %s90, %s92
      %p99 = scmp.eq.s32.totalorder %s40, 1
      %p100 = por %p98, %p99
      %p101 = scmp.ne.s32.totalorder %s92, %s93
      %p102 = scmp.eq.s32.totalorder %s40, 0
      %p103 = por %p101, %p102
      %p104 = scmp.ne.s32.totalorder %s92, %s93
      %p105 = scmp.eq.s32.totalorder %s41, 1
      %p106 = por %p104, %p105
      %p108 = scmp.ne.s32.totalorder %s93, %s107
      %p109 = scmp.eq.s32.totalorder %s41, 0
      %p110 = por %p108, %p109
      %s112 = sadd.s32 %s111, 1
      %p115 = scmp.eq.s32.totalorder %s35, 1
      %p116 = scmp.ne.s32.totalorder %s111, %s113
      %p117 = scmp.eq.s32.totalorder %s35, 0
      %p118 = por %p116, %p117
      %p119 = scmp.ne.s32.totalorder %s111, %s113
      %p120 = scmp.eq.s32.totalorder %s40, 1
      %p121 = por %p119, %p120
      %p122 = scmp.ne.s32.totalorder %s113, %s114
      %p123 = scmp.eq.s32.totalorder %s40, 0
      %p124 = por %p122, %p123
      %p125 = scmp.ne.s32.totalorder %s113, %s114
      %p126 = scmp.eq.s32.totalorder %s41, 1
      %p127 = por %p125, %p126
      %p129 = scmp.ne.s32.totalorder %s114, %s128
      %p130 = scmp.eq.s32.totalorder %s41, 0
      %p131 = por %p129, %p130
      %s133 = sadd.s32 %s132, 1
      %p136 = scmp.eq.s32.totalorder %s35, 1
      %p137 = scmp.ne.s32.totalorder %s132, %s134
      %p138 = scmp.eq.s32.totalorder %s35, 0
      %p139 = por %p137, %p138
      %p140 = scmp.ne.s32.totalorder %s132, %s134
      %p141 = scmp.eq.s32.totalorder %s40, 1
      %p142 = por %p140, %p141
      %p143 = scmp.ne.s32.totalorder %s134, %s135
      %p144 = scmp.eq.s32.totalorder %s40, 0
      %p145 = por %p143, %p144
      %p146 = scmp.ne.s32.totalorder %s134, %s135
      %p147 = scmp.eq.s32.totalorder %s41, 1
      %p148 = por %p146, %p147
      %p150 = scmp.ne.s32.totalorder %s135, %s149
      %p151 = scmp.eq.s32.totalorder %s41, 0
      %p152 = por %p150, %p151
      %s154 = sadd.s32 %s153, 1
      %p157 = scmp.eq.s32.totalorder %s35, 1
      %p158 = scmp.ne.s32.totalorder %s153, %s155
      %p159 = scmp.eq.s32.totalorder %s35, 0
      %p160 = por %p158, %p159
      %p161 = scmp.ne.s32.totalorder %s153, %s155
      %p162 = scmp.eq.s32.totalorder %s40, 1
      %p163 = por %p161, %p162
      %p164 = scmp.ne.s32.totalorder %s155, %s156
      %p165 = scmp.eq.s32.totalorder %s40, 0
      %p166 = por %p164, %p165
      %p167 = scmp.ne.s32.totalorder %s155, %s156
      %p168 = scmp.eq.s32.totalorder %s41, 1
      %p169 = por %p167, %p168
      %p171 = scmp.ne.s32.totalorder %s156, %s170
      %p172 = scmp.eq.s32.totalorder %s41, 0
      %p173 = por %p171, %p172
      %s175 = sadd.s32 %s174, 1
      %p178 = scmp.eq.s32.totalorder %s35, 1
      %p179 = scmp.ne.s32.totalorder %s174, %s176
      %p180 = scmp.eq.s32.totalorder %s35, 0
      %p181 = por %p179, %p180
      %p182 = scmp.ne.s32.totalorder %s174, %s176
      %p183 = scmp.eq.s32.totalorder %s40, 1
      %p184 = por %p182, %p183
      %p185 = scmp.ne.s32.totalorder %s176, %s177
      %p186 = scmp.eq.s32.totalorder %s40, 0
      %p187 = por %p185, %p186
      %p188 = scmp.ne.s32.totalorder %s176, %s177
      %p189 = scmp.eq.s32.totalorder %s41, 1
      %p190 = por %p188, %p189
      %p192 = scmp.ne.s32.totalorder %s177, %s191
      %p193 = scmp.eq.s32.totalorder %s41, 0
      %p194 = por %p192, %p193
      %s196 = sadd.s32 %s195, 1
      %p199 = scmp.eq.s32.totalorder %s35, 1
      %p200 = scmp.ne.s32.totalorder %s195, %s197
      %p201 = scmp.eq.s32.totalorder %s35, 0
      %p202 = por %p200, %p201
      %p203 = scmp.ne.s32.totalorder %s195, %s197
      %p204 = scmp.eq.s32.totalorder %s40, 1
      %p205 = por %p203, %p204
      %p206 = scmp.ne.s32.totalorder %s197, %s198
      %p207 = scmp.eq.s32.totalorder %s40, 0
      %p208 = por %p206, %p207
      %p209 = scmp.ne.s32.totalorder %s197, %s198
      %p210 = scmp.eq.s32.totalorder %s41, 1
      %p211 = por %p209, %p210
      %p213 = scmp.ne.s32.totalorder %s198, %s212
      %p214 = scmp.eq.s32.totalorder %s41, 0
      %p215 = por %p213, %p214
      %s217 = sadd.s32 %s216, 1
      %p220 = scmp.eq.s32.totalorder %s35, 1
      %p221 = scmp.ne.s32.totalorder %s216, %s218
      %p222 = scmp.eq.s32.totalorder %s35, 0
      %p223 = por %p221, %p222
      %p224 = scmp.ne.s32.totalorder %s216, %s218
      %p225 = scmp.eq.s32.totalorder %s40, 1
      %p226 = por %p224, %p225
      %p227 = scmp.ne.s32.totalorder %s218, %s219
      %p228 = scmp.eq.s32.totalorder %s40, 0
      %p229 = por %p227, %p228
      %p230 = scmp.ne.s32.totalorder %s218, %s219
      %p231 = scmp.eq.s32.totalorder %s41, 1
      %p232 = por %p230, %p231
      %p234 = scmp.ne.s32.totalorder %s219, %s233
      %p235 = scmp.eq.s32.totalorder %s41, 0
      %p236 = por %p234, %p235
      %s238 = sadd.s32 %s237, 1
      %p241 = scmp.eq.s32.totalorder %s35, 1
      %p242 = scmp.ne.s32.totalorder %s237, %s239
      %p243 = scmp.eq.s32.totalorder %s35, 0
      %p244 = por %p242, %p243
      %p245 = scmp.ne.s32.totalorder %s237, %s239
      %p246 = scmp.eq.s32.totalorder %s40, 1
      %p247 = por %p245, %p246
      %p248 = scmp.ne.s32.totalorder %s239, %s240
      %p249 = scmp.eq.s32.totalorder %s40, 0
      %p250 = por %p248, %p249
      %p251 = scmp.ne.s32.totalorder %s239, %s240
      %p252 = scmp.eq.s32.totalorder %s41, 1
      %p253 = por %p251, %p252
      %p255 = scmp.ne.s32.totalorder %s240, %s254
      %p256 = scmp.eq.s32.totalorder %s41, 0
      %p257 = por %p255, %p256
      %s259 = sadd.s32 %s258, 1
      %p262 = scmp.eq.s32.totalorder %s35, 1
      %p263 = scmp.ne.s32.totalorder %s258, %s260
      %p264 = scmp.eq.s32.totalorder %s35, 0
      %p265 = por %p263, %p264
      %p266 = scmp.ne.s32.totalorder %s258, %s260
      %p267 = scmp.eq.s32.totalorder %s40, 1
      %p268 = por %p266, %p267
      %p269 = scmp.ne.s32.totalorder %s260, %s261
      %p270 = scmp.eq.s32.totalorder %s40, 0
      %p271 = por %p269, %p270
      %p272 = scmp.ne.s32.totalorder %s260, %s261
      %p273 = scmp.eq.s32.totalorder %s41, 1
      %p274 = por %p272, %p273
      %p276 = scmp.ne.s32.totalorder %s261, %s275
      %p277 = scmp.eq.s32.totalorder %s41, 0
      %p278 = por %p276, %p277
      %s279 = ssub.s32 %s35, %s42
      %p280 = scmp.eq.s32.totalorder %s279, 0
      %s282 = sadd.s32 %s281, 1
      %s283 = scalar_select %p280, %s281, %s282
      %p286 = pneg %p280
      %p287 = scmp.eq.s32.totalorder %s35, 1
      %p288 = por %p286, %p287
      %p289 = scmp.ne.s32.totalorder %s281, %s284
      %p290 = scmp.eq.s32.totalorder %s35, 0
      %p291 = por %p289, %p290
      %p292 = scmp.ne.s32.totalorder %s281, %s284
      %p293 = scmp.eq.s32.totalorder %s40, 1
      %p294 = por %p292, %p293
      %p295 = scmp.ne.s32.totalorder %s284, %s285
      %p296 = scmp.eq.s32.totalorder %s40, 0
      %p297 = por %p295, %p296
      %p298 = scmp.ne.s32.totalorder %s284, %s285
      %p299 = scmp.eq.s32.totalorder %s41, 1
      %p300 = por %p298, %p299
      %p302 = scmp.ne.s32.totalorder %s285, %s301
      %p303 = scmp.eq.s32.totalorder %s41, 0
      %p304 = por %p302, %p303
      %s305 = ssub.s32 %s35, %s42
      %p306 = scmp.eq.s32.totalorder %s305, 0
      %s308 = sadd.s32 %s307, 1
      %s309 = scalar_select %p306, %s307, %s308
      %p312 = pneg %p306
      %p313 = scmp.eq.s32.totalorder %s35, 1
      %p314 = por %p312, %p313
      %p315 = scmp.ne.s32.totalorder %s307, %s310
      %p316 = scmp.eq.s32.totalorder %s35, 0
      %p317 = por %p315, %p316
      %p318 = scmp.ne.s32.totalorder %s307, %s310
      %p319 = scmp.eq.s32.totalorder %s40, 1
      %p320 = por %p318, %p319
      %p321 = scmp.ne.s32.totalorder %s310, %s311
      %p322 = scmp.eq.s32.totalorder %s40, 0
      %p323 = por %p321, %p322
      %p324 = scmp.ne.s32.totalorder %s310, %s311
      %p325 = scmp.eq.s32.totalorder %s41, 1
      %p326 = por %p324, %p325
      %p328 = scmp.ne.s32.totalorder %s311, %s327
      %p329 = scmp.eq.s32.totalorder %s41, 0
      %p330 = por %p328, %p329
      %s331 = ssub.s32 %s35, %s42
      %p332 = scmp.eq.s32.totalorder %s331, 0
      %s334 = sadd.s32 %s333, 1
      %s335 = scalar_select %p332, %s333, %s334
      %p338 = pneg %p332
      %p339 = scmp.eq.s32.totalorder %s35, 1
      %p340 = por %p338, %p339
      %p341 = scmp.ne.s32.totalorder %s333, %s336
      %p342 = scmp.eq.s32.totalorder %s35, 0
      %p343 = por %p341, %p342
      %p344 = scmp.ne.s32.totalorder %s333, %s336
      %p345 = scmp.eq.s32.totalorder %s40, 1
      %p346 = por %p344, %p345
      %p347 = scmp.ne.s32.totalorder %s336, %s337
      %p348 = scmp.eq.s32.totalorder %s40, 0
      %p349 = por %p347, %p348
      %p350 = scmp.ne.s32.totalorder %s336, %s337
      %p351 = scmp.eq.s32.totalorder %s41, 1
      %p352 = por %p350, %p351
      %p354 = scmp.ne.s32.totalorder %s337, %s353
      %p355 = scmp.eq.s32.totalorder %s41, 0
      %p356 = por %p354, %p355
      %p357 = scmp.le.s32.totalorder 1, %s35
      %p358 = scmp.lt.s32.totalorder %s35, 3
      %p359 = pnand %p357, %p358
      %p360 = pneg %p359
      // Predicated region
      $region9: #{tpu_custom_call.1} parent=5 // pred_check
        _
      $region10: #{tpu_custom_call.1} parent=5 // pred_check_branch
        %362 = sbr.rel (%p359) target = $region12
      $region11: #{tpu_custom_call.1} parent=5 // pred_region
        %s363 = ssub.s32 %s35, 1
        // Predicated region
        $region13: #{tpu_custom_call.1} parent=11 // pred_check
          %p364 = pneg %p82
        $region14: #{tpu_custom_call.1} parent=11 // pred_check_branch
          %366 = sbr.rel (%p364) target = $region16
        $region15: #{tpu_custom_call.1} parent=11 // pred_region
          _
        $region16: #{tpu_custom_call.1} parent=11 // pred_fallthru
          _
        // Predicated region
        $region17: #{tpu_custom_call.1} parent=11 // pred_check
          %p367 = pneg %p103
        $region18: #{tpu_custom_call.1} parent=11 // pred_check_branch
          %369 = sbr.rel (%p367) target = $region20
        $region19: #{tpu_custom_call.1} parent=11 // pred_region
          _
        $region20: #{tpu_custom_call.1} parent=11 // pred_fallthru
          _
        // Predicated region
        $region21: #{tpu_custom_call.1} parent=11 // pred_check
          %p370 = pneg %p124
        $region22: #{tpu_custom_call.1} parent=11 // pred_check_branch
          %372 = sbr.rel (%p370) target = $region24
        $region23: #{tpu_custom_call.1} parent=11 // pred_region
          _
        $region24: #{tpu_custom_call.1} parent=11 // pred_fallthru
          _
        // Predicated region
        $region25: #{tpu_custom_call.1} parent=11 // pred_check
          %p373 = pneg %p145
        $region26: #{tpu_custom_call.1} parent=11 // pred_check_branch
          %375 = sbr.rel (%p373) target = $region28
        $region27: #{tpu_custom_call.1} parent=11 // pred_region
          _
        $region28: #{tpu_custom_call.1} parent=11 // pred_fallthru
          _
        // Predicated region
        $region29: #{tpu_custom_call.1} parent=11 // pred_check
          %p376 = pneg %p166
        $region30: #{tpu_custom_call.1} parent=11 // pred_check_branch
          %378 = sbr.rel (%p376) target = $region32
        $region31: #{tpu_custom_call.1} parent=11 // pred_region
          _
        $region32: #{tpu_custom_call.1} parent=11 // pred_fallthru
          _
        // Predicated region
        $region33: #{tpu_custom_call.1} parent=11 // pred_check
          %p379 = pneg %p187
        $region34: #{tpu_custom_call.1} parent=11 // pred_check_branch
          %381 = sbr.rel (%p379) target = $region36
        $region35: #{tpu_custom_call.1} parent=11 // pred_region
          _
        $region36: #{tpu_custom_call.1} parent=11 // pred_fallthru
          _
        // Predicated region
        $region37: #{tpu_custom_call.1} parent=11 // pred_check
          %p382 = pneg %p208
        $region38: #{tpu_custom_call.1} parent=11 // pred_check_branch
          %384 = sbr.rel (%p382) target = $region40
        $region39: #{tpu_custom_call.1} parent=11 // pred_region
          _
        $region40: #{tpu_custom_call.1} parent=11 // pred_fallthru
          _
        // Predicated region
        $region41: #{tpu_custom_call.1} parent=11 // pred_check
          %p385 = pneg %p229
        $region42: #{tpu_custom_call.1} parent=11 // pred_check_branch
          %387 = sbr.rel (%p385) target = $region44
        $region43: #{tpu_custom_call.1} parent=11 // pred_region
          _
        $region44: #{tpu_custom_call.1} parent=11 // pred_fallthru
          _
        // Predicated region
        $region45: #{tpu_custom_call.1} parent=11 // pred_check
          %p388 = pneg %p250
        $region46: #{tpu_custom_call.1} parent=11 // pred_check_branch
          %390 = sbr.rel (%p388) target = $region48
        $region47: #{tpu_custom_call.1} parent=11 // pred_region
          _
        $region48: #{tpu_custom_call.1} parent=11 // pred_fallthru
          _
        // Predicated region
        $region49: #{tpu_custom_call.1} parent=11 // pred_check
          %p391 = pneg %p271
        $region50: #{tpu_custom_call.1} parent=11 // pred_check_branch
          %393 = sbr.rel (%p391) target = $region52
        $region51: #{tpu_custom_call.1} parent=11 // pred_region
          _
        $region52: #{tpu_custom_call.1} parent=11 // pred_fallthru
          _
      $region12: #{tpu_custom_call.1} parent=5 // pred_fallthru
        _
      %p394 = scmp.lt.s32.totalorder %s35, 2
      // Predicated region
      $region53: #{tpu_custom_call.1} parent=5 // pred_check
        %p395 = pneg %p394
      $region54: #{tpu_custom_call.1} parent=5 // pred_check_branch
        %397 = sbr.rel (%p395) target = $region56
      $region55: #{tpu_custom_call.1} parent=5 // pred_region
        // Predicated region
        $region57: #{tpu_custom_call.1} parent=55 // pred_check
          %p398 = pneg %p55
        $region58: #{tpu_custom_call.1} parent=55 // pred_check_branch
          %400 = sbr.rel (%p398) target = $region60
        $region59: #{tpu_custom_call.1} parent=55 // pred_region
          %p401 = scmp.lt.s32.totalorder %s35, 1
          %s402 = scalar_select %p401, %s35, 1
          %s403 = smul.addr %s402, 8
          %s404 = smul.addr %s403, 8
          %s405 = scalar_lea.vmem %s1, %s404
        $region60: #{tpu_custom_call.1} parent=55 // pred_fallthru
          _
      $region56: #{tpu_custom_call.1} parent=5 // pred_fallthru
        _
      %p406 = scmp.le.s32.totalorder 1, %s35
      %p407 = scmp.lt.s32.totalorder %s35, 3
      %p408 = pnand %p406, %p407
      %p409 = pneg %p408
      // Predicated region
      $region61: #{tpu_custom_call.1} parent=5 // pred_check
        _
      $region62: #{tpu_custom_call.1} parent=5 // pred_check_branch
        %411 = sbr.rel (%p408) target = $region64
      $region63: #{tpu_custom_call.1} parent=5 // pred_region
        %s412 = ssub.s32 %s35, 1
        %p413 = scmp.lt.s32.totalorder %s40, 1
        %s414 = scalar_select %p413, %s40, 1
        %s415 = smul.addr %s414, 8
        %s416 = smul.addr %s415, 8
        %s417 = scalar_lea.vmem %s1, %s416
        %p418 = pneg %p61
        %p419 = pneg %p58
        %p420 = pneg %p82
        %p421 = pneg %p79
        %p422 = pneg %p103
        %p423 = pneg %p100
        %p424 = pneg %p124
        %p425 = pneg %p121
        %p426 = pneg %p145
        %p427 = pneg %p142
        %p428 = pneg %p166
        %p429 = pneg %p163
        %p430 = pneg %p187
        %p431 = pneg %p184
        %p432 = pneg %p208
        %p433 = pneg %p205
        %p434 = pneg %p229
        %p435 = pneg %p226
        %p436 = pneg %p250
        %p437 = pneg %p247
        %p438 = pneg %p271
        %p439 = pneg %p268
        %p440 = pneg %p297
        %p441 = pneg %p294
        %s442 = sand.u32 %s284, 1
        %s443 = scalar_lea.sflag [#allocation6], %s442
        %s444 = sand.u32 %s284, 1
        %s445 = smul.addr %s444, 128
        %s446 = scalar_lea.vmem [#allocation5], %s445
        %p447 = pneg %p323
        %p448 = pneg %p320
        %s449 = sand.u32 %s40, 1
        %s450 = scalar_lea.sflag [#allocation8], %s449
        %s451 = sand.u32 %s310, 1
        %s452 = smul.addr %s451, 4
        %s453 = scalar_lea.vmem [#allocation7], %s452
        %p454 = pneg %p349
        %p455 = pneg %p346
        %s456 = sand.u32 %s40, 1
        %s457 = scalar_lea.sflag [#allocation8], %s456
        %s458 = sand.u32 %s336, 1
        %s459 = smul.addr %s458, 4
        %s460 = scalar_lea.vmem [#allocation9], %s459
        %p461 = scmp.lt.s32.totalorder %s40, 1
        %s462 = scalar_select %p461, %s40, 1
        %s463 = smul.addr %s462, 8
        %s464 = smul.addr %s463, 8
        %s465 = scalar_lea.vmem %s1, %s464
        %s467 = smul.u32 %s40, 4
        %v468 = vld [vmem:[%s465] sm:$0xff]
        %v469 = vld [vmem:[%s465 + $0x8] sm:$0xff]
        %v470 = vld [vmem:[%s465 + $0x10] sm:$0xff]
        %v471 = vld [vmem:[%s465 + $0x18] sm:$0xff]
        %v472 = vld [vmem:[%s465 + $0x20] sm:$0xff]
        %v473 = vld [vmem:[%s465 + $0x28] sm:$0xff]
        %v474 = vld [vmem:[%s465 + $0x30] sm:$0xff]
        %v475 = vld [vmem:[%s465 + $0x38] sm:$0xff]
        %v476 = vlaneseq
        %v477 = vshrl.u32 %v476, 7
        %v478 = vadd.s32 %v477, 8
        %s479 = sld [smem:[#allocation3 + %s467]]
        %v480 = vstv %s479
        %vm481 = vcmp.lt.s32.totalorder %v477, %v480
        %vm482 = vcmp.lt.s32.totalorder %v478, %v480
        %v483 = vsel %vm481, 1, 0
        %v484 = vsel %vm482, 1, 0
        %v485 = vcvt.s32.f32 %v483
        %v486 = vcvt.s32.f32 %v484
        %s487 = sadd.s32 %s467, 1
        %s488 = sld [smem:[#allocation3 + %s487]]
        %v489 = vstv %s488
        %vm490 = vcmp.lt.s32.totalorder %v477, %v489
        %vm491 = vcmp.lt.s32.totalorder %v478, %v489
        %v492 = vsel %vm490, 1, 0
        %v493 = vsel %vm491, 1, 0
        %v494 = vcvt.s32.f32 %v492
        %v495 = vcvt.s32.f32 %v493
        %s496 = sadd.s32 %s467, 2
        %s497 = sld [smem:[#allocation3 + %s496]]
        %v498 = vstv %s497
        %vm499 = vcmp.lt.s32.totalorder %v477, %v498
        %vm500 = vcmp.lt.s32.totalorder %v478, %v498
        %v501 = vsel %vm499, 1, 0
        %v502 = vsel %vm500, 1, 0
        %v503 = vcvt.s32.f32 %v501
        %v504 = vcvt.s32.f32 %v502
        %s505 = sadd.s32 %s467, 3
        %s506 = sld [smem:[#allocation3 + %s505]]
        %v507 = vstv %s506
        %vm508 = vcmp.lt.s32.totalorder %v477, %v507
        %vm509 = vcmp.lt.s32.totalorder %v478, %v507
        %v510 = vsel %vm508, 1, 0
        %v511 = vsel %vm509, 1, 0
        %v512 = vcvt.s32.f32 %v510
        %v513 = vcvt.s32.f32 %v511
        %515 = vset.pattern.permute.xlu0 0
        %516 = vperm.xlu0 %515, %v485
        %v517 = vpop.permute.xlu0 %516
        %520 = vset.pattern.permute.xlu0 0
        %521 = vperm.xlu0 %520, %v486
        %v522 = vpop.permute.xlu0 %521
        %525 = vset.pattern.permute.xlu0 0
        %526 = vperm.xlu0 %525, %v494
        %v527 = vpop.permute.xlu0 %526
        %530 = vset.pattern.permute.xlu0 0
        %531 = vperm.xlu0 %530, %v495
        %v532 = vpop.permute.xlu0 %531
        %535 = vset.pattern.permute.xlu0 0
        %536 = vperm.xlu0 %535, %v503
        %v537 = vpop.permute.xlu0 %536
        %540 = vset.pattern.permute.xlu0 0
        %541 = vperm.xlu0 %540, %v504
        %v542 = vpop.permute.xlu0 %541
        %545 = vset.pattern.permute.xlu0 0
        %546 = vperm.xlu0 %545, %v512
        %v547 = vpop.permute.xlu0 %546
        %550 = vset.pattern.permute.xlu0 0
        %551 = vperm.xlu0 %550, %v513
        %v552 = vpop.permute.xlu0 %551
        %v554 = vmul.f32 %v468, %v517
        %v555 = vmul.f32 %v469, %v522
        %v556 = vmul.f32 %v470, %v527
        %v557 = vmul.f32 %v471, %v532
        %v558 = vmul.f32 %v472, %v537
        %v559 = vmul.f32 %v473, %v542
        %v560 = vmul.f32 %v474, %v547
        %v561 = vmul.f32 %v475, %v552
        %vm562 = vcmp.ne.s32.totalorder %v477, 0
        %vm563 = vcmp.ne.s32.totalorder %v478, 0
        %v564 = vsel %vm562, 1, 0
        %v565 = vsel %vm563, 1, 0
        %v566 = vcvt.s32.f32 %v564
        %v567 = vcvt.s32.f32 %v565
        %vm568 = vcmp.ne.s32.totalorder %v477, 15
        %vm569 = vcmp.ne.s32.totalorder %v478, 15
        %v570 = vsel %vm568, 1, 0
        %v571 = vsel %vm569, 1, 0
        %v572 = vcvt.s32.f32 %v570
        %v573 = vcvt.s32.f32 %v571
        %v574 = vrot.slane %v554, 7
        %v575 = vrot.slane %v555, 7
        %v576 = vrot.slane %v556, 7
        %v577 = vrot.slane %v557, 7
        %v578 = vrot.slane %v558, 7
        %v579 = vrot.slane %v559, 7
        %v580 = vrot.slane %v560, 7
        %v581 = vrot.slane %v561, 7
        %vm582 = vcmp.lt.s32.totalorder %v477, 1
        %v583 = vsel %vm582, %v580, %v581
        %v584 = vsel %vm582, %v579, %v580
        %v585 = vsel %vm582, %v578, %v579
        %v586 = vsel %vm582, %v577, %v578
        %v587 = vsel %vm582, %v576, %v577
        %v588 = vsel %vm582, %v575, %v576
        %v589 = vsel %vm582, %v574, %v575
        %v590 = vsel %vm582, %v581, %v574
        %592 = vset.pattern.permute.xlu0 0
        %593 = vperm.xlu0 %592, %v566
        %v594 = vpop.permute.xlu0 %593
        %597 = vset.pattern.permute.xlu0 0
        %598 = vperm.xlu0 %597, %v567
        %v599 = vpop.permute.xlu0 %598
        %v601 = vmul.f32 %v590, %v594
        %v602 = vmul.f32 %v589, %v599
        %v603 = vmul.f32 %v588, %v594
        %v604 = vmul.f32 %v587, %v599
        %v605 = vmul.f32 %v586, %v594
        %v606 = vmul.f32 %v585, %v599
        %v607 = vmul.f32 %v584, %v594
        %v608 = vmul.f32 %v583, %v599
        %v609 = vrot.slane %v554, 1
        %v610 = vrot.slane %v555, 1
        %v611 = vrot.slane %v556, 1
        %v612 = vrot.slane %v557, 1
        %v613 = vrot.slane %v558, 1
        %v614 = vrot.slane %v559, 1
        %v615 = vrot.slane %v560, 1
        %v616 = vrot.slane %v561, 1
        %vm617 = vcmp.lt.s32.totalorder %v477, 7
        %v618 = vsel %vm617, %v615, %v616
        %v619 = vsel %vm617, %v614, %v615
        %v620 = vsel %vm617, %v613, %v614
        %v621 = vsel %vm617, %v612, %v613
        %v622 = vsel %vm617, %v611, %v612
        %v623 = vsel %vm617, %v610, %v611
        %v624 = vsel %vm617, %v609, %v610
        %v625 = vsel %vm617, %v616, %v609
        %627 = vset.pattern.permute.xlu0 0
        %628 = vperm.xlu0 %627, %v572
        %v629 = vpop.permute.xlu0 %628
        %632 = vset.pattern.permute.xlu0 0
        %633 = vperm.xlu0 %632, %v573
        %v634 = vpop.permute.xlu0 %633
        %v636 = vmul.f32 %v624, %v629
        %v637 = vmul.f32 %v623, %v634
        %v638 = vmul.f32 %v622, %v629
        %v639 = vmul.f32 %v621, %v634
        %v640 = vmul.f32 %v620, %v629
        %v641 = vmul.f32 %v619, %v634
        %v642 = vmul.f32 %v618, %v629
        %v643 = vmul.f32 %v625, %v634
        %v644 = vld [vmem:[%s3] sm:$0x1]
        %v645 = vpack.c.bf16 %v602, %v601
        %v646 = vpack.c.bf16 %v604, %v603
        %v647 = vpack.c.bf16 %v606, %v605
        %v648 = vpack.c.bf16 %v608, %v607
        %v649 = vld [vmem:[%s2] sm:$0xf]
        %v650 = vld [vmem:[%s2 + $0x4] sm:$0xf]
        %v651 = vld [vmem:[%s2 + $0x8] sm:$0xf]
        %v652 = vld [vmem:[%s2 + $0xc] sm:$0xf]
        %v657 = vunpack.c.l.b16 %v649
        %v658 = vunpack.c.l.b16 %v650
        %v659 = vunpack.c.l.b16 %v651
        %v660 = vunpack.c.l.b16 %v652
        %v661 = vpack.c.b16 %v658, %v657
        %v662 = vpack.c.b16 %v660, %v659
        %vm665 = vcmask 261120
        %v667 = vsel %vm665, %v645, 0
        %v670 = vsel %vm665, %v646, 0
        %v673 = vsel %vm665, %v647, 0
        %v676 = vsel %vm665, %v648, 0
        %678 = vmatprep.subr.bf16.mxu0 0
        %679 = vmatpush1.bf16.msra.mxu0 %v661
        %680 = vmatprep.subr.bf16.mxu0 0
        %681 = vmatpush1.bf16.msra.mxu0 %v662
        %682 = vmatprep.subr.bf16.mxu0 0
        %683 = vmatpush1.bf16.msra.mxu0 0
        %684 = vmatprep.subr.bf16.mxu0 0
        %685 = vmatpush1.bf16.msra.mxu0 0
        %686 = vmatprep.subr.bf16.mxu0 0
        %687 = vmatpush1.bf16.msra.mxu0 0
        %688 = vmatprep.subr.bf16.mxu0 0
        %689 = vmatpush1.bf16.msra.mxu0 0
        %690 = vmatprep.subr.bf16.mxu0 0
        %691 = vmatpush1.bf16.msra.mxu0 0
        %692 = vmatprep.subr.bf16.mxu0 0
        %693 = vmatpush1.bf16.msra.mxu0 0
        %694 = vmatprep.subr.bf16.mxu0 0
        %695 = vmatpush1.bf16.msra.mxu0 0
        %696 = vmatprep.subr.bf16.mxu0 0
        %697 = vmatpush1.bf16.msra.mxu0 0
        %698 = vmatprep.subr.bf16.mxu0 0
        %699 = vmatpush1.bf16.msra.mxu0 0
        %700 = vmatprep.subr.bf16.mxu0 0
        %701 = vmatpush1.bf16.msra.mxu0 0
        %702 = vmatprep.subr.bf16.mxu0 0
        %703 = vmatpush1.bf16.msra.mxu0 0
        %704 = vmatprep.subr.bf16.mxu0 0
        %705 = vmatpush1.bf16.msra.mxu0 0
        %706 = vmatprep.subr.bf16.mxu0 0
        %707 = vmatpush1.bf16.msra.mxu0 0
        %708 = vmatprep.subr.bf16.mxu0 0
        %709 = vmatpush1.bf16.msra.mxu0 0
        %710 = vmatprep.mubr.bf16.mxu0 0
        %711 = vmatmul.mubr.bf16.gmra.mrb[0].mxu0 %v667
        %v712 = vpop.f32.mrb[0].mxu0
        %v713 = vadd.f32 0.0, %v712
        %v714 = vpop.f32.mrb[0].mxu0
        %v715 = vpop.f32.mrb[0].mxu0
        %v716 = vadd.f32 0.0, %v715
        %v717 = vpop.f32.mrb[0].mxu0
        %718 = vmatprep.mubr.bf16.mxu0 0
        %719 = vmatmul.mubr.bf16.gmra.mrb[0].mxu0 %v670
        %v720 = vpop.f32.mrb[0].mxu0
        %v721 = vadd.f32 0.0, %v720
        %v722 = vpop.f32.mrb[0].mxu0
        %v723 = vpop.f32.mrb[0].mxu0
        %v724 = vadd.f32 0.0, %v723
        %v725 = vpop.f32.mrb[0].mxu0
        %726 = vmatprep.mubr.bf16.mxu0 0
        %727 = vmatmul.mubr.bf16.gmra.mrb[0].mxu0 %v673
        %v728 = vpop.f32.mrb[0].mxu0
        %v729 = vadd.f32 0.0, %v728
        %v730 = vpop.f32.mrb[0].mxu0
        %v731 = vpop.f32.mrb[0].mxu0
        %v732 = vadd.f32 0.0, %v731
        %v733 = vpop.f32.mrb[0].mxu0
        %734 = vmatprep.mubr.bf16.mxu0 0
        %735 = vmatmul.mubr.bf16.gmra.mrb[0].mxu0 %v676
        %v736 = vpop.f32.mrb[0].mxu0
        %v737 = vadd.f32 0.0, %v736
        %v738 = vpop.f32.mrb[0].mxu0
        %v739 = vpop.f32.mrb[0].mxu0
        %v740 = vadd.f32 0.0, %v739
        %v741 = vpop.f32.mrb[0].mxu0
        %742 = vdwg.mxu0
        %v744 = vlaneseq
        %v745 = vshrl.u32 %v744, 7
        %v746 = vsub.s32 0, %v745
        %v747 = vrot.slane %v644, %v746
        %v749 = vadd.f32 %v747, %v713
        %v750 = vadd.f32 %v747, %v716
        %v751 = vadd.f32 %v747, %v721
        %v752 = vadd.f32 %v747, %v724
        %v753 = vadd.f32 %v747, %v729
        %v754 = vadd.f32 %v747, %v732
        %v755 = vadd.f32 %v747, %v737
        %v756 = vadd.f32 %v747, %v740
        %v757 = vpack.c.bf16 %v555, %v554
        %v758 = vpack.c.bf16 %v557, %v556
        %v759 = vpack.c.bf16 %v559, %v558
        %v760 = vpack.c.bf16 %v561, %v560
        %v761 = vld [vmem:[%s2 + $0x10] sm:$0xf]
        %v762 = vld [vmem:[%s2 + $0x14] sm:$0xf]
        %v763 = vld [vmem:[%s2 + $0x18] sm:$0xf]
        %v764 = vld [vmem:[%s2 + $0x1c] sm:$0xf]
        %v769 = vunpack.c.l.b16 %v761
        %v770 = vunpack.c.l.b16 %v762
        %v771 = vunpack.c.l.b16 %v763
        %v772 = vunpack.c.l.b16 %v764
        %v773 = vpack.c.b16 %v770, %v769
        %v774 = vpack.c.b16 %v772, %v771
        %v778 = vsel %vm665, %v757, 0
        %v781 = vsel %vm665, %v758, 0
        %v784 = vsel %vm665, %v759, 0
        %v787 = vsel %vm665, %v760, 0
        %789 = vmatprep.subr.bf16.mxu0 0
        %790 = vmatpush1.bf16.msra.mxu0 %v773
        %791 = vmatprep.subr.bf16.mxu0 0
        %792 = vmatpush1.bf16.msra.mxu0 %v774
        %793 = vmatprep.subr.bf16.mxu0 0
        %794 = vmatpush1.bf16.msra.mxu0 0
        %795 = vmatprep.subr.bf16.mxu0 0
        %796 = vmatpush1.bf16.msra.mxu0 0
        %797 = vmatprep.subr.bf16.mxu0 0
        %798 = vmatpush1.bf16.msra.mxu0 0
        %799 = vmatprep.subr.bf16.mxu0 0
        %800 = vmatpush1.bf16.msra.mxu0 0
        %801 = vmatprep.subr.bf16.mxu0 0
        %802 = vmatpush1.bf16.msra.mxu0 0
        %803 = vmatprep.subr.bf16.mxu0 0
        %804 = vmatpush1.bf16.msra.mxu0 0
        %805 = vmatprep.subr.bf16.mxu0 0
        %806 = vmatpush1.bf16.msra.mxu0 0
        %807 = vmatprep.subr.bf16.mxu0 0
        %808 = vmatpush1.bf16.msra.mxu0 0
        %809 = vmatprep.subr.bf16.mxu0 0
        %810 = vmatpush1.bf16.msra.mxu0 0
        %811 = vmatprep.subr.bf16.mxu0 0
        %812 = vmatpush1.bf16.msra.mxu0 0
        %813 = vmatprep.subr.bf16.mxu0 0
        %814 = vmatpush1.bf16.msra.mxu0 0
        %815 = vmatprep.subr.bf16.mxu0 0
        %816 = vmatpush1.bf16.msra.mxu0 0
        %817 = vmatprep.subr.bf16.mxu0 0
        %818 = vmatpush1.bf16.msra.mxu0 0
        %819 = vmatprep.subr.bf16.mxu0 0
        %820 = vmatpush1.bf16.msra.mxu0 0
        %821 = vmatprep.mubr.bf16.mxu0 0
        %822 = vmatmul.mubr.bf16.gmra.mrb[0].mxu0 %v778
        %v823 = vpop.f32.mrb[0].mxu0
        %v824 = vadd.f32 0.0, %v823
        %v825 = vpop.f32.mrb[0].mxu0
        %v826 = vpop.f32.mrb[0].mxu0
        %v827 = vadd.f32 0.0, %v826
        %v828 = vpop.f32.mrb[0].mxu0
        %829 = vmatprep.mubr.bf16.mxu0 0
        %830 = vmatmul.mubr.bf16.gmra.mrb[0].mxu0 %v781
        %v831 = vpop.f32.mrb[0].mxu0
        %v832 = vadd.f32 0.0, %v831
        %v833 = vpop.f32.mrb[0].mxu0
        %v834 = vpop.f32.mrb[0].mxu0
        %v835 = vadd.f32 0.0, %v834
        %v836 = vpop.f32.mrb[0].mxu0
        %837 = vmatprep.mubr.bf16.mxu0 0
        %838 = vmatmul.mubr.bf16.gmra.mrb[0].mxu0 %v784
        %v839 = vpop.f32.mrb[0].mxu0
        %v840 = vadd.f32 0.0, %v839
        %v841 = vpop.f32.mrb[0].mxu0
        %v842 = vpop.f32.mrb[0].mxu0
        %v843 = vadd.f32 0.0, %v842
        %v844 = vpop.f32.mrb[0].mxu0
        %845 = vmatprep.mubr.bf16.mxu0 0
        %846 = vmatmul.mubr.bf16.gmra.mrb[0].mxu0 %v787
        %v847 = vpop.f32.mrb[0].mxu0
        %v848 = vadd.f32 0.0, %v847
        %v849 = vpop.f32.mrb[0].mxu0
        %v850 = vpop.f32.mrb[0].mxu0
        %v851 = vadd.f32 0.0, %v850
        %v852 = vpop.f32.mrb[0].mxu0
        %853 = vdwg.mxu0
        %v854 = vadd.f32 %v749, %v824
        %v855 = vadd.f32 %v750, %v827
        %v856 = vadd.f32 %v751, %v832
        %v857 = vadd.f32 %v752, %v835
        %v858 = vadd.f32 %v753, %v840
        %v859 = vadd.f32 %v754, %v843
        %v860 = vadd.f32 %v755, %v848
        %v861 = vadd.f32 %v756, %v851
        %v862 = vpack.c.bf16 %v637, %v636
        %v863 = vpack.c.bf16 %v639, %v638
        %v864 = vpack.c.bf16 %v641, %v640
        %v865 = vpack.c.bf16 %v643, %v642
        %v866 = vld [vmem:[%s2 + $0x20] sm:$0xf]
        %v867 = vld [vmem:[%s2 + $0x24] sm:$0xf]
        %v868 = vld [vmem:[%s2 + $0x28] sm:$0xf]
        %v869 = vld [vmem:[%s2 + $0x2c] sm:$0xf]
        %v874 = vunpack.c.l.b16 %v866
        %v875 = vunpack.c.l.b16 %v867
        %v876 = vunpack.c.l.b16 %v868
        %v877 = vunpack.c.l.b16 %v869
        %v878 = vpack.c.b16 %v875, %v874
        %v879 = vpack.c.b16 %v877, %v876
        %v883 = vsel %vm665, %v862, 0
        %v886 = vsel %vm665, %v863, 0
        %v889 = vsel %vm665, %v864, 0
        %v892 = vsel %vm665, %v865, 0
        %894 = vmatprep.subr.bf16.mxu0 0
        %895 = vmatpush1.bf16.msra.mxu0 %v878
        %896 = vmatprep.subr.bf16.mxu0 0
        %897 = vmatpush1.bf16.msra.mxu0 %v879
        %898 = vmatprep.subr.bf16.mxu0 0
        %899 = vmatpush1.bf16.msra.mxu0 0
        %900 = vmatprep.subr.bf16.mxu0 0
        %901 = vmatpush1.bf16.msra.mxu0 0
        %902 = vmatprep.subr.bf16.mxu0 0
        %903 = vmatpush1.bf16.msra.mxu0 0
        %904 = vmatprep.subr.bf16.mxu0 0
        %905 = vmatpush1.bf16.msra.mxu0 0
        %906 = vmatprep.subr.bf16.mxu0 0
        %907 = vmatpush1.bf16.msra.mxu0 0
        %908 = vmatprep.subr.bf16.mxu0 0
        %909 = vmatpush1.bf16.msra.mxu0 0
        %910 = vmatprep.subr.bf16.mxu0 0
        %911 = vmatpush1.bf16.msra.mxu0 0
        %912 = vmatprep.subr.bf16.mxu0 0
        %913 = vmatpush1.bf16.msra.mxu0 0
        %914 = vmatprep.subr.bf16.mxu0 0
        %915 = vmatpush1.bf16.msra.mxu0 0
        %916 = vmatprep.subr.bf16.mxu0 0
        %917 = vmatpush1.bf16.msra.mxu0 0
        %918 = vmatprep.subr.bf16.mxu0 0
        %919 = vmatpush1.bf16.msra.mxu0 0
        %920 = vmatprep.subr.bf16.mxu0 0
        %921 = vmatpush1.bf16.msra.mxu0 0
        %922 = vmatprep.subr.bf16.mxu0 0
        %923 = vmatpush1.bf16.msra.mxu0 0
        %924 = vmatprep.subr.bf16.mxu0 0
        %925 = vmatpush1.bf16.msra.mxu0 0
        %926 = vmatprep.mubr.bf16.mxu0 0
        %927 = vmatmul.mubr.bf16.gmra.mrb[0].mxu0 %v883
        %v928 = vpop.f32.mrb[0].mxu0
        %v929 = vadd.f32 0.0, %v928
        %v930 = vpop.f32.mrb[0].mxu0
        %v931 = vpop.f32.mrb[0].mxu0
        %v932 = vadd.f32 0.0, %v931
        %v933 = vpop.f32.mrb[0].mxu0
        %934 = vmatprep.mubr.bf16.mxu0 0
        %935 = vmatmul.mubr.bf16.gmra.mrb[0].mxu0 %v886
        %v936 = vpop.f32.mrb[0].mxu0
        %v937 = vadd.f32 0.0, %v936
        %v938 = vpop.f32.mrb[0].mxu0
        %v939 = vpop.f32.mrb[0].mxu0
        %v940 = vadd.f32 0.0, %v939
        %v941 = vpop.f32.mrb[0].mxu0
        %942 = vmatprep.mubr.bf16.mxu0 0
        %943 = vmatmul.mubr.bf16.gmra.mrb[0].mxu0 %v889
        %v944 = vpop.f32.mrb[0].mxu0
        %v945 = vadd.f32 0.0, %v944
        %v946 = vpop.f32.mrb[0].mxu0
        %v947 = vpop.f32.mrb[0].mxu0
        %v948 = vadd.f32 0.0, %v947
        %v949 = vpop.f32.mrb[0].mxu0
        %950 = vmatprep.mubr.bf16.mxu0 0
        %951 = vmatmul.mubr.bf16.gmra.mrb[0].mxu0 %v892
        %v952 = vpop.f32.mrb[0].mxu0
        %v953 = vadd.f32 0.0, %v952
        %v954 = vpop.f32.mrb[0].mxu0
        %v955 = vpop.f32.mrb[0].mxu0
        %v956 = vadd.f32 0.0, %v955
        %v957 = vpop.f32.mrb[0].mxu0
        %958 = vdwg.mxu0
        %v959 = vadd.f32 %v854, %v929
        %v960 = vadd.f32 %v855, %v932
        %v961 = vadd.f32 %v856, %v937
        %v962 = vadd.f32 %v857, %v940
        %v963 = vadd.f32 %v858, %v945
        %v964 = vadd.f32 %v859, %v948
        %v965 = vadd.f32 %v860, %v953
        %v966 = vadd.f32 %v861, %v956
        %v967 = vmax.f32 %v959, 0.0
        %v968 = vmax.f32 %v960, 0.0
        %v969 = vmax.f32 %v961, 0.0
        %v970 = vmax.f32 %v962, 0.0
        %v971 = vmax.f32 %v963, 0.0
        %v972 = vmax.f32 %v964, 0.0
        %v973 = vmax.f32 %v965, 0.0
        %v974 = vmax.f32 %v966, 0.0
        %v975 = vld [vmem:[%s4] sm:$0x1]
        %v976 = vld [vmem:[%s5] sm:$0x1]
        %vm977 = vcmask 523264
        %v978 = vsel %vm977, %v967, 0.0
        %979 = vadd.xlane.f32.xlu0 %v978
        %v980 = vpop.xlane.xlu0 %979
        %v981 = vsel %vm977, %v968, 0.0
        %982 = vadd.xlane.f32.xlu0 %v981
        %v983 = vpop.xlane.xlu0 %982
        %v984 = vsel %vm977, %v969, 0.0
        %985 = vadd.xlane.f32.xlu0 %v984
        %v986 = vpop.xlane.xlu0 %985
        %v987 = vsel %vm977, %v970, 0.0
        %988 = vadd.xlane.f32.xlu0 %v987
        %v989 = vpop.xlane.xlu0 %988
        %v990 = vsel %vm977, %v971, 0.0
        %991 = vadd.xlane.f32.xlu0 %v990
        %v992 = vpop.xlane.xlu0 %991
        %v993 = vsel %vm977, %v972, 0.0
        %994 = vadd.xlane.f32.xlu0 %v993
        %v995 = vpop.xlane.xlu0 %994
        %v996 = vsel %vm977, %v973, 0.0
        %997 = vadd.xlane.f32.xlu0 %v996
        %v998 = vpop.xlane.xlu0 %997
        %v999 = vsel %vm977, %v974, 0.0
        %1000 = vadd.xlane.f32.xlu0 %v999
        %v1001 = vpop.xlane.xlu0 %1000
        %v1002 = vrcp.pop 64.0
        %v1003 = vmul.f32 %v980, %v1002
        %v1004 = vmul.f32 %v983, %v1002
        %v1005 = vmul.f32 %v986, %v1002
        %v1006 = vmul.f32 %v989, %v1002
        %v1007 = vmul.f32 %v992, %v1002
        %v1008 = vmul.f32 %v995, %v1002
        %v1009 = vmul.f32 %v998, %v1002
        %v1010 = vmul.f32 %v1001, %v1002
        %v1011 = vsub.f32 %v967, %v1003
        %v1012 = vsub.f32 %v968, %v1004
        %v1013 = vsub.f32 %v969, %v1005
        %v1014 = vsub.f32 %v970, %v1006
        %v1015 = vsub.f32 %v971, %v1007
        %v1016 = vsub.f32 %v972, %v1008
        %v1017 = vsub.f32 %v973, %v1009
        %v1018 = vsub.f32 %v974, %v1010
        %v1019 = vmul.f32 %v1011, %v1011
        %v1020 = vmul.f32 %v1012, %v1012
        %v1021 = vmul.f32 %v1013, %v1013
        %v1022 = vmul.f32 %v1014, %v1014
        %v1023 = vmul.f32 %v1015, %v1015
        %v1024 = vmul.f32 %v1016, %v1016
        %v1025 = vmul.f32 %v1017, %v1017
        %v1026 = vmul.f32 %v1018, %v1018
        %v1027 = vsel %vm977, %v1019, 0.0
        %1028 = vadd.xlane.f32.xlu0 %v1027
        %v1029 = vpop.xlane.xlu0 %1028
        %v1030 = vsel %vm977, %v1020, 0.0
        %1031 = vadd.xlane.f32.xlu0 %v1030
        %v1032 = vpop.xlane.xlu0 %1031
        %v1033 = vsel %vm977, %v1021, 0.0
        %1034 = vadd.xlane.f32.xlu0 %v1033
        %v1035 = vpop.xlane.xlu0 %1034
        %v1036 = vsel %vm977, %v1022, 0.0
        %1037 = vadd.xlane.f32.xlu0 %v1036
        %v1038 = vpop.xlane.xlu0 %1037
        %v1039 = vsel %vm977, %v1023, 0.0
        %1040 = vadd.xlane.f32.xlu0 %v1039
        %v1041 = vpop.xlane.xlu0 %1040
        %v1042 = vsel %vm977, %v1024, 0.0
        %1043 = vadd.xlane.f32.xlu0 %v1042
        %v1044 = vpop.xlane.xlu0 %1043
        %v1045 = vsel %vm977, %v1025, 0.0
        %1046 = vadd.xlane.f32.xlu0 %v1045
        %v1047 = vpop.xlane.xlu0 %1046
        %v1048 = vsel %vm977, %v1026, 0.0
        %1049 = vadd.xlane.f32.xlu0 %v1048
        %v1050 = vpop.xlane.xlu0 %1049
        %v1051 = vmul.f32 %v1029, %v1002
        %v1052 = vmul.f32 %v1032, %v1002
        %v1053 = vmul.f32 %v1035, %v1002
        %v1054 = vmul.f32 %v1038, %v1002
        %v1055 = vmul.f32 %v1041, %v1002
        %v1056 = vmul.f32 %v1044, %v1002
        %v1057 = vmul.f32 %v1047, %v1002
        %v1058 = vmul.f32 %v1050, %v1002
        %v1059 = vadd.f32 %v1051, 1e-05
        %v1060 = vadd.f32 %v1052, 1e-05
        %v1061 = vadd.f32 %v1053, 1e-05
        %v1062 = vadd.f32 %v1054, 1e-05
        %v1063 = vadd.f32 %v1055, 1e-05
        %v1064 = vadd.f32 %v1056, 1e-05
        %v1065 = vadd.f32 %v1057, 1e-05
        %v1066 = vadd.f32 %v1058, 1e-05
        %v1067 = vrsqrt.pop %v1059
        %v1068 = vrsqrt.pop %v1060
        %v1069 = vrsqrt.pop %v1061
        %v1070 = vrsqrt.pop %v1062
        %v1071 = vrsqrt.pop %v1063
        %v1072 = vrsqrt.pop %v1064
        %v1073 = vrsqrt.pop %v1065
        %v1074 = vrsqrt.pop %v1066
        %v1075 = vmul.f32 %v1011, %v1067
        %v1076 = vmul.f32 %v1012, %v1068
        %v1077 = vmul.f32 %v1013, %v1069
        %v1078 = vmul.f32 %v1014, %v1070
        %v1079 = vmul.f32 %v1015, %v1071
        %v1080 = vmul.f32 %v1016, %v1072
        %v1081 = vmul.f32 %v1017, %v1073
        %v1082 = vmul.f32 %v1018, %v1074
        %v1084 = vlaneseq
        %v1085 = vshrl.u32 %v1084, 7
        %v1086 = vsub.s32 0, %v1085
        %v1087 = vrot.slane %v975, %v1086
        %v1089 = vmul.f32 %v1075, %v1087
        %v1090 = vmul.f32 %v1076, %v1087
        %v1091 = vmul.f32 %v1077, %v1087
        %v1092 = vmul.f32 %v1078, %v1087
        %v1093 = vmul.f32 %v1079, %v1087
        %v1094 = vmul.f32 %v1080, %v1087
        %v1095 = vmul.f32 %v1081, %v1087
        %v1096 = vmul.f32 %v1082, %v1087
        %v1098 = vlaneseq
        %v1099 = vshrl.u32 %v1098, 7
        %v1100 = vsub.s32 0, %v1099
        %v1101 = vrot.slane %v976, %v1100
        %v1103 = vadd.f32 %v1089, %v1101
        %v1104 = vadd.f32 %v1090, %v1101
        %v1105 = vadd.f32 %v1091, %v1101
        %v1106 = vadd.f32 %v1092, %v1101
        %v1107 = vadd.f32 %v1093, %v1101
        %v1108 = vadd.f32 %v1094, %v1101
        %v1109 = vadd.f32 %v1095, %v1101
        %v1110 = vadd.f32 %v1096, %v1101
        %v1111 = vrot.slane %v1103, 7
        %v1112 = vrot.slane %v1104, 7
        %v1113 = vrot.slane %v1105, 7
        %v1114 = vrot.slane %v1106, 7
        %v1115 = vrot.slane %v1107, 7
        %v1116 = vrot.slane %v1108, 7
        %v1117 = vrot.slane %v1109, 7
        %v1118 = vrot.slane %v1110, 7
        %v1119 = vsel %vm582, %v1117, %v1118
        %v1120 = vsel %vm582, %v1116, %v1117
        %v1121 = vsel %vm582, %v1115, %v1116
        %v1122 = vsel %vm582, %v1114, %v1115
        %v1123 = vsel %vm582, %v1113, %v1114
        %v1124 = vsel %vm582, %v1112, %v1113
        %v1125 = vsel %vm582, %v1111, %v1112
        %v1126 = vsel %vm582, %v1118, %v1111
        %v1127 = vmul.f32 %v1126, %v594
        %v1128 = vmul.f32 %v1125, %v599
        %v1129 = vmul.f32 %v1124, %v594
        %v1130 = vmul.f32 %v1123, %v599
        %v1131 = vmul.f32 %v1122, %v594
        %v1132 = vmul.f32 %v1121, %v599
        %v1133 = vmul.f32 %v1120, %v594
        %v1134 = vmul.f32 %v1119, %v599
        %v1135 = vrot.slane %v1103, 1
        %v1136 = vrot.slane %v1104, 1
        %v1137 = vrot.slane %v1105, 1
        %v1138 = vrot.slane %v1106, 1
        %v1139 = vrot.slane %v1107, 1
        %v1140 = vrot.slane %v1108, 1
        %v1141 = vrot.slane %v1109, 1
        %v1142 = vrot.slane %v1110, 1
        %v1143 = vsel %vm617, %v1141, %v1142
        %v1144 = vsel %vm617, %v1140, %v1141
        %v1145 = vsel %vm617, %v1139, %v1140
        %v1146 = vsel %vm617, %v1138, %v1139
        %v1147 = vsel %vm617, %v1137, %v1138
        %v1148 = vsel %vm617, %v1136, %v1137
        %v1149 = vsel %vm617, %v1135, %v1136
        %v1150 = vsel %vm617, %v1142, %v1135
        %v1151 = vmul.f32 %v1149, %v629
        %v1152 = vmul.f32 %v1148, %v634
        %v1153 = vmul.f32 %v1147, %v629
        %v1154 = vmul.f32 %v1146, %v634
        %v1155 = vmul.f32 %v1145, %v629
        %v1156 = vmul.f32 %v1144, %v634
        %v1157 = vmul.f32 %v1143, %v629
        %v1158 = vmul.f32 %v1150, %v634
        %v1159 = vld [vmem:[%s7] sm:$0x1]
        %v1160 = vpack.c.bf16 %v1128, %v1127
        %v1161 = vpack.c.bf16 %v1130, %v1129
        %v1162 = vpack.c.bf16 %v1132, %v1131
        %v1163 = vpack.c.bf16 %v1134, %v1133
        %v1164 = vld [vmem:[%s6] sm:$0xf]
        %v1165 = vld [vmem:[%s6 + $0x4] sm:$0xf]
        %v1166 = vld [vmem:[%s6 + $0x8] sm:$0xf]
        %v1167 = vld [vmem:[%s6 + $0xc] sm:$0xf]
        %v1168 = vld [vmem:[%s6 + $0x10] sm:$0xf]
        %v1169 = vld [vmem:[%s6 + $0x14] sm:$0xf]
        %v1170 = vld [vmem:[%s6 + $0x18] sm:$0xf]
        %v1171 = vld [vmem:[%s6 + $0x1c] sm:$0xf]
        %v1180 = vunpack.c.l.b16 %v1164
        %v1181 = vunpack.c.l.b16 %v1165
        %v1182 = vunpack.c.l.b16 %v1166
        %v1183 = vunpack.c.l.b16 %v1167
        %v1184 = vunpack.c.l.b16 %v1168
        %v1185 = vunpack.c.l.b16 %v1169
        %v1186 = vunpack.c.l.b16 %v1170
        %v1187 = vunpack.c.l.b16 %v1171
        %v1188 = vpack.c.b16 %v1181, %v1180
        %v1189 = vpack.c.b16 %v1183, %v1182
        %v1190 = vpack.c.b16 %v1185, %v1184
        %v1191 = vpack.c.b16 %v1187, %v1186
        %v1197 = vsel %vm977, %v1160, 0
        %v1200 = vsel %vm977, %v1161, 0
        %v1203 = vsel %vm977, %v1162, 0
        %v1206 = vsel %vm977, %v1163, 0
        %1208 = vmatprep.subr.bf16.mxu0 0
        %1209 = vmatpush1.bf16.msra.mxu0 %v1188
        %1210 = vmatprep.subr.bf16.mxu0 0
        %1211 = vmatpush1.bf16.msra.mxu0 %v1189
        %1212 = vmatprep.subr.bf16.mxu0 0
        %1213 = vmatpush1.bf16.msra.mxu0 %v1190
        %1214 = vmatprep.subr.bf16.mxu0 0
        %1215 = vmatpush1.bf16.msra.mxu0 %v1191
        %1216 = vmatprep.subr.bf16.mxu0 0
        %1217 = vmatpush1.bf16.msra.mxu0 0
        %1218 = vmatprep.subr.bf16.mxu0 0
        %1219 = vmatpush1.bf16.msra.mxu0 0
        %1220 = vmatprep.subr.bf16.mxu0 0
        %1221 = vmatpush1.bf16.msra.mxu0 0
        %1222 = vmatprep.subr.bf16.mxu0 0
        %1223 = vmatpush1.bf16.msra.mxu0 0
        %1224 = vmatprep.subr.bf16.mxu0 0
        %1225 = vmatpush1.bf16.msra.mxu0 0
        %1226 = vmatprep.subr.bf16.mxu0 0
        %1227 = vmatpush1.bf16.msra.mxu0 0
        %1228 = vmatprep.subr.bf16.mxu0 0
        %1229 = vmatpush1.bf16.msra.mxu0 0
        %1230 = vmatprep.subr.bf16.mxu0 0
        %1231 = vmatpush1.bf16.msra.mxu0 0
        %1232 = vmatprep.subr.bf16.mxu0 0
        %1233 = vmatpush1.bf16.msra.mxu0 0
        %1234 = vmatprep.subr.bf16.mxu0 0
        %1235 = vmatpush1.bf16.msra.mxu0 0
        %1236 = vmatprep.subr.bf16.mxu0 0
        %1237 = vmatpush1.bf16.msra.mxu0 0
        %1238 = vmatprep.subr.bf16.mxu0 0
        %1239 = vmatpush1.bf16.msra.mxu0 0
        %1240 = vmatprep.mubr.bf16.mxu0 0
        %1241 = vmatmul.mubr.bf16.gmra.mrb[0].mxu0 %v1197
        %v1242 = vpop.f32.mrb[0].mxu0
        %v1243 = vadd.f32 0.0, %v1242
        %v1244 = vpop.f32.mrb[0].mxu0
        %v1245 = vpop.f32.mrb[0].mxu0
        %v1246 = vadd.f32 0.0, %v1245
        %v1247 = vpop.f32.mrb[0].mxu0
        %1248 = vmatprep.mubr.bf16.mxu0 0
        %1249 = vmatmul.mubr.bf16.gmra.mrb[0].mxu0 %v1200
        %v1250 = vpop.f32.mrb[0].mxu0
        %v1251 = vadd.f32 0.0, %v1250
        %v1252 = vpop.f32.mrb[0].mxu0
        %v1253 = vpop.f32.mrb[0].mxu0
        %v1254 = vadd.f32 0.0, %v1253
        %v1255 = vpop.f32.mrb[0].mxu0
        %1256 = vmatprep.mubr.bf16.mxu0 0
        %1257 = vmatmul.mubr.bf16.gmra.mrb[0].mxu0 %v1203
        %v1258 = vpop.f32.mrb[0].mxu0
        %v1259 = vadd.f32 0.0, %v1258
        %v1260 = vpop.f32.mrb[0].mxu0
        %v1261 = vpop.f32.mrb[0].mxu0
        %v1262 = vadd.f32 0.0, %v1261
        %v1263 = vpop.f32.mrb[0].mxu0
        %1264 = vmatprep.mubr.bf16.mxu0 0
        %1265 = vmatmul.mubr.bf16.gmra.mrb[0].mxu0 %v1206
        %v1266 = vpop.f32.mrb[0].mxu0
        %v1267 = vadd.f32 0.0, %v1266
        %v1268 = vpop.f32.mrb[0].mxu0
        %v1269 = vpop.f32.mrb[0].mxu0
        %v1270 = vadd.f32 0.0, %v1269
        %v1271 = vpop.f32.mrb[0].mxu0
        %1272 = vdwg.mxu0
        %v1274 = vlaneseq
        %v1275 = vshrl.u32 %v1274, 7
        %v1276 = vsub.s32 0, %v1275
        %v1277 = vrot.slane %v1159, %v1276
        %v1279 = vadd.f32 %v1277, %v1243
        %v1280 = vadd.f32 %v1277, %v1246
        %v1281 = vadd.f32 %v1277, %v1251
        %v1282 = vadd.f32 %v1277, %v1254
        %v1283 = vadd.f32 %v1277, %v1259
        %v1284 = vadd.f32 %v1277, %v1262
        %v1285 = vadd.f32 %v1277, %v1267
        %v1286 = vadd.f32 %v1277, %v1270
        %v1287 = vpack.c.bf16 %v1104, %v1103
        %v1288 = vpack.c.bf16 %v1106, %v1105
        %v1289 = vpack.c.bf16 %v1108, %v1107
        %v1290 = vpack.c.bf16 %v1110, %v1109
        %v1291 = vld [vmem:[%s6 + $0x20] sm:$0xf]
        %v1292 = vld [vmem:[%s6 + $0x24] sm:$0xf]
        %v1293 = vld [vmem:[%s6 + $0x28] sm:$0xf]
        %v1294 = vld [vmem:[%s6 + $0x2c] sm:$0xf]
        %v1295 = vld [vmem:[%s6 + $0x30] sm:$0xf]
        %v1296 = vld [vmem:[%s6 + $0x34] sm:$0xf]
        %v1297 = vld [vmem:[%s6 + $0x38] sm:$0xf]
        %v1298 = vld [vmem:[%s6 + $0x3c] sm:$0xf]
        %v1307 = vunpack.c.l.b16 %v1291
        %v1308 = vunpack.c.l.b16 %v1292
        %v1309 = vunpack.c.l.b16 %v1293
        %v1310 = vunpack.c.l.b16 %v1294
        %v1311 = vunpack.c.l.b16 %v1295
        %v1312 = vunpack.c.l.b16 %v1296
        %v1313 = vunpack.c.l.b16 %v1297
        %v1314 = vunpack.c.l.b16 %v1298
        %v1315 = vpack.c.b16 %v1308, %v1307
        %v1316 = vpack.c.b16 %v1310, %v1309
        %v1317 = vpack.c.b16 %v1312, %v1311
        %v1318 = vpack.c.b16 %v1314, %v1313
        %v1324 = vsel %vm977, %v1287, 0
        %v1327 = vsel %vm977, %v1288, 0
        %v1330 = vsel %vm977, %v1289, 0
        %v1333 = vsel %vm977, %v1290, 0
        %1335 = vmatprep.subr.bf16.mxu0 0
        %1336 = vmatpush1.bf16.msra.mxu0 %v1315
        %1337 = vmatprep.subr.bf16.mxu0 0
        %1338 = vmatpush1.bf16.msra.mxu0 %v1316
        %1339 = vmatprep.subr.bf16.mxu0 0
        %1340 = vmatpush1.bf16.msra.mxu0 %v1317
        %1341 = vmatprep.subr.bf16.mxu0 0
        %1342 = vmatpush1.bf16.msra.mxu0 %v1318
        %1343 = vmatprep.subr.bf16.mxu0 0
        %1344 = vmatpush1.bf16.msra.mxu0 0
        %1345 = vmatprep.subr.bf16.mxu0 0
        %1346 = vmatpush1.bf16.msra.mxu0 0
        %1347 = vmatprep.subr.bf16.mxu0 0
        %1348 = vmatpush1.bf16.msra.mxu0 0
        %1349 = vmatprep.subr.bf16.mxu0 0
        %1350 = vmatpush1.bf16.msra.mxu0 0
        %1351 = vmatprep.subr.bf16.mxu0 0
        %1352 = vmatpush1.bf16.msra.mxu0 0
        %1353 = vmatprep.subr.bf16.mxu0 0
        %1354 = vmatpush1.bf16.msra.mxu0 0
        %1355 = vmatprep.subr.bf16.mxu0 0
        %1356 = vmatpush1.bf16.msra.mxu0 0
        %1357 = vmatprep.subr.bf16.mxu0 0
        %1358 = vmatpush1.bf16.msra.mxu0 0
        %1359 = vmatprep.subr.bf16.mxu0 0
        %1360 = vmatpush1.bf16.msra.mxu0 0
        %1361 = vmatprep.subr.bf16.mxu0 0
        %1362 = vmatpush1.bf16.msra.mxu0 0
        %1363 = vmatprep.subr.bf16.mxu0 0
        %1364 = vmatpush1.bf16.msra.mxu0 0
        %1365 = vmatprep.subr.bf16.mxu0 0
        %1366 = vmatpush1.bf16.msra.mxu0 0
        %1367 = vmatprep.mubr.bf16.mxu0 0
        %1368 = vmatmul.mubr.bf16.gmra.mrb[0].mxu0 %v1324
        %v1369 = vpop.f32.mrb[0].mxu0
        %v1370 = vadd.f32 0.0, %v1369
        %v1371 = vpop.f32.mrb[0].mxu0
        %v1372 = vpop.f32.mrb[0].mxu0
        %v1373 = vadd.f32 0.0, %v1372
        %v1374 = vpop.f32.mrb[0].mxu0
        %1375 = vmatprep.mubr.bf16.mxu0 0
        %1376 = vmatmul.mubr.bf16.gmra.mrb[0].mxu0 %v1327
        %v1377 = vpop.f32.mrb[0].mxu0
        %v1378 = vadd.f32 0.0, %v1377
        %v1379 = vpop.f32.mrb[0].mxu0
        %v1380 = vpop.f32.mrb[0].mxu0
        %v1381 = vadd.f32 0.0, %v1380
        %v1382 = vpop.f32.mrb[0].mxu0
        %1383 = vmatprep.mubr.bf16.mxu0 0
        %1384 = vmatmul.mubr.bf16.gmra.mrb[0].mxu0 %v1330
        %v1385 = vpop.f32.mrb[0].mxu0
        %v1386 = vadd.f32 0.0, %v1385
        %v1387 = vpop.f32.mrb[0].mxu0
        %v1388 = vpop.f32.mrb[0].mxu0
        %v1389 = vadd.f32 0.0, %v1388
        %v1390 = vpop.f32.mrb[0].mxu0
        %1391 = vmatprep.mubr.bf16.mxu0 0
        %1392 = vmatmul.mubr.bf16.gmra.mrb[0].mxu0 %v1333
        %v1393 = vpop.f32.mrb[0].mxu0
        %v1394 = vadd.f32 0.0, %v1393
        %v1395 = vpop.f32.mrb[0].mxu0
        %v1396 = vpop.f32.mrb[0].mxu0
        %v1397 = vadd.f32 0.0, %v1396
        %v1398 = vpop.f32.mrb[0].mxu0
        %1399 = vdwg.mxu0
        %v1400 = vadd.f32 %v1279, %v1370
        %v1401 = vadd.f32 %v1280, %v1373
        %v1402 = vadd.f32 %v1281, %v1378
        %v1403 = vadd.f32 %v1282, %v1381
        %v1404 = vadd.f32 %v1283, %v1386
        %v1405 = vadd.f32 %v1284, %v1389
        %v1406 = vadd.f32 %v1285, %v1394
        %v1407 = vadd.f32 %v1286, %v1397
        %v1408 = vpack.c.bf16 %v1152, %v1151
        %v1409 = vpack.c.bf16 %v1154, %v1153
        %v1410 = vpack.c.bf16 %v1156, %v1155
        %v1411 = vpack.c.bf16 %v1158, %v1157
        %v1412 = vld [vmem:[%s6 + $0x40] sm:$0xf]
        %v1413 = vld [vmem:[%s6 + $0x44] sm:$0xf]
        %v1414 = vld [vmem:[%s6 + $0x48] sm:$0xf]
        %v1415 = vld [vmem:[%s6 + $0x4c] sm:$0xf]
        %v1416 = vld [vmem:[%s6 + $0x50] sm:$0xf]
        %v1417 = vld [vmem:[%s6 + $0x54] sm:$0xf]
        %v1418 = vld [vmem:[%s6 + $0x58] sm:$0xf]
        %v1419 = vld [vmem:[%s6 + $0x5c] sm:$0xf]
        %v1428 = vunpack.c.l.b16 %v1412
        %v1429 = vunpack.c.l.b16 %v1413
        %v1430 = vunpack.c.l.b16 %v1414
        %v1431 = vunpack.c.l.b16 %v1415
        %v1432 = vunpack.c.l.b16 %v1416
        %v1433 = vunpack.c.l.b16 %v1417
        %v1434 = vunpack.c.l.b16 %v1418
        %v1435 = vunpack.c.l.b16 %v1419
        %v1436 = vpack.c.b16 %v1429, %v1428
        %v1437 = vpack.c.b16 %v1431, %v1430
        %v1438 = vpack.c.b16 %v1433, %v1432
        %v1439 = vpack.c.b16 %v1435, %v1434
        %v1445 = vsel %vm977, %v1408, 0
        %v1448 = vsel %vm977, %v1409, 0
        %v1451 = vsel %vm977, %v1410, 0
        %v1454 = vsel %vm977, %v1411, 0
        %1456 = vmatprep.subr.bf16.mxu0 0
        %1457 = vmatpush1.bf16.msra.mxu0 %v1436
        %1458 = vmatprep.subr.bf16.mxu0 0
        %1459 = vmatpush1.bf16.msra.mxu0 %v1437
        %1460 = vmatprep.subr.bf16.mxu0 0
        %1461 = vmatpush1.bf16.msra.mxu0 %v1438
        %1462 = vmatprep.subr.bf16.mxu0 0
        %1463 = vmatpush1.bf16.msra.mxu0 %v1439
        %1464 = vmatprep.subr.bf16.mxu0 0
        %1465 = vmatpush1.bf16.msra.mxu0 0
        %1466 = vmatprep.subr.bf16.mxu0 0
        %1467 = vmatpush1.bf16.msra.mxu0 0
        %1468 = vmatprep.subr.bf16.mxu0 0
        %1469 = vmatpush1.bf16.msra.mxu0 0
        %1470 = vmatprep.subr.bf16.mxu0 0
        %1471 = vmatpush1.bf16.msra.mxu0 0
        %1472 = vmatprep.subr.bf16.mxu0 0
        %1473 = vmatpush1.bf16.msra.mxu0 0
        %1474 = vmatprep.subr.bf16.mxu0 0
        %1475 = vmatpush1.bf16.msra.mxu0 0
        %1476 = vmatprep.subr.bf16.mxu0 0
        %1477 = vmatpush1.bf16.msra.mxu0 0
        %1478 = vmatprep.subr.bf16.mxu0 0
        %1479 = vmatpush1.bf16.msra.mxu0 0
        %1480 = vmatprep.subr.bf16.mxu0 0
        %1481 = vmatpush1.bf16.msra.mxu0 0
        %1482 = vmatprep.subr.bf16.mxu0 0
        %1483 = vmatpush1.bf16.msra.mxu0 0
        %1484 = vmatprep.subr.bf16.mxu0 0
        %1485 = vmatpush1.bf16.msra.mxu0 0
        %1486 = vmatprep.subr.bf16.mxu0 0
        %1487 = vmatpush1.bf16.msra.mxu0 0
        %1488 = vmatprep.mubr.bf16.mxu0 0
        %1489 = vmatmul.mubr.bf16.gmra.mrb[0].mxu0 %v1445
        %v1490 = vpop.f32.mrb[0].mxu0
        %v1491 = vadd.f32 0.0, %v1490
        %v1492 = vpop.f32.mrb[0].mxu0
        %v1493 = vpop.f32.mrb[0].mxu0
        %v1494 = vadd.f32 0.0, %v1493
        %v1495 = vpop.f32.mrb[0].mxu0
        %1496 = vmatprep.mubr.bf16.mxu0 0
        %1497 = vmatmul.mubr.bf16.gmra.mrb[0].mxu0 %v1448
        %v1498 = vpop.f32.mrb[0].mxu0
        %v1499 = vadd.f32 0.0, %v1498
        %v1500 = vpop.f32.mrb[0].mxu0
        %v1501 = vpop.f32.mrb[0].mxu0
        %v1502 = vadd.f32 0.0, %v1501
        %v1503 = vpop.f32.mrb[0].mxu0
        %1504 = vmatprep.mubr.bf16.mxu0 0
        %1505 = vmatmul.mubr.bf16.gmra.mrb[0].mxu0 %v1451
        %v1506 = vpop.f32.mrb[0].mxu0
        %v1507 = vadd.f32 0.0, %v1506
        %v1508 = vpop.f32.mrb[0].mxu0
        %v1509 = vpop.f32.mrb[0].mxu0
        %v1510 = vadd.f32 0.0, %v1509
        %v1511 = vpop.f32.mrb[0].mxu0
        %1512 = vmatprep.mubr.bf16.mxu0 0
        %1513 = vmatmul.mubr.bf16.gmra.mrb[0].mxu0 %v1454
        %v1514 = vpop.f32.mrb[0].mxu0
        %v1515 = vadd.f32 0.0, %v1514
        %v1516 = vpop.f32.mrb[0].mxu0
        %v1517 = vpop.f32.mrb[0].mxu0
        %v1518 = vadd.f32 0.0, %v1517
        %v1519 = vpop.f32.mrb[0].mxu0
        %1520 = vdwg.mxu0
        %v1521 = vadd.f32 %v1400, %v1491
        %v1522 = vadd.f32 %v1401, %v1494
        %v1523 = vadd.f32 %v1402, %v1499
        %v1524 = vadd.f32 %v1403, %v1502
        %v1525 = vadd.f32 %v1404, %v1507
        %v1526 = vadd.f32 %v1405, %v1510
        %v1527 = vadd.f32 %v1406, %v1515
        %v1528 = vadd.f32 %v1407, %v1518
        %v1529 = vmax.f32 %v1521, 0.0
        %v1530 = vmax.f32 %v1522, 0.0
        %v1531 = vmax.f32 %v1523, 0.0
        %v1532 = vmax.f32 %v1524, 0.0
        %v1533 = vmax.f32 %v1525, 0.0
        %v1534 = vmax.f32 %v1526, 0.0
        %v1535 = vmax.f32 %v1527, 0.0
        %v1536 = vmax.f32 %v1528, 0.0
        %v1537 = vld [vmem:[%s8] sm:$0x1]
        %v1538 = vld [vmem:[%s9] sm:$0x1]
        %v1539 = vsel %vm977, %v1529, 0.0
        %1540 = vadd.xlane.f32.xlu0 %v1539
        %v1541 = vpop.xlane.xlu0 %1540
        %v1542 = vsel %vm977, %v1530, 0.0
        %1543 = vadd.xlane.f32.xlu0 %v1542
        %v1544 = vpop.xlane.xlu0 %1543
        %v1545 = vsel %vm977, %v1531, 0.0
        %1546 = vadd.xlane.f32.xlu0 %v1545
        %v1547 = vpop.xlane.xlu0 %1546
        %v1548 = vsel %vm977, %v1532, 0.0
        %1549 = vadd.xlane.f32.xlu0 %v1548
        %v1550 = vpop.xlane.xlu0 %1549
        %v1551 = vsel %vm977, %v1533, 0.0
        %1552 = vadd.xlane.f32.xlu0 %v1551
        %v1553 = vpop.xlane.xlu0 %1552
        %v1554 = vsel %vm977, %v1534, 0.0
        %1555 = vadd.xlane.f32.xlu0 %v1554
        %v1556 = vpop.xlane.xlu0 %1555
        %v1557 = vsel %vm977, %v1535, 0.0
        %1558 = vadd.xlane.f32.xlu0 %v1557
        %v1559 = vpop.xlane.xlu0 %1558
        %v1560 = vsel %vm977, %v1536, 0.0
        %1561 = vadd.xlane.f32.xlu0 %v1560
        %v1562 = vpop.xlane.xlu0 %1561
        %v1563 = vmul.f32 %v1541, %v1002
        %v1564 = vmul.f32 %v1544, %v1002
        %v1565 = vmul.f32 %v1547, %v1002
        %v1566 = vmul.f32 %v1550, %v1002
        %v1567 = vmul.f32 %v1553, %v1002
        %v1568 = vmul.f32 %v1556, %v1002
        %v1569 = vmul.f32 %v1559, %v1002
        %v1570 = vmul.f32 %v1562, %v1002
        %v1571 = vsub.f32 %v1529, %v1563
        %v1572 = vsub.f32 %v1530, %v1564
        %v1573 = vsub.f32 %v1531, %v1565
        %v1574 = vsub.f32 %v1532, %v1566
        %v1575 = vsub.f32 %v1533, %v1567
        %v1576 = vsub.f32 %v1534, %v1568
        %v1577 = vsub.f32 %v1535, %v1569
        %v1578 = vsub.f32 %v1536, %v1570
        %v1579 = vmul.f32 %v1571, %v1571
        %v1580 = vmul.f32 %v1572, %v1572
        %v1581 = vmul.f32 %v1573, %v1573
        %v1582 = vmul.f32 %v1574, %v1574
        %v1583 = vmul.f32 %v1575, %v1575
        %v1584 = vmul.f32 %v1576, %v1576
        %v1585 = vmul.f32 %v1577, %v1577
        %v1586 = vmul.f32 %v1578, %v1578
        %v1587 = vsel %vm977, %v1579, 0.0
        %1588 = vadd.xlane.f32.xlu0 %v1587
        %v1589 = vpop.xlane.xlu0 %1588
        %v1590 = vsel %vm977, %v1580, 0.0
        %1591 = vadd.xlane.f32.xlu0 %v1590
        %v1592 = vpop.xlane.xlu0 %1591
        %v1593 = vsel %vm977, %v1581, 0.0
        %1594 = vadd.xlane.f32.xlu0 %v1593
        %v1595 = vpop.xlane.xlu0 %1594
        %v1596 = vsel %vm977, %v1582, 0.0
        %1597 = vadd.xlane.f32.xlu0 %v1596
        %v1598 = vpop.xlane.xlu0 %1597
        %v1599 = vsel %vm977, %v1583, 0.0
        %1600 = vadd.xlane.f32.xlu0 %v1599
        %v1601 = vpop.xlane.xlu0 %1600
        %v1602 = vsel %vm977, %v1584, 0.0
        %1603 = vadd.xlane.f32.xlu0 %v1602
        %v1604 = vpop.xlane.xlu0 %1603
        %v1605 = vsel %vm977, %v1585, 0.0
        %1606 = vadd.xlane.f32.xlu0 %v1605
        %v1607 = vpop.xlane.xlu0 %1606
        %v1608 = vsel %vm977, %v1586, 0.0
        %1609 = vadd.xlane.f32.xlu0 %v1608
        %v1610 = vpop.xlane.xlu0 %1609
        %v1611 = vmul.f32 %v1589, %v1002
        %v1612 = vmul.f32 %v1592, %v1002
        %v1613 = vmul.f32 %v1595, %v1002
        %v1614 = vmul.f32 %v1598, %v1002
        %v1615 = vmul.f32 %v1601, %v1002
        %v1616 = vmul.f32 %v1604, %v1002
        %v1617 = vmul.f32 %v1607, %v1002
        %v1618 = vmul.f32 %v1610, %v1002
        %v1619 = vadd.f32 %v1611, 1e-05
        %v1620 = vadd.f32 %v1612, 1e-05
        %v1621 = vadd.f32 %v1613, 1e-05
        %v1622 = vadd.f32 %v1614, 1e-05
        %v1623 = vadd.f32 %v1615, 1e-05
        %v1624 = vadd.f32 %v1616, 1e-05
        %v1625 = vadd.f32 %v1617, 1e-05
        %v1626 = vadd.f32 %v1618, 1e-05
        %v1627 = vrsqrt.pop %v1619
        %v1628 = vrsqrt.pop %v1620
        %v1629 = vrsqrt.pop %v1621
        %v1630 = vrsqrt.pop %v1622
        %v1631 = vrsqrt.pop %v1623
        %v1632 = vrsqrt.pop %v1624
        %v1633 = vrsqrt.pop %v1625
        %v1634 = vrsqrt.pop %v1626
        %v1635 = vmul.f32 %v1571, %v1627
        %v1636 = vmul.f32 %v1572, %v1628
        %v1637 = vmul.f32 %v1573, %v1629
        %v1638 = vmul.f32 %v1574, %v1630
        %v1639 = vmul.f32 %v1575, %v1631
        %v1640 = vmul.f32 %v1576, %v1632
        %v1641 = vmul.f32 %v1577, %v1633
        %v1642 = vmul.f32 %v1578, %v1634
        %v1644 = vlaneseq
        %v1645 = vshrl.u32 %v1644, 7
        %v1646 = vsub.s32 0, %v1645
        %v1647 = vrot.slane %v1537, %v1646
        %v1649 = vmul.f32 %v1635, %v1647
        %v1650 = vmul.f32 %v1636, %v1647
        %v1651 = vmul.f32 %v1637, %v1647
        %v1652 = vmul.f32 %v1638, %v1647
        %v1653 = vmul.f32 %v1639, %v1647
        %v1654 = vmul.f32 %v1640, %v1647
        %v1655 = vmul.f32 %v1641, %v1647
        %v1656 = vmul.f32 %v1642, %v1647
        %v1658 = vlaneseq
        %v1659 = vshrl.u32 %v1658, 7
        %v1660 = vsub.s32 0, %v1659
        %v1661 = vrot.slane %v1538, %v1660
        %v1663 = vadd.f32 %v1649, %v1661
        %v1664 = vadd.f32 %v1650, %v1661
        %v1665 = vadd.f32 %v1651, %v1661
        %v1666 = vadd.f32 %v1652, %v1661
        %v1667 = vadd.f32 %v1653, %v1661
        %v1668 = vadd.f32 %v1654, %v1661
        %v1669 = vadd.f32 %v1655, %v1661
        %v1670 = vadd.f32 %v1656, %v1661
        %v1671 = vld [vmem:[%s10] sm:$0x1]
        %v1673 = vlaneseq
        %v1674 = vshrl.u32 %v1673, 7
        %v1675 = vsub.s32 0, %v1674
        %v1676 = vrot.slane %v1671, %v1675
        %v1678 = vmul.f32 %v1663, %v1676
        %v1679 = vmul.f32 %v1664, %v1676
        %v1680 = vmul.f32 %v1665, %v1676
        %v1681 = vmul.f32 %v1666, %v1676
        %v1682 = vmul.f32 %v1667, %v1676
        %v1683 = vmul.f32 %v1668, %v1676
        %v1684 = vmul.f32 %v1669, %v1676
        %v1685 = vmul.f32 %v1670, %v1676
        %v1686 = vsel %vm977, %v1678, 0.0
        %1687 = vadd.xlane.f32.xlu0 %v1686
        %v1688 = vpop.xlane.xlu0 %1687
        %v1689 = vsel %vm977, %v1679, 0.0
        %1690 = vadd.xlane.f32.xlu0 %v1689
        %v1691 = vpop.xlane.xlu0 %1690
        %v1692 = vsel %vm977, %v1680, 0.0
        %1693 = vadd.xlane.f32.xlu0 %v1692
        %v1694 = vpop.xlane.xlu0 %1693
        %v1695 = vsel %vm977, %v1681, 0.0
        %1696 = vadd.xlane.f32.xlu0 %v1695
        %v1697 = vpop.xlane.xlu0 %1696
        %v1698 = vsel %vm977, %v1682, 0.0
        %1699 = vadd.xlane.f32.xlu0 %v1698
        %v1700 = vpop.xlane.xlu0 %1699
        %v1701 = vsel %vm977, %v1683, 0.0
        %1702 = vadd.xlane.f32.xlu0 %v1701
        %v1703 = vpop.xlane.xlu0 %1702
        %v1704 = vsel %vm977, %v1684, 0.0
        %1705 = vadd.xlane.f32.xlu0 %v1704
        %v1706 = vpop.xlane.xlu0 %1705
        %v1707 = vsel %vm977, %v1685, 0.0
        %1708 = vadd.xlane.f32.xlu0 %v1707
        %v1709 = vpop.xlane.xlu0 %1708
        %v1710 = vld [vmem:[#allocation4] sm:$0x1]
        %v1712 = vlaneseq
        %v1713 = vshrl.u32 %v1712, 7
        %v1714 = vsub.s32 0, %v1713
        %v1715 = vrot.slane %v1710, %v1714
        %v1717 = vadd.f32 %v1688, %v1715
        %v1718 = vadd.f32 %v1691, %v1715
        %v1719 = vadd.f32 %v1694, %v1715
        %v1720 = vadd.f32 %v1697, %v1715
        %v1721 = vadd.f32 %v1700, %v1715
        %v1722 = vadd.f32 %v1703, %v1715
        %v1723 = vadd.f32 %v1706, %v1715
        %v1724 = vadd.f32 %v1709, %v1715
        %v1725 = vmul.f32 %v1717, %v485
        %v1726 = vmul.f32 %v1718, %v486
        %v1727 = vmul.f32 %v1719, %v494
        %v1728 = vmul.f32 %v1720, %v495
        %v1729 = vmul.f32 %v1721, %v503
        %v1730 = vmul.f32 %v1722, %v504
        %v1731 = vmul.f32 %v1723, %v512
        %v1732 = vmul.f32 %v1724, %v513
        %v1733 = vmul.f32 %v1725, 1.442695
        %v1734 = vpow.pop %v1733
        %v1735 = vmul.f32 %v1726, 1.442695
        %v1736 = vpow.pop %v1735
        %v1737 = vmul.f32 %v1727, 1.442695
        %v1738 = vpow.pop %v1737
        %v1739 = vmul.f32 %v1728, 1.442695
        %v1740 = vpow.pop %v1739
        %v1741 = vmul.f32 %v1729, 1.442695
        %v1742 = vpow.pop %v1741
        %v1743 = vmul.f32 %v1730, 1.442695
        %v1744 = vpow.pop %v1743
        %v1745 = vmul.f32 %v1731, 1.442695
        %v1746 = vpow.pop %v1745
        %v1747 = vmul.f32 %v1732, 1.442695
        %v1748 = vpow.pop %v1747
        %v1749 = vsub.f32 %v1734, 1.0
        %v1750 = vsub.f32 %v1736, 1.0
        %v1751 = vsub.f32 %v1738, 1.0
        %v1752 = vsub.f32 %v1740, 1.0
        %v1753 = vsub.f32 %v1742, 1.0
        %v1754 = vsub.f32 %v1744, 1.0
        %v1755 = vsub.f32 %v1746, 1.0
        %v1756 = vsub.f32 %v1748, 1.0
        %v1757 = vmax.f32 %v1749, 0.0
        %v1758 = vmax.f32 %v1750, 0.0
        %v1759 = vmax.f32 %v1751, 0.0
        %v1760 = vmax.f32 %v1752, 0.0
        %v1761 = vmax.f32 %v1753, 0.0
        %v1762 = vmax.f32 %v1754, 0.0
        %v1763 = vmax.f32 %v1755, 0.0
        %v1764 = vmax.f32 %v1756, 0.0
        %v1765 = vlaneseq
        %v1766 = vand.u32 %v1765, 127
        %vm1767 = vcmp.eq.s32.totalorder %v477, %v1766
        %vm1768 = vcmp.eq.s32.totalorder %v478, %v1766
        %v1769 = vsel %vm1767, 1, 0
        %v1770 = vsel %vm1768, 1, 0
        %v1771 = vcvt.s32.f32 %v1769
        %v1772 = vcvt.s32.f32 %v1770
        %1774 = vset.pattern.permute.xlu0 0
        %1775 = vperm.xlu0 %1774, %v1757
        %v1776 = vpop.permute.xlu0 %1775
        %1779 = vset.pattern.permute.xlu0 0
        %1780 = vperm.xlu0 %1779, %v1758
        %v1781 = vpop.permute.xlu0 %1780
        %v1783 = vmul.f32 %v1776, %v1771
        %v1784 = vmul.f32 %v1781, %v1772
        %vm1785 = vcmask 130048
        %v1786 = vsel %vm1785, %v1783, 0.0
        %v1787 = vsel %vm1785, %v1784, 0.0
        %v1788 = vadd.f32 %v1786, %v1787
        %v1789 = vrot.slane %v1788, 4
        %v1790 = vadd.f32 %v1788, %v1789
        %v1791 = vrot.slane %v1790, 2
        %v1792 = vadd.f32 %v1790, %v1791
        %v1793 = vrot.slane %v1792, 1
        %v1794 = vadd.f32 %v1792, %v1793
        %1796 = vset.pattern.permute.xlu0 0
        %1797 = vperm.xlu0 %1796, %v1759
        %v1798 = vpop.permute.xlu0 %1797
        %1801 = vset.pattern.permute.xlu0 0
        %1802 = vperm.xlu0 %1801, %v1760
        %v1803 = vpop.permute.xlu0 %1802
        %v1805 = vmul.f32 %v1798, %v1771
        %v1806 = vmul.f32 %v1803, %v1772
        %v1807 = vsel %vm1785, %v1805, 0.0
        %v1808 = vsel %vm1785, %v1806, 0.0
        %v1809 = vadd.f32 %v1807, %v1808
        %v1810 = vrot.slane %v1809, 4
        %v1811 = vadd.f32 %v1809, %v1810
        %v1812 = vrot.slane %v1811, 2
        %v1813 = vadd.f32 %v1811, %v1812
        %v1814 = vrot.slane %v1813, 1
        %v1815 = vadd.f32 %v1813, %v1814
        %1817 = vset.pattern.permute.xlu0 0
        %1818 = vperm.xlu0 %1817, %v1761
        %v1819 = vpop.permute.xlu0 %1818
        %1822 = vset.pattern.permute.xlu0 0
        %1823 = vperm.xlu0 %1822, %v1762
        %v1824 = vpop.permute.xlu0 %1823
        %v1826 = vmul.f32 %v1819, %v1771
        %v1827 = vmul.f32 %v1824, %v1772
        %v1828 = vsel %vm1785, %v1826, 0.0
        %v1829 = vsel %vm1785, %v1827, 0.0
        %v1830 = vadd.f32 %v1828, %v1829
        %v1831 = vrot.slane %v1830, 4
        %v1832 = vadd.f32 %v1830, %v1831
        %v1833 = vrot.slane %v1832, 2
        %v1834 = vadd.f32 %v1832, %v1833
        %v1835 = vrot.slane %v1834, 1
        %v1836 = vadd.f32 %v1834, %v1835
        %1838 = vset.pattern.permute.xlu0 0
        %1839 = vperm.xlu0 %1838, %v1763
        %v1840 = vpop.permute.xlu0 %1839
        %1843 = vset.pattern.permute.xlu0 0
        %1844 = vperm.xlu0 %1843, %v1764
        %v1845 = vpop.permute.xlu0 %1844
        %v1847 = vmul.f32 %v1840, %v1771
        %v1848 = vmul.f32 %v1845, %v1772
        %v1849 = vsel %vm1785, %v1847, 0.0
        %v1850 = vsel %vm1785, %v1848, 0.0
        %v1851 = vadd.f32 %v1849, %v1850
        %v1852 = vrot.slane %v1851, 4
        %v1853 = vadd.f32 %v1851, %v1852
        %v1854 = vrot.slane %v1853, 2
        %v1855 = vadd.f32 %v1853, %v1854
        %v1856 = vrot.slane %v1855, 1
        %v1857 = vadd.f32 %v1855, %v1856
        %vm1858 = vcmask 1040384
        %v1859 = vsel %vm1858, %v1794, %v1815
        %vm1860 = vcmask 1041408
        %v1861 = vsel %vm1860, %v1859, %v1836
        %vm1862 = vcmask 1042432
        %v1863 = vsel %vm1862, %v1861, %v1857
        %vm1864 = vcmask 125952
        %1865 = vst.msk [vmem:[%s460] sm:$0xf] %vm1864, %v1863
        %v1866 = vround.ne.pseudo %v1863
        %vm1867 = vcmp.le.s32.totalorder %v477, %v1766
        %vm1868 = vcmp.le.s32.totalorder %v478, %v1766
        %v1869 = vsel %vm1867, 1, 0
        %v1870 = vsel %vm1868, 1, 0
        %v1871 = vcvt.s32.f32 %v1869
        %v1872 = vcvt.s32.f32 %v1870
        %v1873 = vpack.c.bf16 %v1872, %v1871
        %v1874 = vpack.c.bf16 %v1866, %v1866
        %v1876 = vsel %vm1785, %v1874, 0
        %1878 = vmatprep.subr.bf16.mxu0 0
        %1879 = vmatpush1.bf16.msra.mxu0 %v1873
        %1880 = vmatprep.subr.bf16.mxu0 0
        %1881 = vmatpush1.bf16.msra.mxu0 0
        %1882 = vmatprep.subr.bf16.mxu0 0
        %1883 = vmatpush1.bf16.msra.mxu0 0
        %1884 = vmatprep.subr.bf16.mxu0 0
        %1885 = vmatpush1.bf16.msra.mxu0 0
        %1886 = vmatprep.subr.bf16.mxu0 0
        %1887 = vmatpush1.bf16.msra.mxu0 0
        %1888 = vmatprep.subr.bf16.mxu0 0
        %1889 = vmatpush1.bf16.msra.mxu0 0
        %1890 = vmatprep.subr.bf16.mxu0 0
        %1891 = vmatpush1.bf16.msra.mxu0 0
        %1892 = vmatprep.subr.bf16.mxu0 0
        %1893 = vmatpush1.bf16.msra.mxu0 0
        %1894 = vmatprep.subr.bf16.mxu0 0
        %1895 = vmatpush1.bf16.msra.mxu0 0
        %1896 = vmatprep.subr.bf16.mxu0 0
        %1897 = vmatpush1.bf16.msra.mxu0 0
        %1898 = vmatprep.subr.bf16.mxu0 0
        %1899 = vmatpush1.bf16.msra.mxu0 0
        %1900 = vmatprep.subr.bf16.mxu0 0
        %1901 = vmatpush1.bf16.msra.mxu0 0
        %1902 = vmatprep.subr.bf16.mxu0 0
        %1903 = vmatpush1.bf16.msra.mxu0 0
        %1904 = vmatprep.subr.bf16.mxu0 0
        %1905 = vmatpush1.bf16.msra.mxu0 0
        %1906 = vmatprep.subr.bf16.mxu0 0
        %1907 = vmatpush1.bf16.msra.mxu0 0
        %1908 = vmatprep.subr.bf16.mxu0 0
        %1909 = vmatpush1.bf16.msra.mxu0 0
        %1910 = vmatprep.mubr.bf16.mxu0 0
        %1911 = vmatmul.mubr.bf16.gmra.mrb[0].mxu0 %v1876
        %v1912 = vpop.f32.mrb[0].mxu0
        %v1913 = vadd.f32 0.0, %v1912
        %v1914 = vpop.f32.mrb[0].mxu0
        %v1915 = vpop.f32.mrb[0].mxu0
        %v1916 = vpop.f32.mrb[0].mxu0
        %1917 = vdwg.mxu0
        %v1918 = vsub.f32 %v1913, %v1866
        %v1919 = vadd.s32 %v477, 16
        %v1920 = vadd.s32 %v477, 24
        %v1921 = vadd.s32 %v477, 32
        %v1922 = vadd.s32 %v477, 40
        %v1923 = vadd.s32 %v477, 48
        %v1924 = vadd.s32 %v477, 56
        %v1925 = vadd.s32 %v477, 64
        %v1926 = vadd.s32 %v477, 72
        %v1927 = vadd.s32 %v477, 80
        %v1928 = vadd.s32 %v477, 88
        %v1929 = vadd.s32 %v477, 96
        %v1930 = vadd.s32 %v477, 104
        %v1931 = vadd.s32 %v477, 112
        %v1932 = vadd.s32 %v477, 120
        %v1933 = vcvt.s32.f32 %v477
        %v1934 = vcvt.s32.f32 %v478
        %v1935 = vcvt.s32.f32 %v1919
        %v1936 = vcvt.s32.f32 %v1920
        %v1937 = vcvt.s32.f32 %v1921
        %v1938 = vcvt.s32.f32 %v1922
        %v1939 = vcvt.s32.f32 %v1923
        %v1940 = vcvt.s32.f32 %v1924
        %v1941 = vcvt.s32.f32 %v1925
        %v1942 = vcvt.s32.f32 %v1926
        %v1943 = vcvt.s32.f32 %v1927
        %v1944 = vcvt.s32.f32 %v1928
        %v1945 = vcvt.s32.f32 %v1929
        %v1946 = vcvt.s32.f32 %v1930
        %v1947 = vcvt.s32.f32 %v1931
        %v1948 = vcvt.s32.f32 %v1932
        %v1949 = vlaneseq
        %v1950 = vshrl.u32 %v1949, 7
        %v1951 = vsub.s32 0, %v1950
        %v1952 = vrot.slane %v1918, %v1951
        %vm1953 = vcmp.ge.f32.partialorder %v1933, %v1952
        %vm1954 = vcmp.ge.f32.partialorder %v1934, %v1952
        %vm1955 = vcmp.ge.f32.partialorder %v1935, %v1952
        %vm1956 = vcmp.ge.f32.partialorder %v1936, %v1952
        %vm1957 = vcmp.ge.f32.partialorder %v1937, %v1952
        %vm1958 = vcmp.ge.f32.partialorder %v1938, %v1952
        %vm1959 = vcmp.ge.f32.partialorder %v1939, %v1952
        %vm1960 = vcmp.ge.f32.partialorder %v1940, %v1952
        %vm1961 = vcmp.ge.f32.partialorder %v1941, %v1952
        %vm1962 = vcmp.ge.f32.partialorder %v1942, %v1952
        %vm1963 = vcmp.ge.f32.partialorder %v1943, %v1952
        %vm1964 = vcmp.ge.f32.partialorder %v1944, %v1952
        %vm1965 = vcmp.ge.f32.partialorder %v1945, %v1952
        %vm1966 = vcmp.ge.f32.partialorder %v1946, %v1952
        %vm1967 = vcmp.ge.f32.partialorder %v1947, %v1952
        %vm1968 = vcmp.ge.f32.partialorder %v1948, %v1952
        %v1969 = vlaneseq
        %v1970 = vshrl.u32 %v1969, 7
        %v1971 = vsub.s32 0, %v1970
        %v1972 = vrot.slane %v1913, %v1971
        %vm1973 = vcmp.lt.f32.partialorder %v1933, %v1972
        %vm1974 = vcmp.lt.f32.partialorder %v1934, %v1972
        %vm1975 = vcmp.lt.f32.partialorder %v1935, %v1972
        %vm1976 = vcmp.lt.f32.partialorder %v1936, %v1972
        %vm1977 = vcmp.lt.f32.partialorder %v1937, %v1972
        %vm1978 = vcmp.lt.f32.partialorder %v1938, %v1972
        %vm1979 = vcmp.lt.f32.partialorder %v1939, %v1972
        %vm1980 = vcmp.lt.f32.partialorder %v1940, %v1972
        %vm1981 = vcmp.lt.f32.partialorder %v1941, %v1972
        %vm1982 = vcmp.lt.f32.partialorder %v1942, %v1972
        %vm1983 = vcmp.lt.f32.partialorder %v1943, %v1972
        %vm1984 = vcmp.lt.f32.partialorder %v1944, %v1972
        %vm1985 = vcmp.lt.f32.partialorder %v1945, %v1972
        %vm1986 = vcmp.lt.f32.partialorder %v1946, %v1972
        %vm1987 = vcmp.lt.f32.partialorder %v1947, %v1972
        %vm1988 = vcmp.lt.f32.partialorder %v1948, %v1972
        %vm1989 = vmand %vm1953, %vm1973
        %vm1990 = vmand %vm1954, %vm1974
        %vm1991 = vmand %vm1955, %vm1975
        %vm1992 = vmand %vm1956, %vm1976
        %vm1993 = vmand %vm1957, %vm1977
        %vm1994 = vmand %vm1958, %vm1978
        %vm1995 = vmand %vm1959, %vm1979
        %vm1996 = vmand %vm1960, %vm1980
        %vm1997 = vmand %vm1961, %vm1981
        %vm1998 = vmand %vm1962, %vm1982
        %vm1999 = vmand %vm1963, %vm1983
        %vm2000 = vmand %vm1964, %vm1984
        %vm2001 = vmand %vm1965, %vm1985
        %vm2002 = vmand %vm1966, %vm1986
        %vm2003 = vmand %vm1967, %vm1987
        %vm2004 = vmand %vm1968, %vm1988
        %v2005 = vsel %vm1989, 1, 0
        %v2006 = vsel %vm1990, 1, 0
        %v2007 = vsel %vm1991, 1, 0
        %v2008 = vsel %vm1992, 1, 0
        %v2009 = vsel %vm1993, 1, 0
        %v2010 = vsel %vm1994, 1, 0
        %v2011 = vsel %vm1995, 1, 0
        %v2012 = vsel %vm1996, 1, 0
        %v2013 = vsel %vm1997, 1, 0
        %v2014 = vsel %vm1998, 1, 0
        %v2015 = vsel %vm1999, 1, 0
        %v2016 = vsel %vm2000, 1, 0
        %v2017 = vsel %vm2001, 1, 0
        %v2018 = vsel %vm2002, 1, 0
        %v2019 = vsel %vm2003, 1, 0
        %v2020 = vsel %vm2004, 1, 0
        %v2021 = vcvt.s32.f32 %v2005
        %v2022 = vcvt.s32.f32 %v2006
        %v2023 = vcvt.s32.f32 %v2007
        %v2024 = vcvt.s32.f32 %v2008
        %v2025 = vcvt.s32.f32 %v2009
        %v2026 = vcvt.s32.f32 %v2010
        %v2027 = vcvt.s32.f32 %v2011
        %v2028 = vcvt.s32.f32 %v2012
        %v2029 = vcvt.s32.f32 %v2013
        %v2030 = vcvt.s32.f32 %v2014
        %v2031 = vcvt.s32.f32 %v2015
        %v2032 = vcvt.s32.f32 %v2016
        %v2033 = vcvt.s32.f32 %v2017
        %v2034 = vcvt.s32.f32 %v2018
        %v2035 = vcvt.s32.f32 %v2019
        %v2036 = vcvt.s32.f32 %v2020
        %v2038 = vsel %vm1785, %v2021, 0
        %v2041 = vsel %vm1785, %v2022, 0
        %v2044 = vsel %vm1785, %v2023, 0
        %v2047 = vsel %vm1785, %v2024, 0
        %v2050 = vsel %vm1785, %v2025, 0
        %v2053 = vsel %vm1785, %v2026, 0
        %v2056 = vsel %vm1785, %v2027, 0
        %v2059 = vsel %vm1785, %v2028, 0
        %v2062 = vsel %vm1785, %v2029, 0
        %v2065 = vsel %vm1785, %v2030, 0
        %v2068 = vsel %vm1785, %v2031, 0
        %v2071 = vsel %vm1785, %v2032, 0
        %v2074 = vsel %vm1785, %v2033, 0
        %v2077 = vsel %vm1785, %v2034, 0
        %v2080 = vsel %vm1785, %v2035, 0
        %v2083 = vsel %vm1785, %v2036, 0
        %2085 = vmatprep.subr.mxu0 0.0
        %2086 = vmatpush1.msra.mxu0 %v554
        %2087 = vmatprep.subr.mxu0 0.0
        %2088 = vmatpush1.msra.mxu0 %v555
        %2089 = vmatprep.subr.mxu0 0.0
        %2090 = vmatpush1.msra.mxu0 0.0
        %2091 = vmatprep.subr.mxu0 0.0
        %2092 = vmatpush1.msra.mxu0 0.0
        %2093 = vmatprep.subr.mxu0 0.0
        %2094 = vmatpush1.msra.mxu0 0.0
        %2095 = vmatprep.subr.mxu0 0.0
        %2096 = vmatpush1.msra.mxu0 0.0
        %2097 = vmatprep.subr.mxu0 0.0
        %2098 = vmatpush1.msra.mxu0 0.0
        %2099 = vmatprep.subr.mxu0 0.0
        %2100 = vmatpush1.msra.mxu0 0.0
        %2101 = vmatprep.subr.mxu0 0.0
        %2102 = vmatpush1.msra.mxu0 0.0
        %2103 = vmatprep.subr.mxu0 0.0
        %2104 = vmatpush1.msra.mxu0 0.0
        %2105 = vmatprep.subr.mxu0 0.0
        %2106 = vmatpush1.msra.mxu0 0.0
        %2107 = vmatprep.subr.mxu0 0.0
        %2108 = vmatpush1.msra.mxu0 0.0
        %2109 = vmatprep.subr.mxu0 0.0
        %2110 = vmatpush1.msra.mxu0 0.0
        %2111 = vmatprep.subr.mxu0 0.0
        %2112 = vmatpush1.msra.mxu0 0.0
        %2113 = vmatprep.subr.mxu0 0.0
        %2114 = vmatpush1.msra.mxu0 0.0
        %2115 = vmatprep.subr.mxu0 0.0
        %2116 = vmatpush1.msra.mxu0 0.0
        %2117 = vmatprep.subr.mxu0 0.0
        %2118 = vmatpush1.msra.mxu0 0.0
        %2119 = vmatprep.subr.mxu0 0.0
        %2120 = vmatpush1.msra.mxu0 0.0
        %2121 = vmatprep.subr.mxu0 0.0
        %2122 = vmatpush1.msra.mxu0 0.0
        %2123 = vmatprep.subr.mxu0 0.0
        %2124 = vmatpush1.msra.mxu0 0.0
        %2125 = vmatprep.subr.mxu0 0.0
        %2126 = vmatpush1.msra.mxu0 0.0
        %2127 = vmatprep.subr.mxu0 0.0
        %2128 = vmatpush1.msra.mxu0 0.0
        %2129 = vmatprep.subr.mxu0 0.0
        %2130 = vmatpush1.msra.mxu0 0.0
        %2131 = vmatprep.subr.mxu0 0.0
        %2132 = vmatpush1.msra.mxu0 0.0
        %2133 = vmatprep.subr.mxu0 0.0
        %2134 = vmatpush1.msra.mxu0 0.0
        %2135 = vmatprep.subr.mxu0 0.0
        %2136 = vmatpush1.msra.mxu0 0.0
        %2137 = vmatprep.subr.mxu0 0.0
        %2138 = vmatpush1.msra.mxu0 0.0
        %2139 = vmatprep.subr.mxu0 0.0
        %2140 = vmatpush1.msra.mxu0 0.0
        %2141 = vmatprep.subr.mxu0 0.0
        %2142 = vmatpush1.msra.mxu0 0.0
        %2143 = vmatprep.subr.mxu0 0.0
        %2144 = vmatpush1.msra.mxu0 0.0
        %2145 = vmatprep.subr.mxu0 0.0
        %2146 = vmatpush1.msra.mxu0 0.0
        %2147 = vmatprep.subr.mxu0 0.0
        %2148 = vmatpush1.msra.mxu0 0.0
        %2149 = vmatprep.mubr.f32.mxu0 0.0
        %2150 = vmatmul.mubr.f32.gmra.mrb[0].mxu0 %v2038
        %v2151 = vpop.f32.mrb[0].mxu0
        %v2152 = vadd.f32 0.0, %v2151
        %v2153 = vpop.f32.mrb[0].mxu0
        %2154 = vmatprep.mubr.f32.mxu0 0.0
        %2155 = vmatmul.mubr.f32.gmra.mrb[0].mxu0 %v2041
        %v2156 = vpop.f32.mrb[0].mxu0
        %v2157 = vadd.f32 0.0, %v2156
        %v2158 = vpop.f32.mrb[0].mxu0
        %2159 = vmatprep.mubr.f32.mxu0 0.0
        %2160 = vmatmul.mubr.f32.gmra.mrb[0].mxu0 %v2044
        %v2161 = vpop.f32.mrb[0].mxu0
        %v2162 = vadd.f32 0.0, %v2161
        %v2163 = vpop.f32.mrb[0].mxu0
        %2164 = vmatprep.mubr.f32.mxu0 0.0
        %2165 = vmatmul.mubr.f32.gmra.mrb[0].mxu0 %v2047
        %v2166 = vpop.f32.mrb[0].mxu0
        %v2167 = vadd.f32 0.0, %v2166
        %v2168 = vpop.f32.mrb[0].mxu0
        %2169 = vmatprep.mubr.f32.mxu0 0.0
        %2170 = vmatmul.mubr.f32.gmra.mrb[0].mxu0 %v2050
        %v2171 = vpop.f32.mrb[0].mxu0
        %v2172 = vadd.f32 0.0, %v2171
        %v2173 = vpop.f32.mrb[0].mxu0
        %2174 = vmatprep.mubr.f32.mxu0 0.0
        %2175 = vmatmul.mubr.f32.gmra.mrb[0].mxu0 %v2053
        %v2176 = vpop.f32.mrb[0].mxu0
        %v2177 = vadd.f32 0.0, %v2176
        %v2178 = vpop.f32.mrb[0].mxu0
        %2179 = vmatprep.mubr.f32.mxu0 0.0
        %2180 = vmatmul.mubr.f32.gmra.mrb[0].mxu0 %v2056
        %v2181 = vpop.f32.mrb[0].mxu0
        %v2182 = vadd.f32 0.0, %v2181
        %v2183 = vpop.f32.mrb[0].mxu0
        %2184 = vmatprep.mubr.f32.mxu0 0.0
        %2185 = vmatmul.mubr.f32.gmra.mrb[0].mxu0 %v2059
        %v2186 = vpop.f32.mrb[0].mxu0
        %v2187 = vadd.f32 0.0, %v2186
        %v2188 = vpop.f32.mrb[0].mxu0
        %2189 = vmatprep.mubr.f32.mxu0 0.0
        %2190 = vmatmul.mubr.f32.gmra.mrb[0].mxu0 %v2062
        %v2191 = vpop.f32.mrb[0].mxu0
        %v2192 = vadd.f32 0.0, %v2191
        %v2193 = vpop.f32.mrb[0].mxu0
        %2194 = vmatprep.mubr.f32.mxu0 0.0
        %2195 = vmatmul.mubr.f32.gmra.mrb[0].mxu0 %v2065
        %v2196 = vpop.f32.mrb[0].mxu0
        %v2197 = vadd.f32 0.0, %v2196
        %v2198 = vpop.f32.mrb[0].mxu0
        %2199 = vmatprep.mubr.f32.mxu0 0.0
        %2200 = vmatmul.mubr.f32.gmra.mrb[0].mxu0 %v2068
        %v2201 = vpop.f32.mrb[0].mxu0
        %v2202 = vadd.f32 0.0, %v2201
        %v2203 = vpop.f32.mrb[0].mxu0
        %2204 = vmatprep.mubr.f32.mxu0 0.0
        %2205 = vmatmul.mubr.f32.gmra.mrb[0].mxu0 %v2071
        %v2206 = vpop.f32.mrb[0].mxu0
        %v2207 = vadd.f32 0.0, %v2206
        %v2208 = vpop.f32.mrb[0].mxu0
        %2209 = vmatprep.mubr.f32.mxu0 0.0
        %2210 = vmatmul.mubr.f32.gmra.mrb[0].mxu0 %v2074
        %v2211 = vpop.f32.mrb[0].mxu0
        %v2212 = vadd.f32 0.0, %v2211
        %v2213 = vpop.f32.mrb[0].mxu0
        %2214 = vmatprep.mubr.f32.mxu0 0.0
        %2215 = vmatmul.mubr.f32.gmra.mrb[0].mxu0 %v2077
        %v2216 = vpop.f32.mrb[0].mxu0
        %v2217 = vadd.f32 0.0, %v2216
        %v2218 = vpop.f32.mrb[0].mxu0
        %2219 = vmatprep.mubr.f32.mxu0 0.0
        %2220 = vmatmul.mubr.f32.gmra.mrb[0].mxu0 %v2080
        %v2221 = vpop.f32.mrb[0].mxu0
        %v2222 = vadd.f32 0.0, %v2221
        %v2223 = vpop.f32.mrb[0].mxu0
        %2224 = vmatprep.mubr.f32.mxu0 0.0
        %2225 = vmatmul.mubr.f32.gmra.mrb[0].mxu0 %v2083
        %v2226 = vpop.f32.mrb[0].mxu0
        %v2227 = vadd.f32 0.0, %v2226
        %v2228 = vpop.f32.mrb[0].mxu0
        %2229 = vdwg.mxu0
        %v2230 = vlaneseq
        %v2231 = vshrl.u32 %v2230, 7
        %v2232 = vsub.s32 1, %v2231
        %v2233 = vrot.slane %v1918, %v2232
        %vm2234 = vcmp.ge.f32.partialorder %v1933, %v2233
        %vm2235 = vcmp.ge.f32.partialorder %v1934, %v2233
        %vm2236 = vcmp.ge.f32.partialorder %v1935, %v2233
        %vm2237 = vcmp.ge.f32.partialorder %v1936, %v2233
        %vm2238 = vcmp.ge.f32.partialorder %v1937, %v2233
        %vm2239 = vcmp.ge.f32.partialorder %v1938, %v2233
        %vm2240 = vcmp.ge.f32.partialorder %v1939, %v2233
        %vm2241 = vcmp.ge.f32.partialorder %v1940, %v2233
        %vm2242 = vcmp.ge.f32.partialorder %v1941, %v2233
        %vm2243 = vcmp.ge.f32.partialorder %v1942, %v2233
        %vm2244 = vcmp.ge.f32.partialorder %v1943, %v2233
        %vm2245 = vcmp.ge.f32.partialorder %v1944, %v2233
        %vm2246 = vcmp.ge.f32.partialorder %v1945, %v2233
        %vm2247 = vcmp.ge.f32.partialorder %v1946, %v2233
        %vm2248 = vcmp.ge.f32.partialorder %v1947, %v2233
        %vm2249 = vcmp.ge.f32.partialorder %v1948, %v2233
        %v2250 = vlaneseq
        %v2251 = vshrl.u32 %v2250, 7
        %v2252 = vsub.s32 1, %v2251
        %v2253 = vrot.slane %v1913, %v2252
        %vm2254 = vcmp.lt.f32.partialorder %v1933, %v2253
        %vm2255 = vcmp.lt.f32.partialorder %v1934, %v2253
        %vm2256 = vcmp.lt.f32.partialorder %v1935, %v2253
        %vm2257 = vcmp.lt.f32.partialorder %v1936, %v2253
        %vm2258 = vcmp.lt.f32.partialorder %v1937, %v2253
        %vm2259 = vcmp.lt.f32.partialorder %v1938, %v2253
        %vm2260 = vcmp.lt.f32.partialorder %v1939, %v2253
        %vm2261 = vcmp.lt.f32.partialorder %v1940, %v2253
        %vm2262 = vcmp.lt.f32.partialorder %v1941, %v2253
        %vm2263 = vcmp.lt.f32.partialorder %v1942, %v2253
        %vm2264 = vcmp.lt.f32.partialorder %v1943, %v2253
        %vm2265 = vcmp.lt.f32.partialorder %v1944, %v2253
        %vm2266 = vcmp.lt.f32.partialorder %v1945, %v2253
        %vm2267 = vcmp.lt.f32.partialorder %v1946, %v2253
        %vm2268 = vcmp.lt.f32.partialorder %v1947, %v2253
        %vm2269 = vcmp.lt.f32.partialorder %v1948, %v2253
        %vm2270 = vmand %vm2234, %vm2254
        %vm2271 = vmand %vm2235, %vm2255
        %vm2272 = vmand %vm2236, %vm2256
        %vm2273 = vmand %vm2237, %vm2257
        %vm2274 = vmand %vm2238, %vm2258
        %vm2275 = vmand %vm2239, %vm2259
        %vm2276 = vmand %vm2240, %vm2260
        %vm2277 = vmand %vm2241, %vm2261
        %vm2278 = vmand %vm2242, %vm2262
        %vm2279 = vmand %vm2243, %vm2263
        %vm2280 = vmand %vm2244, %vm2264
        %vm2281 = vmand %vm2245, %vm2265
        %vm2282 = vmand %vm2246, %vm2266
        %vm2283 = vmand %vm2247, %vm2267
        %vm2284 = vmand %vm2248, %vm2268
        %vm2285 = vmand %vm2249, %vm2269
        %v2286 = vsel %vm2270, 1, 0
        %v2287 = vsel %vm2271, 1, 0
        %v2288 = vsel %vm2272, 1, 0
        %v2289 = vsel %vm2273, 1, 0
        %v2290 = vsel %vm2274, 1, 0
        %v2291 = vsel %vm2275, 1, 0
        %v2292 = vsel %vm2276, 1, 0
        %v2293 = vsel %vm2277, 1, 0
        %v2294 = vsel %vm2278, 1, 0
        %v2295 = vsel %vm2279, 1, 0
        %v2296 = vsel %vm2280, 1, 0
        %v2297 = vsel %vm2281, 1, 0
        %v2298 = vsel %vm2282, 1, 0
        %v2299 = vsel %vm2283, 1, 0
        %v2300 = vsel %vm2284, 1, 0
        %v2301 = vsel %vm2285, 1, 0
        %v2302 = vcvt.s32.f32 %v2286
        %v2303 = vcvt.s32.f32 %v2287
        %v2304 = vcvt.s32.f32 %v2288
        %v2305 = vcvt.s32.f32 %v2289
        %v2306 = vcvt.s32.f32 %v2290
        %v2307 = vcvt.s32.f32 %v2291
        %v2308 = vcvt.s32.f32 %v2292
        %v2309 = vcvt.s32.f32 %v2293
        %v2310 = vcvt.s32.f32 %v2294
        %v2311 = vcvt.s32.f32 %v2295
        %v2312 = vcvt.s32.f32 %v2296
        %v2313 = vcvt.s32.f32 %v2297
        %v2314 = vcvt.s32.f32 %v2298
        %v2315 = vcvt.s32.f32 %v2299
        %v2316 = vcvt.s32.f32 %v2300
        %v2317 = vcvt.s32.f32 %v2301
        %v2319 = vsel %vm1785, %v2302, 0
        %v2322 = vsel %vm1785, %v2303, 0
        %v2325 = vsel %vm1785, %v2304, 0
        %v2328 = vsel %vm1785, %v2305, 0
        %v2331 = vsel %vm1785, %v2306, 0
        %v2334 = vsel %vm1785, %v2307, 0
        %v2337 = vsel %vm1785, %v2308, 0
        %v2340 = vsel %vm1785, %v2309, 0
        %v2343 = vsel %vm1785, %v2310, 0
        %v2346 = vsel %vm1785, %v2311, 0
        %v2349 = vsel %vm1785, %v2312, 0
        %v2352 = vsel %vm1785, %v2313, 0
        %v2355 = vsel %vm1785, %v2314, 0
        %v2358 = vsel %vm1785, %v2315, 0
        %v2361 = vsel %vm1785, %v2316, 0
        %v2364 = vsel %vm1785, %v2317, 0
        %2366 = vmatprep.subr.mxu0 0.0
        %2367 = vmatpush1.msra.mxu0 %v556
        %2368 = vmatprep.subr.mxu0 0.0
        %2369 = vmatpush1.msra.mxu0 %v557
        %2370 = vmatprep.subr.mxu0 0.0
        %2371 = vmatpush1.msra.mxu0 0.0
        %2372 = vmatprep.subr.mxu0 0.0
        %2373 = vmatpush1.msra.mxu0 0.0
        %2374 = vmatprep.subr.mxu0 0.0
        %2375 = vmatpush1.msra.mxu0 0.0
        %2376 = vmatprep.subr.mxu0 0.0
        %2377 = vmatpush1.msra.mxu0 0.0
        %2378 = vmatprep.subr.mxu0 0.0
        %2379 = vmatpush1.msra.mxu0 0.0
        %2380 = vmatprep.subr.mxu0 0.0
        %2381 = vmatpush1.msra.mxu0 0.0
        %2382 = vmatprep.subr.mxu0 0.0
        %2383 = vmatpush1.msra.mxu0 0.0
        %2384 = vmatprep.subr.mxu0 0.0
        %2385 = vmatpush1.msra.mxu0 0.0
        %2386 = vmatprep.subr.mxu0 0.0
        %2387 = vmatpush1.msra.mxu0 0.0
        %2388 = vmatprep.subr.mxu0 0.0
        %2389 = vmatpush1.msra.mxu0 0.0
        %2390 = vmatprep.subr.mxu0 0.0
        %2391 = vmatpush1.msra.mxu0 0.0
        %2392 = vmatprep.subr.mxu0 0.0
        %2393 = vmatpush1.msra.mxu0 0.0
        %2394 = vmatprep.subr.mxu0 0.0
        %2395 = vmatpush1.msra.mxu0 0.0
        %2396 = vmatprep.subr.mxu0 0.0
        %2397 = vmatpush1.msra.mxu0 0.0
        %2398 = vmatprep.subr.mxu0 0.0
        %2399 = vmatpush1.msra.mxu0 0.0
        %2400 = vmatprep.subr.mxu0 0.0
        %2401 = vmatpush1.msra.mxu0 0.0
        %2402 = vmatprep.subr.mxu0 0.0
        %2403 = vmatpush1.msra.mxu0 0.0
        %2404 = vmatprep.subr.mxu0 0.0
        %2405 = vmatpush1.msra.mxu0 0.0
        %2406 = vmatprep.subr.mxu0 0.0
        %2407 = vmatpush1.msra.mxu0 0.0
        %2408 = vmatprep.subr.mxu0 0.0
        %2409 = vmatpush1.msra.mxu0 0.0
        %2410 = vmatprep.subr.mxu0 0.0
        %2411 = vmatpush1.msra.mxu0 0.0
        %2412 = vmatprep.subr.mxu0 0.0
        %2413 = vmatpush1.msra.mxu0 0.0
        %2414 = vmatprep.subr.mxu0 0.0
        %2415 = vmatpush1.msra.mxu0 0.0
        %2416 = vmatprep.subr.mxu0 0.0
        %2417 = vmatpush1.msra.mxu0 0.0
        %2418 = vmatprep.subr.mxu0 0.0
        %2419 = vmatpush1.msra.mxu0 0.0
        %2420 = vmatprep.subr.mxu0 0.0
        %2421 = vmatpush1.msra.mxu0 0.0
        %2422 = vmatprep.subr.mxu0 0.0
        %2423 = vmatpush1.msra.mxu0 0.0
        %2424 = vmatprep.subr.mxu0 0.0
        %2425 = vmatpush1.msra.mxu0 0.0
        %2426 = vmatprep.subr.mxu0 0.0
        %2427 = vmatpush1.msra.mxu0 0.0
        %2428 = vmatprep.subr.mxu0 0.0
        %2429 = vmatpush1.msra.mxu0 0.0
        %2430 = vmatprep.mubr.f32.mxu0 0.0
        %2431 = vmatmul.mubr.f32.gmra.mrb[0].mxu0 %v2319
        %v2432 = vpop.f32.mrb[0].mxu0
        %v2433 = vadd.f32 0.0, %v2432
        %v2434 = vpop.f32.mrb[0].mxu0
        %2435 = vmatprep.mubr.f32.mxu0 0.0
        %2436 = vmatmul.mubr.f32.gmra.mrb[0].mxu0 %v2322
        %v2437 = vpop.f32.mrb[0].mxu0
        %v2438 = vadd.f32 0.0, %v2437
        %v2439 = vpop.f32.mrb[0].mxu0
        %2440 = vmatprep.mubr.f32.mxu0 0.0
        %2441 = vmatmul.mubr.f32.gmra.mrb[0].mxu0 %v2325
        %v2442 = vpop.f32.mrb[0].mxu0
        %v2443 = vadd.f32 0.0, %v2442
        %v2444 = vpop.f32.mrb[0].mxu0
        %2445 = vmatprep.mubr.f32.mxu0 0.0
        %2446 = vmatmul.mubr.f32.gmra.mrb[0].mxu0 %v2328
        %v2447 = vpop.f32.mrb[0].mxu0
        %v2448 = vadd.f32 0.0, %v2447
        %v2449 = vpop.f32.mrb[0].mxu0
        %2450 = vmatprep.mubr.f32.mxu0 0.0
        %2451 = vmatmul.mubr.f32.gmra.mrb[0].mxu0 %v2331
        %v2452 = vpop.f32.mrb[0].mxu0
        %v2453 = vadd.f32 0.0, %v2452
        %v2454 = vpop.f32.mrb[0].mxu0
        %2455 = vmatprep.mubr.f32.mxu0 0.0
        %2456 = vmatmul.mubr.f32.gmra.mrb[0].mxu0 %v2334
        %v2457 = vpop.f32.mrb[0].mxu0
        %v2458 = vadd.f32 0.0, %v2457
        %v2459 = vpop.f32.mrb[0].mxu0
        %2460 = vmatprep.mubr.f32.mxu0 0.0
        %2461 = vmatmul.mubr.f32.gmra.mrb[0].mxu0 %v2337
        %v2462 = vpop.f32.mrb[0].mxu0
        %v2463 = vadd.f32 0.0, %v2462
        %v2464 = vpop.f32.mrb[0].mxu0
        %2465 = vmatprep.mubr.f32.mxu0 0.0
        %2466 = vmatmul.mubr.f32.gmra.mrb[0].mxu0 %v2340
        %v2467 = vpop.f32.mrb[0].mxu0
        %v2468 = vadd.f32 0.0, %v2467
        %v2469 = vpop.f32.mrb[0].mxu0
        %2470 = vmatprep.mubr.f32.mxu0 0.0
        %2471 = vmatmul.mubr.f32.gmra.mrb[0].mxu0 %v2343
        %v2472 = vpop.f32.mrb[0].mxu0
        %v2473 = vadd.f32 0.0, %v2472
        %v2474 = vpop.f32.mrb[0].mxu0
        %2475 = vmatprep.mubr.f32.mxu0 0.0
        %2476 = vmatmul.mubr.f32.gmra.mrb[0].mxu0 %v2346
        %v2477 = vpop.f32.mrb[0].mxu0
        %v2478 = vadd.f32 0.0, %v2477
        %v2479 = vpop.f32.mrb[0].mxu0
        %2480 = vmatprep.mubr.f32.mxu0 0.0
        %2481 = vmatmul.mubr.f32.gmra.mrb[0].mxu0 %v2349
        %v2482 = vpop.f32.mrb[0].mxu0
        %v2483 = vadd.f32 0.0, %v2482
        %v2484 = vpop.f32.mrb[0].mxu0
        %2485 = vmatprep.mubr.f32.mxu0 0.0
        %2486 = vmatmul.mubr.f32.gmra.mrb[0].mxu0 %v2352
        %v2487 = vpop.f32.mrb[0].mxu0
        %v2488 = vadd.f32 0.0, %v2487
        %v2489 = vpop.f32.mrb[0].mxu0
        %2490 = vmatprep.mubr.f32.mxu0 0.0
        %2491 = vmatmul.mubr.f32.gmra.mrb[0].mxu0 %v2355
        %v2492 = vpop.f32.mrb[0].mxu0
        %v2493 = vadd.f32 0.0, %v2492
        %v2494 = vpop.f32.mrb[0].mxu0
        %2495 = vmatprep.mubr.f32.mxu0 0.0
        %2496 = vmatmul.mubr.f32.gmra.mrb[0].mxu0 %v2358
        %v2497 = vpop.f32.mrb[0].mxu0
        %v2498 = vadd.f32 0.0, %v2497
        %v2499 = vpop.f32.mrb[0].mxu0
        %2500 = vmatprep.mubr.f32.mxu0 0.0
        %2501 = vmatmul.mubr.f32.gmra.mrb[0].mxu0 %v2361
        %v2502 = vpop.f32.mrb[0].mxu0
        %v2503 = vadd.f32 0.0, %v2502
        %v2504 = vpop.f32.mrb[0].mxu0
        %2505 = vmatprep.mubr.f32.mxu0 0.0
        %2506 = vmatmul.mubr.f32.gmra.mrb[0].mxu0 %v2364
        %v2507 = vpop.f32.mrb[0].mxu0
        %v2508 = vadd.f32 0.0, %v2507
        %v2509 = vpop.f32.mrb[0].mxu0
        %2510 = vdwg.mxu0
        %v2511 = vlaneseq
        %v2512 = vshrl.u32 %v2511, 7
        %v2513 = vsub.s32 2, %v2512
        %v2514 = vrot.slane %v1918, %v2513
        %vm2515 = vcmp.ge.f32.partialorder %v1933, %v2514
        %vm2516 = vcmp.ge.f32.partialorder %v1934, %v2514
        %vm2517 = vcmp.ge.f32.partialorder %v1935, %v2514
        %vm2518 = vcmp.ge.f32.partialorder %v1936, %v2514
        %vm2519 = vcmp.ge.f32.partialorder %v1937, %v2514
        %vm2520 = vcmp.ge.f32.partialorder %v1938, %v2514
        %vm2521 = vcmp.ge.f32.partialorder %v1939, %v2514
        %vm2522 = vcmp.ge.f32.partialorder %v1940, %v2514
        %vm2523 = vcmp.ge.f32.partialorder %v1941, %v2514
        %vm2524 = vcmp.ge.f32.partialorder %v1942, %v2514
        %vm2525 = vcmp.ge.f32.partialorder %v1943, %v2514
        %vm2526 = vcmp.ge.f32.partialorder %v1944, %v2514
        %vm2527 = vcmp.ge.f32.partialorder %v1945, %v2514
        %vm2528 = vcmp.ge.f32.partialorder %v1946, %v2514
        %vm2529 = vcmp.ge.f32.partialorder %v1947, %v2514
        %vm2530 = vcmp.ge.f32.partialorder %v1948, %v2514
        %v2531 = vlaneseq
        %v2532 = vshrl.u32 %v2531, 7
        %v2533 = vsub.s32 2, %v2532
        %v2534 = vrot.slane %v1913, %v2533
        %vm2535 = vcmp.lt.f32.partialorder %v1933, %v2534
        %vm2536 = vcmp.lt.f32.partialorder %v1934, %v2534
        %vm2537 = vcmp.lt.f32.partialorder %v1935, %v2534
        %vm2538 = vcmp.lt.f32.partialorder %v1936, %v2534
        %vm2539 = vcmp.lt.f32.partialorder %v1937, %v2534
        %vm2540 = vcmp.lt.f32.partialorder %v1938, %v2534
        %vm2541 = vcmp.lt.f32.partialorder %v1939, %v2534
        %vm2542 = vcmp.lt.f32.partialorder %v1940, %v2534
        %vm2543 = vcmp.lt.f32.partialorder %v1941, %v2534
        %vm2544 = vcmp.lt.f32.partialorder %v1942, %v2534
        %vm2545 = vcmp.lt.f32.partialorder %v1943, %v2534
        %vm2546 = vcmp.lt.f32.partialorder %v1944, %v2534
        %vm2547 = vcmp.lt.f32.partialorder %v1945, %v2534
        %vm2548 = vcmp.lt.f32.partialorder %v1946, %v2534
        %vm2549 = vcmp.lt.f32.partialorder %v1947, %v2534
        %vm2550 = vcmp.lt.f32.partialorder %v1948, %v2534
        %vm2551 = vmand %vm2515, %vm2535
        %vm2552 = vmand %vm2516, %vm2536
        %vm2553 = vmand %vm2517, %vm2537
        %vm2554 = vmand %vm2518, %vm2538
        %vm2555 = vmand %vm2519, %vm2539
        %vm2556 = vmand %vm2520, %vm2540
        %vm2557 = vmand %vm2521, %vm2541
        %vm2558 = vmand %vm2522, %vm2542
        %vm2559 = vmand %vm2523, %vm2543
        %vm2560 = vmand %vm2524, %vm2544
        %vm2561 = vmand %vm2525, %vm2545
        %vm2562 = vmand %vm2526, %vm2546
        %vm2563 = vmand %vm2527, %vm2547
        %vm2564 = vmand %vm2528, %vm2548
        %vm2565 = vmand %vm2529, %vm2549
        %vm2566 = vmand %vm2530, %vm2550
        %v2567 = vsel %vm2551, 1, 0
        %v2568 = vsel %vm2552, 1, 0
        %v2569 = vsel %vm2553, 1, 0
        %v2570 = vsel %vm2554, 1, 0
        %v2571 = vsel %vm2555, 1, 0
        %v2572 = vsel %vm2556, 1, 0
        %v2573 = vsel %vm2557, 1, 0
        %v2574 = vsel %vm2558, 1, 0
        %v2575 = vsel %vm2559, 1, 0
        %v2576 = vsel %vm2560, 1, 0
        %v2577 = vsel %vm2561, 1, 0
        %v2578 = vsel %vm2562, 1, 0
        %v2579 = vsel %vm2563, 1, 0
        %v2580 = vsel %vm2564, 1, 0
        %v2581 = vsel %vm2565, 1, 0
        %v2582 = vsel %vm2566, 1, 0
        %v2583 = vcvt.s32.f32 %v2567
        %v2584 = vcvt.s32.f32 %v2568
        %v2585 = vcvt.s32.f32 %v2569
        %v2586 = vcvt.s32.f32 %v2570
        %v2587 = vcvt.s32.f32 %v2571
        %v2588 = vcvt.s32.f32 %v2572
        %v2589 = vcvt.s32.f32 %v2573
        %v2590 = vcvt.s32.f32 %v2574
        %v2591 = vcvt.s32.f32 %v2575
        %v2592 = vcvt.s32.f32 %v2576
        %v2593 = vcvt.s32.f32 %v2577
        %v2594 = vcvt.s32.f32 %v2578
        %v2595 = vcvt.s32.f32 %v2579
        %v2596 = vcvt.s32.f32 %v2580
        %v2597 = vcvt.s32.f32 %v2581
        %v2598 = vcvt.s32.f32 %v2582
        %v2600 = vsel %vm1785, %v2583, 0
        %v2603 = vsel %vm1785, %v2584, 0
        %v2606 = vsel %vm1785, %v2585, 0
        %v2609 = vsel %vm1785, %v2586, 0
        %v2612 = vsel %vm1785, %v2587, 0
        %v2615 = vsel %vm1785, %v2588, 0
        %v2618 = vsel %vm1785, %v2589, 0
        %v2621 = vsel %vm1785, %v2590, 0
        %v2624 = vsel %vm1785, %v2591, 0
        %v2627 = vsel %vm1785, %v2592, 0
        %v2630 = vsel %vm1785, %v2593, 0
        %v2633 = vsel %vm1785, %v2594, 0
        %v2636 = vsel %vm1785, %v2595, 0
        %v2639 = vsel %vm1785, %v2596, 0
        %v2642 = vsel %vm1785, %v2597, 0
        %v2645 = vsel %vm1785, %v2598, 0
        %2647 = vmatprep.subr.mxu0 0.0
        %2648 = vmatpush1.msra.mxu0 %v558
        %2649 = vmatprep.subr.mxu0 0.0
        %2650 = vmatpush1.msra.mxu0 %v559
        %2651 = vmatprep.subr.mxu0 0.0
        %2652 = vmatpush1.msra.mxu0 0.0
        %2653 = vmatprep.subr.mxu0 0.0
        %2654 = vmatpush1.msra.mxu0 0.0
        %2655 = vmatprep.subr.mxu0 0.0
        %2656 = vmatpush1.msra.mxu0 0.0
        %2657 = vmatprep.subr.mxu0 0.0
        %2658 = vmatpush1.msra.mxu0 0.0
        %2659 = vmatprep.subr.mxu0 0.0
        %2660 = vmatpush1.msra.mxu0 0.0
        %2661 = vmatprep.subr.mxu0 0.0
        %2662 = vmatpush1.msra.mxu0 0.0
        %2663 = vmatprep.subr.mxu0 0.0
        %2664 = vmatpush1.msra.mxu0 0.0
        %2665 = vmatprep.subr.mxu0 0.0
        %2666 = vmatpush1.msra.mxu0 0.0
        %2667 = vmatprep.subr.mxu0 0.0
        %2668 = vmatpush1.msra.mxu0 0.0
        %2669 = vmatprep.subr.mxu0 0.0
        %2670 = vmatpush1.msra.mxu0 0.0
        %2671 = vmatprep.subr.mxu0 0.0
        %2672 = vmatpush1.msra.mxu0 0.0
        %2673 = vmatprep.subr.mxu0 0.0
        %2674 = vmatpush1.msra.mxu0 0.0
        %2675 = vmatprep.subr.mxu0 0.0
        %2676 = vmatpush1.msra.mxu0 0.0
        %2677 = vmatprep.subr.mxu0 0.0
        %2678 = vmatpush1.msra.mxu0 0.0
        %2679 = vmatprep.subr.mxu0 0.0
        %2680 = vmatpush1.msra.mxu0 0.0
        %2681 = vmatprep.subr.mxu0 0.0
        %2682 = vmatpush1.msra.mxu0 0.0
        %2683 = vmatprep.subr.mxu0 0.0
        %2684 = vmatpush1.msra.mxu0 0.0
        %2685 = vmatprep.subr.mxu0 0.0
        %2686 = vmatpush1.msra.mxu0 0.0
        %2687 = vmatprep.subr.mxu0 0.0
        %2688 = vmatpush1.msra.mxu0 0.0
        %2689 = vmatprep.subr.mxu0 0.0
        %2690 = vmatpush1.msra.mxu0 0.0
        %2691 = vmatprep.subr.mxu0 0.0
        %2692 = vmatpush1.msra.mxu0 0.0
        %2693 = vmatprep.subr.mxu0 0.0
        %2694 = vmatpush1.msra.mxu0 0.0
        %2695 = vmatprep.subr.mxu0 0.0
        %2696 = vmatpush1.msra.mxu0 0.0
        %2697 = vmatprep.subr.mxu0 0.0
        %2698 = vmatpush1.msra.mxu0 0.0
        %2699 = vmatprep.subr.mxu0 0.0
        %2700 = vmatpush1.msra.mxu0 0.0
        %2701 = vmatprep.subr.mxu0 0.0
        %2702 = vmatpush1.msra.mxu0 0.0
        %2703 = vmatprep.subr.mxu0 0.0
        %2704 = vmatpush1.msra.mxu0 0.0
        %2705 = vmatprep.subr.mxu0 0.0
        %2706 = vmatpush1.msra.mxu0 0.0
        %2707 = vmatprep.subr.mxu0 0.0
        %2708 = vmatpush1.msra.mxu0 0.0
        %2709 = vmatprep.subr.mxu0 0.0
        %2710 = vmatpush1.msra.mxu0 0.0
        %2711 = vmatprep.mubr.f32.mxu0 0.0
        %2712 = vmatmul.mubr.f32.gmra.mrb[0].mxu0 %v2600
        %v2713 = vpop.f32.mrb[0].mxu0
        %v2714 = vadd.f32 0.0, %v2713
        %v2715 = vpop.f32.mrb[0].mxu0
        %2716 = vmatprep.mubr.f32.mxu0 0.0
        %2717 = vmatmul.mubr.f32.gmra.mrb[0].mxu0 %v2603
        %v2718 = vpop.f32.mrb[0].mxu0
        %v2719 = vadd.f32 0.0, %v2718
        %v2720 = vpop.f32.mrb[0].mxu0
        %2721 = vmatprep.mubr.f32.mxu0 0.0
        %2722 = vmatmul.mubr.f32.gmra.mrb[0].mxu0 %v2606
        %v2723 = vpop.f32.mrb[0].mxu0
        %v2724 = vadd.f32 0.0, %v2723
        %v2725 = vpop.f32.mrb[0].mxu0
        %2726 = vmatprep.mubr.f32.mxu0 0.0
        %2727 = vmatmul.mubr.f32.gmra.mrb[0].mxu0 %v2609
        %v2728 = vpop.f32.mrb[0].mxu0
        %v2729 = vadd.f32 0.0, %v2728
        %v2730 = vpop.f32.mrb[0].mxu0
        %2731 = vmatprep.mubr.f32.mxu0 0.0
        %2732 = vmatmul.mubr.f32.gmra.mrb[0].mxu0 %v2612
        %v2733 = vpop.f32.mrb[0].mxu0
        %v2734 = vadd.f32 0.0, %v2733
        %v2735 = vpop.f32.mrb[0].mxu0
        %2736 = vmatprep.mubr.f32.mxu0 0.0
        %2737 = vmatmul.mubr.f32.gmra.mrb[0].mxu0 %v2615
        %v2738 = vpop.f32.mrb[0].mxu0
        %v2739 = vadd.f32 0.0, %v2738
        %v2740 = vpop.f32.mrb[0].mxu0
        %2741 = vmatprep.mubr.f32.mxu0 0.0
        %2742 = vmatmul.mubr.f32.gmra.mrb[0].mxu0 %v2618
        %v2743 = vpop.f32.mrb[0].mxu0
        %v2744 = vadd.f32 0.0, %v2743
        %v2745 = vpop.f32.mrb[0].mxu0
        %2746 = vmatprep.mubr.f32.mxu0 0.0
        %2747 = vmatmul.mubr.f32.gmra.mrb[0].mxu0 %v2621
        %v2748 = vpop.f32.mrb[0].mxu0
        %v2749 = vadd.f32 0.0, %v2748
        %v2750 = vpop.f32.mrb[0].mxu0
        %2751 = vmatprep.mubr.f32.mxu0 0.0
        %2752 = vmatmul.mubr.f32.gmra.mrb[0].mxu0 %v2624
        %v2753 = vpop.f32.mrb[0].mxu0
        %v2754 = vadd.f32 0.0, %v2753
        %v2755 = vpop.f32.mrb[0].mxu0
        %2756 = vmatprep.mubr.f32.mxu0 0.0
        %2757 = vmatmul.mubr.f32.gmra.mrb[0].mxu0 %v2627
        %v2758 = vpop.f32.mrb[0].mxu0
        %v2759 = vadd.f32 0.0, %v2758
        %v2760 = vpop.f32.mrb[0].mxu0
        %2761 = vmatprep.mubr.f32.mxu0 0.0
        %2762 = vmatmul.mubr.f32.gmra.mrb[0].mxu0 %v2630
        %v2763 = vpop.f32.mrb[0].mxu0
        %v2764 = vadd.f32 0.0, %v2763
        %v2765 = vpop.f32.mrb[0].mxu0
        %2766 = vmatprep.mubr.f32.mxu0 0.0
        %2767 = vmatmul.mubr.f32.gmra.mrb[0].mxu0 %v2633
        %v2768 = vpop.f32.mrb[0].mxu0
        %v2769 = vadd.f32 0.0, %v2768
        %v2770 = vpop.f32.mrb[0].mxu0
        %2771 = vmatprep.mubr.f32.mxu0 0.0
        %2772 = vmatmul.mubr.f32.gmra.mrb[0].mxu0 %v2636
        %v2773 = vpop.f32.mrb[0].mxu0
        %v2774 = vadd.f32 0.0, %v2773
        %v2775 = vpop.f32.mrb[0].mxu0
        %2776 = vmatprep.mubr.f32.mxu0 0.0
        %2777 = vmatmul.mubr.f32.gmra.mrb[0].mxu0 %v2639
        %v2778 = vpop.f32.mrb[0].mxu0
        %v2779 = vadd.f32 0.0, %v2778
        %v2780 = vpop.f32.mrb[0].mxu0
        %2781 = vmatprep.mubr.f32.mxu0 0.0
        %2782 = vmatmul.mubr.f32.gmra.mrb[0].mxu0 %v2642
        %v2783 = vpop.f32.mrb[0].mxu0
        %v2784 = vadd.f32 0.0, %v2783
        %v2785 = vpop.f32.mrb[0].mxu0
        %2786 = vmatprep.mubr.f32.mxu0 0.0
        %2787 = vmatmul.mubr.f32.gmra.mrb[0].mxu0 %v2645
        %v2788 = vpop.f32.mrb[0].mxu0
        %v2789 = vadd.f32 0.0, %v2788
        %v2790 = vpop.f32.mrb[0].mxu0
        %2791 = vdwg.mxu0
        %v2792 = vlaneseq
        %v2793 = vshrl.u32 %v2792, 7
        %v2794 = vsub.s32 3, %v2793
        %v2795 = vrot.slane %v1918, %v2794
        %vm2796 = vcmp.ge.f32.partialorder %v1933, %v2795
        %vm2797 = vcmp.ge.f32.partialorder %v1934, %v2795
        %vm2798 = vcmp.ge.f32.partialorder %v1935, %v2795
        %vm2799 = vcmp.ge.f32.partialorder %v1936, %v2795
        %vm2800 = vcmp.ge.f32.partialorder %v1937, %v2795
        %vm2801 = vcmp.ge.f32.partialorder %v1938, %v2795
        %vm2802 = vcmp.ge.f32.partialorder %v1939, %v2795
        %vm2803 = vcmp.ge.f32.partialorder %v1940, %v2795
        %vm2804 = vcmp.ge.f32.partialorder %v1941, %v2795
        %vm2805 = vcmp.ge.f32.partialorder %v1942, %v2795
        %vm2806 = vcmp.ge.f32.partialorder %v1943, %v2795
        %vm2807 = vcmp.ge.f32.partialorder %v1944, %v2795
        %vm2808 = vcmp.ge.f32.partialorder %v1945, %v2795
        %vm2809 = vcmp.ge.f32.partialorder %v1946, %v2795
        %vm2810 = vcmp.ge.f32.partialorder %v1947, %v2795
        %vm2811 = vcmp.ge.f32.partialorder %v1948, %v2795
        %v2812 = vlaneseq
        %v2813 = vshrl.u32 %v2812, 7
        %v2814 = vsub.s32 3, %v2813
        %v2815 = vrot.slane %v1913, %v2814
        %vm2816 = vcmp.lt.f32.partialorder %v1933, %v2815
        %vm2817 = vcmp.lt.f32.partialorder %v1934, %v2815
        %vm2818 = vcmp.lt.f32.partialorder %v1935, %v2815
        %vm2819 = vcmp.lt.f32.partialorder %v1936, %v2815
        %vm2820 = vcmp.lt.f32.partialorder %v1937, %v2815
        %vm2821 = vcmp.lt.f32.partialorder %v1938, %v2815
        %vm2822 = vcmp.lt.f32.partialorder %v1939, %v2815
        %vm2823 = vcmp.lt.f32.partialorder %v1940, %v2815
        %vm2824 = vcmp.lt.f32.partialorder %v1941, %v2815
        %vm2825 = vcmp.lt.f32.partialorder %v1942, %v2815
        %vm2826 = vcmp.lt.f32.partialorder %v1943, %v2815
        %vm2827 = vcmp.lt.f32.partialorder %v1944, %v2815
        %vm2828 = vcmp.lt.f32.partialorder %v1945, %v2815
        %vm2829 = vcmp.lt.f32.partialorder %v1946, %v2815
        %vm2830 = vcmp.lt.f32.partialorder %v1947, %v2815
        %vm2831 = vcmp.lt.f32.partialorder %v1948, %v2815
        %vm2832 = vmand %vm2796, %vm2816
        %vm2833 = vmand %vm2797, %vm2817
        %vm2834 = vmand %vm2798, %vm2818
        %vm2835 = vmand %vm2799, %vm2819
        %vm2836 = vmand %vm2800, %vm2820
        %vm2837 = vmand %vm2801, %vm2821
        %vm2838 = vmand %vm2802, %vm2822
        %vm2839 = vmand %vm2803, %vm2823
        %vm2840 = vmand %vm2804, %vm2824
        %vm2841 = vmand %vm2805, %vm2825
        %vm2842 = vmand %vm2806, %vm2826
        %vm2843 = vmand %vm2807, %vm2827
        %vm2844 = vmand %vm2808, %vm2828
        %vm2845 = vmand %vm2809, %vm2829
        %vm2846 = vmand %vm2810, %vm2830
        %vm2847 = vmand %vm2811, %vm2831
        %v2848 = vsel %vm2832, 1, 0
        %v2849 = vsel %vm2833, 1, 0
        %v2850 = vsel %vm2834, 1, 0
        %v2851 = vsel %vm2835, 1, 0
        %v2852 = vsel %vm2836, 1, 0
        %v2853 = vsel %vm2837, 1, 0
        %v2854 = vsel %vm2838, 1, 0
        %v2855 = vsel %vm2839, 1, 0
        %v2856 = vsel %vm2840, 1, 0
        %v2857 = vsel %vm2841, 1, 0
        %v2858 = vsel %vm2842, 1, 0
        %v2859 = vsel %vm2843, 1, 0
        %v2860 = vsel %vm2844, 1, 0
        %v2861 = vsel %vm2845, 1, 0
        %v2862 = vsel %vm2846, 1, 0
        %v2863 = vsel %vm2847, 1, 0
        %v2864 = vcvt.s32.f32 %v2848
        %v2865 = vcvt.s32.f32 %v2849
        %v2866 = vcvt.s32.f32 %v2850
        %v2867 = vcvt.s32.f32 %v2851
        %v2868 = vcvt.s32.f32 %v2852
        %v2869 = vcvt.s32.f32 %v2853
        %v2870 = vcvt.s32.f32 %v2854
        %v2871 = vcvt.s32.f32 %v2855
        %v2872 = vcvt.s32.f32 %v2856
        %v2873 = vcvt.s32.f32 %v2857
        %v2874 = vcvt.s32.f32 %v2858
        %v2875 = vcvt.s32.f32 %v2859
        %v2876 = vcvt.s32.f32 %v2860
        %v2877 = vcvt.s32.f32 %v2861
        %v2878 = vcvt.s32.f32 %v2862
        %v2879 = vcvt.s32.f32 %v2863
        %v2881 = vsel %vm1785, %v2864, 0
        %v2884 = vsel %vm1785, %v2865, 0
        %v2887 = vsel %vm1785, %v2866, 0
        %v2890 = vsel %vm1785, %v2867, 0
        %v2893 = vsel %vm1785, %v2868, 0
        %v2896 = vsel %vm1785, %v2869, 0
        %v2899 = vsel %vm1785, %v2870, 0
        %v2902 = vsel %vm1785, %v2871, 0
        %v2905 = vsel %vm1785, %v2872, 0
        %v2908 = vsel %vm1785, %v2873, 0
        %v2911 = vsel %vm1785, %v2874, 0
        %v2914 = vsel %vm1785, %v2875, 0
        %v2917 = vsel %vm1785, %v2876, 0
        %v2920 = vsel %vm1785, %v2877, 0
        %v2923 = vsel %vm1785, %v2878, 0
        %v2926 = vsel %vm1785, %v2879, 0
        %2928 = vmatprep.subr.mxu0 0.0
        %2929 = vmatpush1.msra.mxu0 %v560
        %2930 = vmatprep.subr.mxu0 0.0
        %2931 = vmatpush1.msra.mxu0 %v561
        %2932 = vmatprep.subr.mxu0 0.0
        %2933 = vmatpush1.msra.mxu0 0.0
        %2934 = vmatprep.subr.mxu0 0.0
        %2935 = vmatpush1.msra.mxu0 0.0
        %2936 = vmatprep.subr.mxu0 0.0
        %2937 = vmatpush1.msra.mxu0 0.0
        %2938 = vmatprep.subr.mxu0 0.0
        %2939 = vmatpush1.msra.mxu0 0.0
        %2940 = vmatprep.subr.mxu0 0.0
        %2941 = vmatpush1.msra.mxu0 0.0
        %2942 = vmatprep.subr.mxu0 0.0
        %2943 = vmatpush1.msra.mxu0 0.0
        %2944 = vmatprep.subr.mxu0 0.0
        %2945 = vmatpush1.msra.mxu0 0.0
        %2946 = vmatprep.subr.mxu0 0.0
        %2947 = vmatpush1.msra.mxu0 0.0
        %2948 = vmatprep.subr.mxu0 0.0
        %2949 = vmatpush1.msra.mxu0 0.0
        %2950 = vmatprep.subr.mxu0 0.0
        %2951 = vmatpush1.msra.mxu0 0.0
        %2952 = vmatprep.subr.mxu0 0.0
        %2953 = vmatpush1.msra.mxu0 0.0
        %2954 = vmatprep.subr.mxu0 0.0
        %2955 = vmatpush1.msra.mxu0 0.0
        %2956 = vmatprep.subr.mxu0 0.0
        %2957 = vmatpush1.msra.mxu0 0.0
        %2958 = vmatprep.subr.mxu0 0.0
        %2959 = vmatpush1.msra.mxu0 0.0
        %2960 = vmatprep.subr.mxu0 0.0
        %2961 = vmatpush1.msra.mxu0 0.0
        %2962 = vmatprep.subr.mxu0 0.0
        %2963 = vmatpush1.msra.mxu0 0.0
        %2964 = vmatprep.subr.mxu0 0.0
        %2965 = vmatpush1.msra.mxu0 0.0
        %2966 = vmatprep.subr.mxu0 0.0
        %2967 = vmatpush1.msra.mxu0 0.0
        %2968 = vmatprep.subr.mxu0 0.0
        %2969 = vmatpush1.msra.mxu0 0.0
        %2970 = vmatprep.subr.mxu0 0.0
        %2971 = vmatpush1.msra.mxu0 0.0
        %2972 = vmatprep.subr.mxu0 0.0
        %2973 = vmatpush1.msra.mxu0 0.0
        %2974 = vmatprep.subr.mxu0 0.0
        %2975 = vmatpush1.msra.mxu0 0.0
        %2976 = vmatprep.subr.mxu0 0.0
        %2977 = vmatpush1.msra.mxu0 0.0
        %2978 = vmatprep.subr.mxu0 0.0
        %2979 = vmatpush1.msra.mxu0 0.0
        %2980 = vmatprep.subr.mxu0 0.0
        %2981 = vmatpush1.msra.mxu0 0.0
        %2982 = vmatprep.subr.mxu0 0.0
        %2983 = vmatpush1.msra.mxu0 0.0
        %2984 = vmatprep.subr.mxu0 0.0
        %2985 = vmatpush1.msra.mxu0 0.0
        %2986 = vmatprep.subr.mxu0 0.0
        %2987 = vmatpush1.msra.mxu0 0.0
        %2988 = vmatprep.subr.mxu0 0.0
        %2989 = vmatpush1.msra.mxu0 0.0
        %2990 = vmatprep.subr.mxu0 0.0
        %2991 = vmatpush1.msra.mxu0 0.0
        %2992 = vmatprep.mubr.f32.mxu0 0.0
        %2993 = vmatmul.mubr.f32.gmra.mrb[0].mxu0 %v2881
        %v2994 = vpop.f32.mrb[0].mxu0
        %v2995 = vadd.f32 0.0, %v2994
        %v2996 = vpop.f32.mrb[0].mxu0
        %2997 = vmatprep.mubr.f32.mxu0 0.0
        %2998 = vmatmul.mubr.f32.gmra.mrb[0].mxu0 %v2884
        %v2999 = vpop.f32.mrb[0].mxu0
        %v3000 = vadd.f32 0.0, %v2999
        %v3001 = vpop.f32.mrb[0].mxu0
        %3002 = vmatprep.mubr.f32.mxu0 0.0
        %3003 = vmatmul.mubr.f32.gmra.mrb[0].mxu0 %v2887
        %v3004 = vpop.f32.mrb[0].mxu0
        %v3005 = vadd.f32 0.0, %v3004
        %v3006 = vpop.f32.mrb[0].mxu0
        %3007 = vmatprep.mubr.f32.mxu0 0.0
        %3008 = vmatmul.mubr.f32.gmra.mrb[0].mxu0 %v2890
        %v3009 = vpop.f32.mrb[0].mxu0
        %v3010 = vadd.f32 0.0, %v3009
        %v3011 = vpop.f32.mrb[0].mxu0
        %3012 = vmatprep.mubr.f32.mxu0 0.0
        %3013 = vmatmul.mubr.f32.gmra.mrb[0].mxu0 %v2893
        %v3014 = vpop.f32.mrb[0].mxu0
        %v3015 = vadd.f32 0.0, %v3014
        %v3016 = vpop.f32.mrb[0].mxu0
        %3017 = vmatprep.mubr.f32.mxu0 0.0
        %3018 = vmatmul.mubr.f32.gmra.mrb[0].mxu0 %v2896
        %v3019 = vpop.f32.mrb[0].mxu0
        %v3020 = vadd.f32 0.0, %v3019
        %v3021 = vpop.f32.mrb[0].mxu0
        %3022 = vmatprep.mubr.f32.mxu0 0.0
        %3023 = vmatmul.mubr.f32.gmra.mrb[0].mxu0 %v2899
        %v3024 = vpop.f32.mrb[0].mxu0
        %v3025 = vadd.f32 0.0, %v3024
        %v3026 = vpop.f32.mrb[0].mxu0
        %3027 = vmatprep.mubr.f32.mxu0 0.0
        %3028 = vmatmul.mubr.f32.gmra.mrb[0].mxu0 %v2902
        %v3029 = vpop.f32.mrb[0].mxu0
        %v3030 = vadd.f32 0.0, %v3029
        %v3031 = vpop.f32.mrb[0].mxu0
        %3032 = vmatprep.mubr.f32.mxu0 0.0
        %3033 = vmatmul.mubr.f32.gmra.mrb[0].mxu0 %v2905
        %v3034 = vpop.f32.mrb[0].mxu0
        %v3035 = vadd.f32 0.0, %v3034
        %v3036 = vpop.f32.mrb[0].mxu0
        %3037 = vmatprep.mubr.f32.mxu0 0.0
        %3038 = vmatmul.mubr.f32.gmra.mrb[0].mxu0 %v2908
        %v3039 = vpop.f32.mrb[0].mxu0
        %v3040 = vadd.f32 0.0, %v3039
        %v3041 = vpop.f32.mrb[0].mxu0
        %3042 = vmatprep.mubr.f32.mxu0 0.0
        %3043 = vmatmul.mubr.f32.gmra.mrb[0].mxu0 %v2911
        %v3044 = vpop.f32.mrb[0].mxu0
        %v3045 = vadd.f32 0.0, %v3044
        %v3046 = vpop.f32.mrb[0].mxu0
        %3047 = vmatprep.mubr.f32.mxu0 0.0
        %3048 = vmatmul.mubr.f32.gmra.mrb[0].mxu0 %v2914
        %v3049 = vpop.f32.mrb[0].mxu0
        %v3050 = vadd.f32 0.0, %v3049
        %v3051 = vpop.f32.mrb[0].mxu0
        %3052 = vmatprep.mubr.f32.mxu0 0.0
        %3053 = vmatmul.mubr.f32.gmra.mrb[0].mxu0 %v2917
        %v3054 = vpop.f32.mrb[0].mxu0
        %v3055 = vadd.f32 0.0, %v3054
        %v3056 = vpop.f32.mrb[0].mxu0
        %3057 = vmatprep.mubr.f32.mxu0 0.0
        %3058 = vmatmul.mubr.f32.gmra.mrb[0].mxu0 %v2920
        %v3059 = vpop.f32.mrb[0].mxu0
        %v3060 = vadd.f32 0.0, %v3059
        %v3061 = vpop.f32.mrb[0].mxu0
        %3062 = vmatprep.mubr.f32.mxu0 0.0
        %3063 = vmatmul.mubr.f32.gmra.mrb[0].mxu0 %v2923
        %v3064 = vpop.f32.mrb[0].mxu0
        %v3065 = vadd.f32 0.0, %v3064
        %v3066 = vpop.f32.mrb[0].mxu0
        %3067 = vmatprep.mubr.f32.mxu0 0.0
        %3068 = vmatmul.mubr.f32.gmra.mrb[0].mxu0 %v2926
        %v3069 = vpop.f32.mrb[0].mxu0
        %v3070 = vadd.f32 0.0, %v3069
        %v3071 = vpop.f32.mrb[0].mxu0
        %3072 = vdwg.mxu0
        %3089 = vrot.lane.b32.xlu0 %v2433, 32
        %v3090 = vpop.permute.xlu0 %3089
        %3091 = vrot.lane.b32.xlu0 %v2438, 32
        %v3092 = vpop.permute.xlu0 %3091
        %3093 = vrot.lane.b32.xlu0 %v2443, 32
        %v3094 = vpop.permute.xlu0 %3093
        %3095 = vrot.lane.b32.xlu0 %v2448, 32
        %v3096 = vpop.permute.xlu0 %3095
        %3097 = vrot.lane.b32.xlu0 %v2453, 32
        %v3098 = vpop.permute.xlu0 %3097
        %3099 = vrot.lane.b32.xlu0 %v2458, 32
        %v3100 = vpop.permute.xlu0 %3099
        %3101 = vrot.lane.b32.xlu0 %v2463, 32
        %v3102 = vpop.permute.xlu0 %3101
        %3103 = vrot.lane.b32.xlu0 %v2468, 32
        %v3104 = vpop.permute.xlu0 %3103
        %3105 = vrot.lane.b32.xlu0 %v2473, 32
        %v3106 = vpop.permute.xlu0 %3105
        %3107 = vrot.lane.b32.xlu0 %v2478, 32
        %v3108 = vpop.permute.xlu0 %3107
        %3109 = vrot.lane.b32.xlu0 %v2483, 32
        %v3110 = vpop.permute.xlu0 %3109
        %3111 = vrot.lane.b32.xlu0 %v2488, 32
        %v3112 = vpop.permute.xlu0 %3111
        %3113 = vrot.lane.b32.xlu0 %v2493, 32
        %v3114 = vpop.permute.xlu0 %3113
        %3115 = vrot.lane.b32.xlu0 %v2498, 32
        %v3116 = vpop.permute.xlu0 %3115
        %3117 = vrot.lane.b32.xlu0 %v2503, 32
        %v3118 = vpop.permute.xlu0 %3117
        %3119 = vrot.lane.b32.xlu0 %v2508, 32
        %v3120 = vpop.permute.xlu0 %3119
        %3153 = vrot.lane.b32.xlu0 %v2714, 64
        %v3154 = vpop.permute.xlu0 %3153
        %3155 = vrot.lane.b32.xlu0 %v2719, 64
        %v3156 = vpop.permute.xlu0 %3155
        %3157 = vrot.lane.b32.xlu0 %v2724, 64
        %v3158 = vpop.permute.xlu0 %3157
        %3159 = vrot.lane.b32.xlu0 %v2729, 64
        %v3160 = vpop.permute.xlu0 %3159
        %3161 = vrot.lane.b32.xlu0 %v2734, 64
        %v3162 = vpop.permute.xlu0 %3161
        %3163 = vrot.lane.b32.xlu0 %v2739, 64
        %v3164 = vpop.permute.xlu0 %3163
        %3165 = vrot.lane.b32.xlu0 %v2744, 64
        %v3166 = vpop.permute.xlu0 %3165
        %3167 = vrot.lane.b32.xlu0 %v2749, 64
        %v3168 = vpop.permute.xlu0 %3167
        %3169 = vrot.lane.b32.xlu0 %v2754, 64
        %v3170 = vpop.permute.xlu0 %3169
        %3171 = vrot.lane.b32.xlu0 %v2759, 64
        %v3172 = vpop.permute.xlu0 %3171
        %3173 = vrot.lane.b32.xlu0 %v2764, 64
        %v3174 = vpop.permute.xlu0 %3173
        %3175 = vrot.lane.b32.xlu0 %v2769, 64
        %v3176 = vpop.permute.xlu0 %3175
        %3177 = vrot.lane.b32.xlu0 %v2774, 64
        %v3178 = vpop.permute.xlu0 %3177
        %3179 = vrot.lane.b32.xlu0 %v2779, 64
        %v3180 = vpop.permute.xlu0 %3179
        %3181 = vrot.lane.b32.xlu0 %v2784, 64
        %v3182 = vpop.permute.xlu0 %3181
        %3183 = vrot.lane.b32.xlu0 %v2789, 64
        %v3184 = vpop.permute.xlu0 %3183
        %3217 = vrot.lane.b32.xlu0 %v2995, 96
        %v3218 = vpop.permute.xlu0 %3217
        %3219 = vrot.lane.b32.xlu0 %v3000, 96
        %v3220 = vpop.permute.xlu0 %3219
        %3221 = vrot.lane.b32.xlu0 %v3005, 96
        %v3222 = vpop.permute.xlu0 %3221
        %3223 = vrot.lane.b32.xlu0 %v3010, 96
        %v3224 = vpop.permute.xlu0 %3223
        %3225 = vrot.lane.b32.xlu0 %v3015, 96
        %v3226 = vpop.permute.xlu0 %3225
        %3227 = vrot.lane.b32.xlu0 %v3020, 96
        %v3228 = vpop.permute.xlu0 %3227
        %3229 = vrot.lane.b32.xlu0 %v3025, 96
        %v3230 = vpop.permute.xlu0 %3229
        %3231 = vrot.lane.b32.xlu0 %v3030, 96
        %v3232 = vpop.permute.xlu0 %3231
        %3233 = vrot.lane.b32.xlu0 %v3035, 96
        %v3234 = vpop.permute.xlu0 %3233
        %3235 = vrot.lane.b32.xlu0 %v3040, 96
        %v3236 = vpop.permute.xlu0 %3235
        %3237 = vrot.lane.b32.xlu0 %v3045, 96
        %v3238 = vpop.permute.xlu0 %3237
        %3239 = vrot.lane.b32.xlu0 %v3050, 96
        %v3240 = vpop.permute.xlu0 %3239
        %3241 = vrot.lane.b32.xlu0 %v3055, 96
        %v3242 = vpop.permute.xlu0 %3241
        %3243 = vrot.lane.b32.xlu0 %v3060, 96
        %v3244 = vpop.permute.xlu0 %3243
        %3245 = vrot.lane.b32.xlu0 %v3065, 96
        %v3246 = vpop.permute.xlu0 %3245
        %3247 = vrot.lane.b32.xlu0 %v3070, 96
        %v3248 = vpop.permute.xlu0 %3247
        %v3265 = vsel %vm665, %v2152, %v3090
        %v3266 = vsel %vm665, %v2157, %v3092
        %v3267 = vsel %vm665, %v2162, %v3094
        %v3268 = vsel %vm665, %v2167, %v3096
        %v3269 = vsel %vm665, %v2172, %v3098
        %v3270 = vsel %vm665, %v2177, %v3100
        %v3271 = vsel %vm665, %v2182, %v3102
        %v3272 = vsel %vm665, %v2187, %v3104
        %v3273 = vsel %vm665, %v2192, %v3106
        %v3274 = vsel %vm665, %v2197, %v3108
        %v3275 = vsel %vm665, %v2202, %v3110
        %v3276 = vsel %vm665, %v2207, %v3112
        %v3277 = vsel %vm665, %v2212, %v3114
        %v3278 = vsel %vm665, %v2217, %v3116
        %v3279 = vsel %vm665, %v2222, %v3118
        %v3280 = vsel %vm665, %v2227, %v3120
        %v3281 = vsel %vm977, %v3265, %v3154
        %v3282 = vsel %vm977, %v3266, %v3156
        %v3283 = vsel %vm977, %v3267, %v3158
        %v3284 = vsel %vm977, %v3268, %v3160
        %v3285 = vsel %vm977, %v3269, %v3162
        %v3286 = vsel %vm977, %v3270, %v3164
        %v3287 = vsel %vm977, %v3271, %v3166
        %v3288 = vsel %vm977, %v3272, %v3168
        %v3289 = vsel %vm977, %v3273, %v3170
        %v3290 = vsel %vm977, %v3274, %v3172
        %v3291 = vsel %vm977, %v3275, %v3174
        %v3292 = vsel %vm977, %v3276, %v3176
        %v3293 = vsel %vm977, %v3277, %v3178
        %v3294 = vsel %vm977, %v3278, %v3180
        %v3295 = vsel %vm977, %v3279, %v3182
        %v3296 = vsel %vm977, %v3280, %v3184
        %vm3297 = vcmask 785408
        %v3298 = vsel %vm3297, %v3281, %v3218
        %v3299 = vsel %vm3297, %v3282, %v3220
        %v3300 = vsel %vm3297, %v3283, %v3222
        %v3301 = vsel %vm3297, %v3284, %v3224
        %v3302 = vsel %vm3297, %v3285, %v3226
        %v3303 = vsel %vm3297, %v3286, %v3228
        %v3304 = vsel %vm3297, %v3287, %v3230
        %v3305 = vsel %vm3297, %v3288, %v3232
        %v3306 = vsel %vm3297, %v3289, %v3234
        %v3307 = vsel %vm3297, %v3290, %v3236
        %v3308 = vsel %vm3297, %v3291, %v3238
        %v3309 = vsel %vm3297, %v3292, %v3240
        %v3310 = vsel %vm3297, %v3293, %v3242
        %v3311 = vsel %vm3297, %v3294, %v3244
        %v3312 = vsel %vm3297, %v3295, %v3246
        %v3313 = vsel %vm3297, %v3296, %v3248
        %3314 = vst [vmem:[%s446] sm:$0xff] %v3298
        %3315 = vst [vmem:[%s446 + $0x8] sm:$0xff] %v3299
        %3316 = vst [vmem:[%s446 + $0x10] sm:$0xff] %v3300
        %3317 = vst [vmem:[%s446 + $0x18] sm:$0xff] %v3301
        %3318 = vst [vmem:[%s446 + $0x20] sm:$0xff] %v3302
        %3319 = vst [vmem:[%s446 + $0x28] sm:$0xff] %v3303
        %3320 = vst [vmem:[%s446 + $0x30] sm:$0xff] %v3304
        %3321 = vst [vmem:[%s446 + $0x38] sm:$0xff] %v3305
        %3322 = vst [vmem:[%s446 + $0x40] sm:$0xff] %v3306
        %3323 = vst [vmem:[%s446 + $0x48] sm:$0xff] %v3307
        %3324 = vst [vmem:[%s446 + $0x50] sm:$0xff] %v3308
        %3325 = vst [vmem:[%s446 + $0x58] sm:$0xff] %v3309
        %3326 = vst [vmem:[%s446 + $0x60] sm:$0xff] %v3310
        %3327 = vst [vmem:[%s446 + $0x68] sm:$0xff] %v3311
        %3328 = vst [vmem:[%s446 + $0x70] sm:$0xff] %v3312
        %3329 = vst [vmem:[%s446 + $0x78] sm:$0xff] %v3313
        %v3330 = vcvt.s32.f32 %v1766
        %3332 = vset.pattern.permute.xlu0 15
        %3333 = vperm.xlu0 %3332, %v1913
        %v3334 = vpop.permute.xlu0 %3333
        %vm3336 = vcmp.lt.f32.partialorder %v3330, %v3334
        %v3337 = vadd.s32 %v1766, 1
        %v3338 = vsel %vm3336, %v3337, 0
        %3339 = vst [vmem:[%s453] sm:$0xf] %v3338
        %s3340 = sand.u32 %s284, 1
        %s3341 = scalar_lea.sflag [#allocation6], %s3340
        %s3342 = sand.u32 %s284, 1
        %s3343 = smul.addr %s3342, 128
        %s3344 = scalar_lea.vmem [#allocation5], %s3343
        %s3345 = sand.u32 %s40, 1
        %s3346 = scalar_lea.sflag [#allocation8], %s3345
        %s3347 = sand.u32 %s310, 1
        %s3348 = smul.addr %s3347, 4
        %s3349 = scalar_lea.vmem [#allocation7], %s3348
        %s3350 = sand.u32 %s40, 1
        %s3351 = scalar_lea.sflag [#allocation8], %s3350
        %s3352 = sand.u32 %s336, 1
        %s3353 = smul.addr %s3352, 4
        %s3354 = scalar_lea.vmem [#allocation9], %s3353
        // Predicated region
        $region65: #{tpu_custom_call.1} parent=63 // pred_check
          %p3355 = pneg %p294
        $region66: #{tpu_custom_call.1} parent=63 // pred_check_branch
          %3357 = sbr.rel (%p3355) target = $region68
        $region67: #{tpu_custom_call.1} parent=63 // pred_region
          %s3359 = ssub.s32 2048, 2048
          %3360 = vsyncadd %s3341, %s3359
          %s3361 = smul.addr %s40, 16
          %s3362 = smul.addr %s3361, 128
          %s3363 = scalar_lea.hbm %s12, %s3362
          %s3364 = sshll.u32 %s3344, 4
          %s3365 = int_to_ptr.vmem [resolvable:$true] %s3364
          %3370 = dma.vmem_to_hbm [thread:$0]  %s3365, 2048, %s3363, %s3341, 128, 128, 8
        $region68: #{tpu_custom_call.1} parent=63 // pred_fallthru
          _
        // Predicated region
        $region69: #{tpu_custom_call.1} parent=63 // pred_check
          %p3371 = pneg %p320
        $region70: #{tpu_custom_call.1} parent=63 // pred_check_branch
          %3373 = sbr.rel (%p3371) target = $region72
        $region71: #{tpu_custom_call.1} parent=63 // pred_region
          %s3375 = ssub.s32 64, 64
          %3376 = vsyncadd %s3346, %s3375
          %s3377 = smul.addr %s40, 64
          %s3378 = scalar_lea.hbm %s13, %s3377
          %s3380 = sshll.u32 %s3349, 4
          %s3381 = int_to_ptr.vmem [resolvable:$true] %s3380
          %3383 = dma.vmem_to_hbm [thread:$0]  %s3381, 64, %s3378, %s3346
        $region72: #{tpu_custom_call.1} parent=63 // pred_fallthru
          _
        // Predicated region
        $region73: #{tpu_custom_call.1} parent=63 // pred_check
          %p3384 = pneg %p346
        $region74: #{tpu_custom_call.1} parent=63 // pred_check_branch
          %3386 = sbr.rel (%p3384) target = $region76
        $region75: #{tpu_custom_call.1} parent=63 // pred_region
          %s3388 = ssub.s32 64, 64
          %3389 = vsyncadd %s3351, %s3388
          %s3390 = smul.addr %s40, 64
          %s3391 = scalar_lea.hbm %s14, %s3390
          %s3393 = sshll.u32 %s3354, 4
          %s3394 = int_to_ptr.vmem [resolvable:$true] %s3393
          %3396 = dma.vmem_to_hbm [thread:$0]  %s3394, 64, %s3391, %s3351
        $region76: #{tpu_custom_call.1} parent=63 // pred_fallthru
          _
      $region64: #{tpu_custom_call.1} parent=5 // pred_fallthru
        _
      %p3397 = scmp.le.s32.totalorder 2, %s35
      // Predicated region
      $region77: #{tpu_custom_call.1} parent=5 // pred_check
        %p3398 = pneg %p3397
      $region78: #{tpu_custom_call.1} parent=5 // pred_check_branch
        %3400 = sbr.rel (%p3398) target = $region80
      $region79: #{tpu_custom_call.1} parent=5 // pred_region
        %s3401 = ssub.s32 %s35, 2
        // Predicated region
        $region81: #{tpu_custom_call.1} parent=79 // pred_check
          %p3402 = pneg %p300
        $region82: #{tpu_custom_call.1} parent=79 // pred_check_branch
          %3404 = sbr.rel (%p3402) target = $region84
        $region83: #{tpu_custom_call.1} parent=79 // pred_region
          %s3405 = sand.u32 %s285, 1
          %s3406 = scalar_lea.sflag [#allocation6], %s3405
          %s3407 = sand.u32 %s285, 1
          %s3408 = smul.addr %s3407, 128
          %s3409 = scalar_lea.vmem [#allocation5], %s3408
          %3410 = dma.done %s3406, 2048
        $region84: #{tpu_custom_call.1} parent=79 // pred_fallthru
          _
        // Predicated region
        $region85: #{tpu_custom_call.1} parent=79 // pred_check
          %p3411 = pneg %p326
        $region86: #{tpu_custom_call.1} parent=79 // pred_check_branch
          %3413 = sbr.rel (%p3411) target = $region88
        $region87: #{tpu_custom_call.1} parent=79 // pred_region
          %s3414 = sand.u32 %s41, 1
          %s3415 = scalar_lea.sflag [#allocation8], %s3414
          %s3416 = sand.u32 %s311, 1
          %s3417 = smul.addr %s3416, 4
          %s3418 = scalar_lea.vmem [#allocation7], %s3417
          %3419 = dma.done %s3415, 64
        $region88: #{tpu_custom_call.1} parent=79 // pred_fallthru
          _
        // Predicated region
        $region89: #{tpu_custom_call.1} parent=79 // pred_check
          %p3420 = pneg %p352
        $region90: #{tpu_custom_call.1} parent=79 // pred_check_branch
          %3422 = sbr.rel (%p3420) target = $region92
        $region91: #{tpu_custom_call.1} parent=79 // pred_region
          %s3423 = sand.u32 %s41, 1
          %s3424 = scalar_lea.sflag [#allocation8], %s3423
          %s3425 = sand.u32 %s337, 1
          %s3426 = smul.addr %s3425, 4
          %s3427 = scalar_lea.vmem [#allocation9], %s3426
          %3428 = dma.done %s3424, 64
        $region92: #{tpu_custom_call.1} parent=79 // pred_fallthru
          _
      $region80: #{tpu_custom_call.1} parent=5 // pred_fallthru
        _
    $region6: #{tpu_custom_call.1} parent=1 // loop_footer
      %s39 = sadd.s32 1, %s35
    $region7: #{tpu_custom_call.1} parent=1 // loop_footer_branch
      %34 = sbr.rel target = $region3
    $region8: #{tpu_custom_call.1} parent=1 // loop_exit
      _
    %3429 = vsyncpa [#allocation6], 1
    %s3430 = scalar_lea.sflag [#allocation6], 1
    %3431 = vsyncpa %s3430, 1
    %3432 = vsyncpa [#allocation8], 1
    %s3433 = scalar_lea.sflag [#allocation8], 1
    %3434 = vsyncpa %s3433, 1

</llo_original>
